<compile_context>
chip_gen: v5e
topology: v5e:2x2
jax: 0.10.0
libtpu: 0.0.40
codegen_flags: <defaults>
</compile_context>

<pallas_src>
import math
from functools import partial

import jax
import jax.numpy as jnp
from jax import lax
from jax.experimental import pallas as pl
from jax.experimental.pallas import tpu as pltpu


def encoder_layer_kernel(x_ref, mask_ref,
                         wq_ref, wk_ref, wv_ref, wo_ref,
                         w1_ref, w2_ref,
                         vec_ref,     # (9, F): bq, bk, bv, bo, b2, ln1w, ln1b, ln2w, ln2b
                         b1_ref,      # (1, H)
                         o_ref,
                         q_scr, k_scr, v_scr, ctx_scr, mb_scr,
                         *, head: int, eps: float, fast: bool):
    Bt, S, F = x_ref.shape
    d = F // head
    cdt = jnp.bfloat16 if fast else jnp.float32      # MXU operand dtype

    bq, bk, bv, bo, b2 = (vec_ref[i] for i in range(5))
    ln1w, ln1b, ln2w, ln2b = (vec_ref[i] for i in range(5, 9))

    def recip(z):
        # fast path: EUP approximate reciprocal (free slot next to exp/sqrt)
        return pl.reciprocal(z, approx=True) if fast else 1.0 / z

    def layer_norm(z, w, b):
        # Matches the module's custom LayerNorm: torch .std() is Bessel-corrected
        # (N-1) and eps is added to std (NOT torch.nn.LayerNorm semantics).
        # The centered term `c` is reused for both the variance and the output.
        mean = jnp.mean(z, axis=-1, keepdims=True)
        c = z - mean
        var = jnp.sum(c * c, axis=-1, keepdims=True) * (1.0 / (F - 1))
        inv = recip(jnp.sqrt(var) + eps)
        return w * c * inv + b

    def mm(a, b_):
        # (..., K) @ (K, N) on the MXU with f32 accumulation. Weights arrive
        # already in `cdt` from the wrapper; activations are cast here.
        return lax.dot_general(
            a.astype(cdt), b_,
            dimension_numbers=(((a.ndim - 1,), (0,)), ((), ())),
            preferred_element_type=jnp.float32)

    def bmm(a, b_, contract_b):
        # Batched over dim 0; contraction on a's last dim / b's `contract_b`
        # dim (no explicit transpose -> the MXU consumes operands directly).
        return lax.dot_general(
            a.astype(cdt), b_.astype(cdt),
            dimension_numbers=(((2,), (contract_b,)), ((0,), (0,))),
            preferred_element_type=jnp.float32)

    # ---------------- sublayer 0: multi-head self-attention ----------------
    n1 = layer_norm(x_ref[...], ln1w, ln1b).astype(cdt)      # cast once for 3 GEMMs
    q = mm(n1, wq_ref[...]) + bq                             # (Bt, S, F) f32
    k = mm(n1, wk_ref[...]) + bk
    v = mm(n1, wv_ref[...]) + bv

    # Mask bias hoisted out of the loop (additive -1e9 where mask == 0).
    mb = jnp.where(mask_ref[...] == 0, jnp.float32(-1e9), jnp.float32(0.0))  # (Bt,1,S)

    # Head-major relayout written ONCE (pure data movement, no per-head GEMMs).
    for h in range(head):
        lo = h * d
        rows = slice(h * Bt, (h + 1) * Bt)
        q_scr[rows] = q[:, :, lo:lo + d].astype(cdt)
        k_scr[rows] = k[:, :, lo:lo + d].astype(cdt)
        v_scr[rows] = v[:, :, lo:lo + d].astype(cdt)
        mb_scr[rows] = mb

    scale = jnp.float32(1.0 / math.sqrt(d))
    scores = bmm(q_scr[...], k_scr[...], contract_b=2) * scale + mb_scr[...]
    scores = scores - jnp.max(scores, axis=-1, keepdims=True)          # (head*Bt,S,S)
    e = jnp.exp(scores)
    p = e * recip(jnp.sum(e, axis=-1, keepdims=True))
    # TODO(synk): attention / sublayer dropouts are identity (inference semantics).
    ctx = bmm(p, v_scr[...], contract_b=1)                             # (head*Bt,S,d)

    # Merge heads back to (Bt, S, F) so Wo runs as a single full-width GEMM.
    for h in range(head):
        ctx_scr[:, :, h * d:(h + 1) * d] = ctx[h * Bt:(h + 1) * Bt].astype(cdt)
    x1 = x_ref[...] + mm(ctx_scr[...], wo_ref[...]) + bo               # residual 1

    # ---------------- sublayer 1: position-wise feed forward ----------------
    n2 = layer_norm(x1, ln2w, ln2b)
    h1 = jnp.maximum(mm(n2, w1_ref[...]) + b1_ref[0], 0.0)
    ff = mm(h1, w2_ref[...]) + b2
    o_ref[...] = (x1 + ff).astype(o_ref.dtype)


def _vmem_bytes_estimate(block_b, S, F, H, head, fast):
    """Rough resident-VMEM bytes for one grid step: double-buffered I/O blocks
    and weights (default pipelining) + scratch + live intermediates."""
    wsz = 2 if fast else 4
    csz = 2 if fast else 4
    weights = (4 * F * F + 2 * F * H) * wsz + (9 * F + H) * 4
    io = 2 * block_b * S * F * 4 + block_b * S * 4                 # x + out + mask
    scratch = 4 * block_b * S * F * csz + head * block_b * S * 4   # q/k/v/ctx + bias
    live = (6 * block_b * S * F + 3 * head * block_b * S * S
            + 2 * block_b * S * H) * 4
    return 2 * (io + weights) + scratch + live


def _pick_block_b(B, S, F, H, head, fast, target_rows=256,
                  vmem_budget=40 * 1024 * 1024):
    """Largest divisor of B with block_b*S <= target_rows that fits the VMEM
    budget, preferring an EVEN grid count (both v7x TensorCores busy), then
    >= 2 blocks, then anything.  Raise target_rows to 512-1024 on v5e/v6e
    (128 MiB VMEM) to amortize per-step overhead further."""
    divisors = [c for c in range(B, 0, -1) if B % c == 0]
    fitting = [c for c in divisors
               if c * S <= target_rows
               and _vmem_bytes_estimate(c, S, F, H, head, fast) <= vmem_budget]
    if not fitting:
        fitting = [1]
    for group in ([c for c in fitting if (B // c) % 2 == 0],
                  [c for c in fitting if (B // c) >= 2],
                  fitting):
        if group:
            return group[0]


def encoder_layer(x, mask, params, *, head: int, eps: float = 1e-6,
                  block_b: int = None, fast_math: bool = False,
                  target_rows: int = 256):
    B, S, F = x.shape
    H = params["w1"].shape[1]
    assert F % head == 0, "feature_size must be divisible by head"
    if block_b is None:
        block_b = _pick_block_b(B, S, F, H, head, fast_math, target_rows)
    assert B % block_b == 0
    grid = (B // block_b,)
    d = F // head

    wdt = jnp.bfloat16 if fast_math else jnp.float32
    cdt = jnp.bfloat16 if fast_math else jnp.float32
    # Pre-cast the big weights once in the wrapper (halves DMA + resident VMEM
    # in the fast path; no repeated per-use VPU casts inside the kernel).
    wq = params["wq"].astype(wdt)
    wk = params["wk"].astype(wdt)
    wv = params["wv"].astype(wdt)
    wo = params["wo"].astype(wdt)
    w1 = params["w1"].astype(wdt)
    w2 = params["w2"].astype(wdt)
    # Pack all 9 F-sized parameter vectors into a single block (1 DMA
    # descriptor + one 8-sublane padding instead of nine).
    vec = jnp.concatenate(
        [params["bq"], params["bk"], params["bv"], params["bo"], params["b2"],
         params["ln1w"], params["ln1b"], params["ln2w"], params["ln2b"]],
        axis=0).astype(jnp.float32)                                   # (9, F)
    b1 = params["b1"].astype(jnp.float32)                             # (1, H)

    kernel = partial(encoder_layer_kernel, head=head, eps=eps, fast=fast_math)

    # Advisory cost estimate so XLA schedules around the custom call sensibly.
    flops = 2 * B * S * F * (4 * F + 2 * H) + 4 * B * S * S * F
    bytes_accessed = (4 * (2 * B * S * F + B * S)
                      + (2 if fast_math else 4) * (4 * F * F + 2 * F * H)
                      + 4 * (9 * F + H))
    cost = pl.CostEstimate(flops=flops,
                           transcendentals=B * head * S * S,
                           bytes_accessed=bytes_accessed)

    def const_spec(shape):
        return pl.BlockSpec(shape, lambda b: (0, 0))      # all constants are 2-D

    in_specs = [
        pl.BlockSpec((block_b, S, F), lambda b: (b, 0, 0)),   # x
        pl.BlockSpec((block_b, 1, S), lambda b: (b, 0, 0)),   # mask
        const_spec((F, F)), const_spec((F, F)),               # wq, wk
        const_spec((F, F)), const_spec((F, F)),               # wv, wo
        const_spec((F, H)), const_spec((H, F)),               # w1, w2
        const_spec((9, F)),                                   # packed biases + LN
        const_spec((1, H)),                                   # b1
    ]
    out_spec = pl.BlockSpec((block_b, S, F), lambda b: (b, 0, 0))

    scratch_shapes = [
        pltpu.VMEM((head * block_b, S, d), cdt),              # q (head-major)
        pltpu.VMEM((head * block_b, S, d), cdt),              # k
        pltpu.VMEM((head * block_b, S, d), cdt),              # v
        pltpu.VMEM((block_b, S, F), cdt),                     # merged context
        pltpu.VMEM((head * block_b, 1, S), jnp.float32),      # head-tiled mask bias
    ]

    return pl.pallas_call(
        kernel,
        out_shape=jax.ShapeDtypeStruct((B, S, F), x.dtype),
        grid=grid,
        in_specs=in_specs,
        out_specs=out_spec,
        scratch_shapes=scratch_shapes,
        cost_estimate=cost,
        compiler_params=pltpu.CompilerParams(
            dimension_semantics=("parallel",),
            # 48 MiB: plenty on v5e/v6e (128 MiB) and leaves headroom on v7x
            # (64 MiB physical per TensorCore).
            vmem_limit_bytes=48 * 1024 * 1024),
    )(x, mask, wq, wk, wv, wo, w1, w2, vec, b1)


def encoder_layer_ref(x, mask, p, *, head: int, eps: float = 1e-6):
    """Pure-JAX reference mirroring the PyTorch forward (dropout = identity)."""
    B, S, F = x.shape
    d = F // head

    def ln(z, w, b):
        mean = jnp.mean(z, -1, keepdims=True)
        std = jnp.sqrt(jnp.sum((z - mean) ** 2, -1, keepdims=True) / (F - 1))
        return w[0] * (z - mean) / (std + eps) + b[0]

    n = ln(x, p["ln1w"], p["ln1b"])
    q = n @ p["wq"] + p["bq"][0]
    k = n @ p["wk"] + p["bk"][0]
    v = n @ p["wv"] + p["bv"][0]
    qh = q.reshape(B, S, head, d).transpose(0, 2, 1, 3)
    kh = k.reshape(B, S, head, d).transpose(0, 2, 1, 3)
    vh = v.reshape(B, S, head, d).transpose(0, 2, 1, 3)
    scores = jnp.einsum("bhqd,bhkd->bhqk", qh, kh) / math.sqrt(d)
    m = mask[:, None, :, :]                                   # (B,1,1,S)
    scores = jnp.where(m == 0, -1e9, scores)
    pattn = jax.nn.softmax(scores, axis=-1)
    a = jnp.einsum("bhqk,bhkd->bhqd", pattn, vh)
    a = a.transpose(0, 2, 1, 3).reshape(B, S, F)
    x = x + (a @ p["wo"] + p["bo"][0])

    n2 = ln(x, p["ln2w"], p["ln2b"])
    h1 = jax.nn.relu(n2 @ p["w1"] + p["b1"][0])
    return x + (h1 @ p["w2"] + p["b2"][0])


if __name__ == "__main__":
    B, S, F, HEAD, HID = 8, 8, 32, 4, 64

    key = jax.random.PRNGKey(0)
    keys = jax.random.split(key, 16)
    f32 = jnp.float32

    params = {
        "wq": jax.random.normal(keys[0], (F, F), f32) * 0.1,
        "bq": jax.random.normal(keys[1], (1, F), f32) * 0.1,
        "wk": jax.random.normal(keys[2], (F, F), f32) * 0.1,
        "bk": jax.random.normal(keys[3], (1, F), f32) * 0.1,
        "wv": jax.random.normal(keys[4], (F, F), f32) * 0.1,
        "bv": jax.random.normal(keys[5], (1, F), f32) * 0.1,
        "wo": jax.random.normal(keys[6], (F, F), f32) * 0.1,
        "bo": jax.random.normal(keys[7], (1, F), f32) * 0.1,
        "w1": jax.random.normal(keys[8], (F, HID), f32) * 0.1,
        "b1": jax.random.normal(keys[9], (1, HID), f32) * 0.1,
        "w2": jax.random.normal(keys[10], (HID, F), f32) * 0.1,
        "b2": jax.random.normal(keys[11], (1, F), f32) * 0.1,
        "ln1w": jnp.ones((1, F), f32),
        "ln1b": jnp.zeros((1, F), f32),
        "ln2w": jnp.ones((1, F), f32),
        "ln2b": jnp.zeros((1, F), f32),
    }

    x = jax.random.normal(keys[12], (B, S, F), f32)
    mask = jnp.ones((B, 1, S), jnp.int32)        # all-True mask (no masking)

    ref = encoder_layer_ref(x, mask, params, head=HEAD)

    # Precise (f32) path.
    out = jax.block_until_ready(encoder_layer(x, mask, params, head=HEAD))
    assert out.shape == (B, S, F)
    assert jnp.allclose(out, ref, atol=1e-4, rtol=1e-4), "mismatch vs reference"

    # Fast-math path (bf16 MXU operands + approx reciprocal), looser tolerance.
    out_fast = jax.block_until_ready(
        encoder_layer(x, mask, params, head=HEAD, fast_math=True))
    assert jnp.allclose(out_fast, ref, atol=5e-2, rtol=5e-2), "fast-path mismatch"

    print("KERNEL_OK")
</pallas_src>

<mosaic_0001>
module attributes {stable_mosaic.version = 11 : i64} {
  func.func @encoder_layer_kernel(%arg0: i32, %arg1: memref<4x8x32xf32, #tpu.memory_space<vmem>>, %arg2: memref<4x1x8xi32, #tpu.memory_space<vmem>>, %arg3: memref<32x32xf32, #tpu.memory_space<vmem>>, %arg4: memref<32x32xf32, #tpu.memory_space<vmem>>, %arg5: memref<32x32xf32, #tpu.memory_space<vmem>>, %arg6: memref<32x32xf32, #tpu.memory_space<vmem>>, %arg7: memref<32x64xf32, #tpu.memory_space<vmem>>, %arg8: memref<64x32xf32, #tpu.memory_space<vmem>>, %arg9: memref<9x32xf32, #tpu.memory_space<vmem>>, %arg10: memref<1x64xf32, #tpu.memory_space<vmem>>, %arg11: memref<4x8x32xf32, #tpu.memory_space<vmem>>, %arg12: memref<16x8x8xf32, #tpu.memory_space<vmem>>, %arg13: memref<16x8x8xf32, #tpu.memory_space<vmem>>, %arg14: memref<16x8x8xf32, #tpu.memory_space<vmem>>, %arg15: memref<4x8x32xf32, #tpu.memory_space<vmem>>, %arg16: memref<16x1x8xf32, #tpu.memory_space<vmem>>) attributes {dimension_semantics = [#tpu.dimension_semantics<parallel>], iteration_bounds = array<i64: 2>, scalar_prefetch = 0 : i64, scratch_operands = 5 : i64, tpu.core_type = #tpu.core_type<tc>, window_params = [{transform_indices = @transform_0, window_bounds = array<i64: 4, 8, 32>}, {transform_indices = @transform_1, window_bounds = array<i64: 4, 1, 8>}, {pipeline_mode = #tpu.pipeline_mode<synchronous>, transform_indices = @transform_2, window_bounds = array<i64: 32, 32>}, {pipeline_mode = #tpu.pipeline_mode<synchronous>, transform_indices = @transform_3, window_bounds = array<i64: 32, 32>}, {pipeline_mode = #tpu.pipeline_mode<synchronous>, transform_indices = @transform_4, window_bounds = array<i64: 32, 32>}, {pipeline_mode = #tpu.pipeline_mode<synchronous>, transform_indices = @transform_5, window_bounds = array<i64: 32, 32>}, {pipeline_mode = #tpu.pipeline_mode<synchronous>, transform_indices = @transform_6, window_bounds = array<i64: 32, 64>}, {pipeline_mode = #tpu.pipeline_mode<synchronous>, transform_indices = @transform_7, window_bounds = array<i64: 64, 32>}, {pipeline_mode = #tpu.pipeline_mode<synchronous>, transform_indices = @transform_8, window_bounds = array<i64: 9, 32>}, {pipeline_mode = #tpu.pipeline_mode<synchronous>, transform_indices = @transform_9, window_bounds = array<i64: 1, 64>}, {transform_indices = @transform_10, window_bounds = array<i64: 4, 8, 32>}]} {
    %c0 = arith.constant 0 : index
    %c0_0 = arith.constant 0 : index
    %0 = vector.load %arg9[%c0, %c0_0] : memref<9x32xf32, #tpu.memory_space<vmem>>, vector<1x32xf32>
    %1 = vector.shape_cast %0 : vector<1x32xf32> to vector<32xf32>
    %c1 = arith.constant 1 : index
    %c0_1 = arith.constant 0 : index
    %2 = vector.load %arg9[%c1, %c0_1] : memref<9x32xf32, #tpu.memory_space<vmem>>, vector<1x32xf32>
    %3 = vector.shape_cast %2 : vector<1x32xf32> to vector<32xf32>
    %c2 = arith.constant 2 : index
    %c0_2 = arith.constant 0 : index
    %4 = vector.load %arg9[%c2, %c0_2] : memref<9x32xf32, #tpu.memory_space<vmem>>, vector<1x32xf32>
    %5 = vector.shape_cast %4 : vector<1x32xf32> to vector<32xf32>
    %c3 = arith.constant 3 : index
    %c0_3 = arith.constant 0 : index
    %6 = vector.load %arg9[%c3, %c0_3] : memref<9x32xf32, #tpu.memory_space<vmem>>, vector<1x32xf32>
    %7 = vector.shape_cast %6 : vector<1x32xf32> to vector<32xf32>
    %c4 = arith.constant 4 : index
    %c0_4 = arith.constant 0 : index
    %8 = vector.load %arg9[%c4, %c0_4] : memref<9x32xf32, #tpu.memory_space<vmem>>, vector<1x32xf32>
    %9 = vector.shape_cast %8 : vector<1x32xf32> to vector<32xf32>
    %c5 = arith.constant 5 : index
    %c0_5 = arith.constant 0 : index
    %10 = vector.load %arg9[%c5, %c0_5] : memref<9x32xf32, #tpu.memory_space<vmem>>, vector<1x32xf32>
    %11 = vector.shape_cast %10 : vector<1x32xf32> to vector<32xf32>
    %c6 = arith.constant 6 : index
    %c0_6 = arith.constant 0 : index
    %12 = vector.load %arg9[%c6, %c0_6] : memref<9x32xf32, #tpu.memory_space<vmem>>, vector<1x32xf32>
    %13 = vector.shape_cast %12 : vector<1x32xf32> to vector<32xf32>
    %c7 = arith.constant 7 : index
    %c0_7 = arith.constant 0 : index
    %14 = vector.load %arg9[%c7, %c0_7] : memref<9x32xf32, #tpu.memory_space<vmem>>, vector<1x32xf32>
    %15 = vector.shape_cast %14 : vector<1x32xf32> to vector<32xf32>
    %c8 = arith.constant 8 : index
    %c0_8 = arith.constant 0 : index
    %16 = vector.load %arg9[%c8, %c0_8] : memref<9x32xf32, #tpu.memory_space<vmem>>, vector<1x32xf32>
    %17 = vector.shape_cast %16 : vector<1x32xf32> to vector<32xf32>
    %c0_9 = arith.constant 0 : index
    %c0_10 = arith.constant 0 : index
    %c0_11 = arith.constant 0 : index
    %18 = vector.load %arg1[%c0_9, %c0_10, %c0_11] : memref<4x8x32xf32, #tpu.memory_space<vmem>>, vector<4x8x32xf32>
    %cst = arith.constant dense<0.000000e+00> : vector<4x8xf32>
    %19 = vector.multi_reduction <add>, %18, %cst [2] : vector<4x8x32xf32> to vector<4x8xf32>
    %20 = vector.shape_cast %19 : vector<4x8xf32> to vector<4x8x1xf32>
    %cst_12 = arith.constant 3.200000e+01 : f32
    %21 = vector.broadcast %cst_12 : f32 to vector<4x8x1xf32>
    %22 = arith.divf %20, %21 : vector<4x8x1xf32>
    %23 = vector.broadcast %22 : vector<4x8x1xf32> to vector<4x8x32xf32>
    %24 = arith.subf %18, %23 : vector<4x8x32xf32>
    %25 = arith.mulf %24, %24 : vector<4x8x32xf32>
    %cst_13 = arith.constant dense<0.000000e+00> : vector<4x8xf32>
    %26 = vector.multi_reduction <add>, %25, %cst_13 [2] : vector<4x8x32xf32> to vector<4x8xf32>
    %27 = vector.shape_cast %26 : vector<4x8xf32> to vector<4x8x1xf32>
    %cst_14 = arith.constant 0.0322580636 : f32
    %28 = vector.broadcast %cst_14 : f32 to vector<4x8x1xf32>
    %29 = arith.mulf %27, %28 : vector<4x8x1xf32>
    %30 = math.sqrt %29 : vector<4x8x1xf32>
    %cst_15 = arith.constant 9.99999997E-7 : f32
    %31 = vector.broadcast %cst_15 : f32 to vector<4x8x1xf32>
    %32 = arith.addf %30, %31 : vector<4x8x1xf32>
    %cst_16 = arith.constant 1.000000e+00 : f32
    %33 = vector.broadcast %cst_16 : f32 to vector<4x8x1xf32>
    %34 = arith.divf %33, %32 : vector<4x8x1xf32>
    %35 = vector.shape_cast %11 : vector<32xf32> to vector<1x1x32xf32>
    %36 = vector.broadcast %35 : vector<1x1x32xf32> to vector<4x8x32xf32>
    %37 = arith.mulf %36, %24 : vector<4x8x32xf32>
    %38 = vector.broadcast %34 : vector<4x8x1xf32> to vector<4x8x32xf32>
    %39 = arith.mulf %37, %38 : vector<4x8x32xf32>
    %40 = vector.shape_cast %13 : vector<32xf32> to vector<1x1x32xf32>
    %41 = vector.broadcast %40 : vector<1x1x32xf32> to vector<4x8x32xf32>
    %42 = arith.addf %39, %41 : vector<4x8x32xf32>
    %c0_17 = arith.constant 0 : index
    %c0_18 = arith.constant 0 : index
    %43 = vector.load %arg3[%c0_17, %c0_18] : memref<32x32xf32, #tpu.memory_space<vmem>>, vector<32x32xf32>
    %cst_19 = arith.constant dense<0.000000e+00> : vector<4x8x32xf32>
    %44 = tpu.matmul %42, %43, %cst_19 {dimension_numbers = #tpu.dot_dimension_numbers<[2], [0], [0, 1], [1], [0, 0, 0, 1, 1, 1], [], []>} : vector<4x8x32xf32>, vector<32x32xf32>, vector<4x8x32xf32> -> vector<4x8x32xf32>
    %45 = vector.shape_cast %1 : vector<32xf32> to vector<1x1x32xf32>
    %46 = vector.broadcast %45 : vector<1x1x32xf32> to vector<4x8x32xf32>
    %47 = arith.addf %44, %46 : vector<4x8x32xf32>
    %c0_20 = arith.constant 0 : index
    %c0_21 = arith.constant 0 : index
    %48 = vector.load %arg4[%c0_20, %c0_21] : memref<32x32xf32, #tpu.memory_space<vmem>>, vector<32x32xf32>
    %cst_22 = arith.constant dense<0.000000e+00> : vector<4x8x32xf32>
    %49 = tpu.matmul %42, %48, %cst_22 {dimension_numbers = #tpu.dot_dimension_numbers<[2], [0], [0, 1], [1], [0, 0, 0, 1, 1, 1], [], []>} : vector<4x8x32xf32>, vector<32x32xf32>, vector<4x8x32xf32> -> vector<4x8x32xf32>
    %50 = vector.shape_cast %3 : vector<32xf32> to vector<1x1x32xf32>
    %51 = vector.broadcast %50 : vector<1x1x32xf32> to vector<4x8x32xf32>
    %52 = arith.addf %49, %51 : vector<4x8x32xf32>
    %c0_23 = arith.constant 0 : index
    %c0_24 = arith.constant 0 : index
    %53 = vector.load %arg5[%c0_23, %c0_24] : memref<32x32xf32, #tpu.memory_space<vmem>>, vector<32x32xf32>
    %cst_25 = arith.constant dense<0.000000e+00> : vector<4x8x32xf32>
    %54 = tpu.matmul %42, %53, %cst_25 {dimension_numbers = #tpu.dot_dimension_numbers<[2], [0], [0, 1], [1], [0, 0, 0, 1, 1, 1], [], []>} : vector<4x8x32xf32>, vector<32x32xf32>, vector<4x8x32xf32> -> vector<4x8x32xf32>
    %55 = vector.shape_cast %5 : vector<32xf32> to vector<1x1x32xf32>
    %56 = vector.broadcast %55 : vector<1x1x32xf32> to vector<4x8x32xf32>
    %57 = arith.addf %54, %56 : vector<4x8x32xf32>
    %c0_26 = arith.constant 0 : index
    %c0_27 = arith.constant 0 : index
    %c0_28 = arith.constant 0 : index
    %58 = vector.load %arg2[%c0_26, %c0_27, %c0_28] : memref<4x1x8xi32, #tpu.memory_space<vmem>>, vector<4x1x8xi32>
    %c0_i32 = arith.constant 0 : i32
    %59 = vector.broadcast %c0_i32 : i32 to vector<4x1x8xi32>
    %60 = arith.cmpi eq, %58, %59 : vector<4x1x8xi32>
    %cst_29 = arith.constant -1.000000e+09 : f32
    %cst_30 = arith.constant 0.000000e+00 : f32
    %61 = vector.broadcast %cst_29 : f32 to vector<4x1x8xf32>
    %62 = vector.broadcast %cst_30 : f32 to vector<4x1x8xf32>
    %63 = arith.select %60, %61, %62 : vector<4x1x8xi1>, vector<4x1x8xf32>
    %64 = vector.extract_strided_slice %47 {offsets = [0, 0, 0], sizes = [4, 8, 8], strides = [1, 1, 1]} : vector<4x8x32xf32> to vector<4x8x8xf32>
    %c0_31 = arith.constant 0 : index
    %c0_32 = arith.constant 0 : index
    %c0_33 = arith.constant 0 : index
    %65 = vector.load %arg12[%c0_31, %c0_32, %c0_33] : memref<16x8x8xf32, #tpu.memory_space<vmem>>, vector<4x8x8xf32>
    tpu.vector_store %arg12[%c0_31, %c0_32, %c0_33], %64 {strides = array<i32>} : memref<16x8x8xf32, #tpu.memory_space<vmem>>, vector<4x8x8xf32>,
    %66 = vector.extract_strided_slice %52 {offsets = [0, 0, 0], sizes = [4, 8, 8], strides = [1, 1, 1]} : vector<4x8x32xf32> to vector<4x8x8xf32>
    %c0_34 = arith.constant 0 : index
    %c0_35 = arith.constant 0 : index
    %c0_36 = arith.constant 0 : index
    %67 = vector.load %arg13[%c0_34, %c0_35, %c0_36] : memref<16x8x8xf32, #tpu.memory_space<vmem>>, vector<4x8x8xf32>
    tpu.vector_store %arg13[%c0_34, %c0_35, %c0_36], %66 {strides = array<i32>} : memref<16x8x8xf32, #tpu.memory_space<vmem>>, vector<4x8x8xf32>,
    %68 = vector.extract_strided_slice %57 {offsets = [0, 0, 0], sizes = [4, 8, 8], strides = [1, 1, 1]} : vector<4x8x32xf32> to vector<4x8x8xf32>
    %c0_37 = arith.constant 0 : index
    %c0_38 = arith.constant 0 : index
    %c0_39 = arith.constant 0 : index
    %69 = vector.load %arg14[%c0_37, %c0_38, %c0_39] : memref<16x8x8xf32, #tpu.memory_space<vmem>>, vector<4x8x8xf32>
    tpu.vector_store %arg14[%c0_37, %c0_38, %c0_39], %68 {strides = array<i32>} : memref<16x8x8xf32, #tpu.memory_space<vmem>>, vector<4x8x8xf32>,
    %c0_40 = arith.constant 0 : index
    %c0_41 = arith.constant 0 : index
    %c0_42 = arith.constant 0 : index
    %70 = vector.load %arg16[%c0_40, %c0_41, %c0_42] : memref<16x1x8xf32, #tpu.memory_space<vmem>>, vector<4x1x8xf32>
    tpu.vector_store %arg16[%c0_40, %c0_41, %c0_42], %63 {strides = array<i32>} : memref<16x1x8xf32, #tpu.memory_space<vmem>>, vector<4x1x8xf32>,
    %71 = vector.extract_strided_slice %47 {offsets = [0, 0, 8], sizes = [4, 8, 8], strides = [1, 1, 1]} : vector<4x8x32xf32> to vector<4x8x8xf32>
    %c4_43 = arith.constant 4 : index
    %c0_44 = arith.constant 0 : index
    %c0_45 = arith.constant 0 : index
    %72 = vector.load %arg12[%c4_43, %c0_44, %c0_45] : memref<16x8x8xf32, #tpu.memory_space<vmem>>, vector<4x8x8xf32>
    tpu.vector_store %arg12[%c4_43, %c0_44, %c0_45], %71 {strides = array<i32>} : memref<16x8x8xf32, #tpu.memory_space<vmem>>, vector<4x8x8xf32>,
    %73 = vector.extract_strided_slice %52 {offsets = [0, 0, 8], sizes = [4, 8, 8], strides = [1, 1, 1]} : vector<4x8x32xf32> to vector<4x8x8xf32>
    %c4_46 = arith.constant 4 : index
    %c0_47 = arith.constant 0 : index
    %c0_48 = arith.constant 0 : index
    %74 = vector.load %arg13[%c4_46, %c0_47, %c0_48] : memref<16x8x8xf32, #tpu.memory_space<vmem>>, vector<4x8x8xf32>
    tpu.vector_store %arg13[%c4_46, %c0_47, %c0_48], %73 {strides = array<i32>} : memref<16x8x8xf32, #tpu.memory_space<vmem>>, vector<4x8x8xf32>,
    %75 = vector.extract_strided_slice %57 {offsets = [0, 0, 8], sizes = [4, 8, 8], strides = [1, 1, 1]} : vector<4x8x32xf32> to vector<4x8x8xf32>
    %c4_49 = arith.constant 4 : index
    %c0_50 = arith.constant 0 : index
    %c0_51 = arith.constant 0 : index
    %76 = vector.load %arg14[%c4_49, %c0_50, %c0_51] : memref<16x8x8xf32, #tpu.memory_space<vmem>>, vector<4x8x8xf32>
    tpu.vector_store %arg14[%c4_49, %c0_50, %c0_51], %75 {strides = array<i32>} : memref<16x8x8xf32, #tpu.memory_space<vmem>>, vector<4x8x8xf32>,
    %c4_52 = arith.constant 4 : index
    %c0_53 = arith.constant 0 : index
    %c0_54 = arith.constant 0 : index
    %77 = vector.load %arg16[%c4_52, %c0_53, %c0_54] : memref<16x1x8xf32, #tpu.memory_space<vmem>>, vector<4x1x8xf32>
    tpu.vector_store %arg16[%c4_52, %c0_53, %c0_54], %63 {strides = array<i32>} : memref<16x1x8xf32, #tpu.memory_space<vmem>>, vector<4x1x8xf32>,
    %78 = vector.extract_strided_slice %47 {offsets = [0, 0, 16], sizes = [4, 8, 8], strides = [1, 1, 1]} : vector<4x8x32xf32> to vector<4x8x8xf32>
    %c8_55 = arith.constant 8 : index
    %c0_56 = arith.constant 0 : index
    %c0_57 = arith.constant 0 : index
    %79 = vector.load %arg12[%c8_55, %c0_56, %c0_57] : memref<16x8x8xf32, #tpu.memory_space<vmem>>, vector<4x8x8xf32>
    tpu.vector_store %arg12[%c8_55, %c0_56, %c0_57], %78 {strides = array<i32>} : memref<16x8x8xf32, #tpu.memory_space<vmem>>, vector<4x8x8xf32>,
    %80 = vector.extract_strided_slice %52 {offsets = [0, 0, 16], sizes = [4, 8, 8], strides = [1, 1, 1]} : vector<4x8x32xf32> to vector<4x8x8xf32>
    %c8_58 = arith.constant 8 : index
    %c0_59 = arith.constant 0 : index
    %c0_60 = arith.constant 0 : index
    %81 = vector.load %arg13[%c8_58, %c0_59, %c0_60] : memref<16x8x8xf32, #tpu.memory_space<vmem>>, vector<4x8x8xf32>
    tpu.vector_store %arg13[%c8_58, %c0_59, %c0_60], %80 {strides = array<i32>} : memref<16x8x8xf32, #tpu.memory_space<vmem>>, vector<4x8x8xf32>,
    %82 = vector.extract_strided_slice %57 {offsets = [0, 0, 16], sizes = [4, 8, 8], strides = [1, 1, 1]} : vector<4x8x32xf32> to vector<4x8x8xf32>
    %c8_61 = arith.constant 8 : index
    %c0_62 = arith.constant 0 : index
    %c0_63 = arith.constant 0 : index
    %83 = vector.load %arg14[%c8_61, %c0_62, %c0_63] : memref<16x8x8xf32, #tpu.memory_space<vmem>>, vector<4x8x8xf32>
    tpu.vector_store %arg14[%c8_61, %c0_62, %c0_63], %82 {strides = array<i32>} : memref<16x8x8xf32, #tpu.memory_space<vmem>>, vector<4x8x8xf32>,
    %c8_64 = arith.constant 8 : index
    %c0_65 = arith.constant 0 : index
    %c0_66 = arith.constant 0 : index
    %84 = vector.load %arg16[%c8_64, %c0_65, %c0_66] : memref<16x1x8xf32, #tpu.memory_space<vmem>>, vector<4x1x8xf32>
    tpu.vector_store %arg16[%c8_64, %c0_65, %c0_66], %63 {strides = array<i32>} : memref<16x1x8xf32, #tpu.memory_space<vmem>>, vector<4x1x8xf32>,
    %85 = vector.extract_strided_slice %47 {offsets = [0, 0, 24], sizes = [4, 8, 8], strides = [1, 1, 1]} : vector<4x8x32xf32> to vector<4x8x8xf32>
    %c12 = arith.constant 12 : index
    %c0_67 = arith.constant 0 : index
    %c0_68 = arith.constant 0 : index
    %86 = vector.load %arg12[%c12, %c0_67, %c0_68] : memref<16x8x8xf32, #tpu.memory_space<vmem>>, vector<4x8x8xf32>
    tpu.vector_store %arg12[%c12, %c0_67, %c0_68], %85 {strides = array<i32>} : memref<16x8x8xf32, #tpu.memory_space<vmem>>, vector<4x8x8xf32>,
    %87 = vector.extract_strided_slice %52 {offsets = [0, 0, 24], sizes = [4, 8, 8], strides = [1, 1, 1]} : vector<4x8x32xf32> to vector<4x8x8xf32>
    %c12_69 = arith.constant 12 : index
    %c0_70 = arith.constant 0 : index
    %c0_71 = arith.constant 0 : index
    %88 = vector.load %arg13[%c12_69, %c0_70, %c0_71] : memref<16x8x8xf32, #tpu.memory_space<vmem>>, vector<4x8x8xf32>
    tpu.vector_store %arg13[%c12_69, %c0_70, %c0_71], %87 {strides = array<i32>} : memref<16x8x8xf32, #tpu.memory_space<vmem>>, vector<4x8x8xf32>,
    %89 = vector.extract_strided_slice %57 {offsets = [0, 0, 24], sizes = [4, 8, 8], strides = [1, 1, 1]} : vector<4x8x32xf32> to vector<4x8x8xf32>
    %c12_72 = arith.constant 12 : index
    %c0_73 = arith.constant 0 : index
    %c0_74 = arith.constant 0 : index
    %90 = vector.load %arg14[%c12_72, %c0_73, %c0_74] : memref<16x8x8xf32, #tpu.memory_space<vmem>>, vector<4x8x8xf32>
    tpu.vector_store %arg14[%c12_72, %c0_73, %c0_74], %89 {strides = array<i32>} : memref<16x8x8xf32, #tpu.memory_space<vmem>>, vector<4x8x8xf32>,
    %c12_75 = arith.constant 12 : index
    %c0_76 = arith.constant 0 : index
    %c0_77 = arith.constant 0 : index
    %91 = vector.load %arg16[%c12_75, %c0_76, %c0_77] : memref<16x1x8xf32, #tpu.memory_space<vmem>>, vector<4x1x8xf32>
    tpu.vector_store %arg16[%c12_75, %c0_76, %c0_77], %63 {strides = array<i32>} : memref<16x1x8xf32, #tpu.memory_space<vmem>>, vector<4x1x8xf32>,
    %c0_78 = arith.constant 0 : index
    %c0_79 = arith.constant 0 : index
    %c0_80 = arith.constant 0 : index
    %92 = vector.load %arg12[%c0_78, %c0_79, %c0_80] : memref<16x8x8xf32, #tpu.memory_space<vmem>>, vector<16x8x8xf32>
    %c0_81 = arith.constant 0 : index
    %c0_82 = arith.constant 0 : index
    %c0_83 = arith.constant 0 : index
    %93 = vector.load %arg13[%c0_81, %c0_82, %c0_83] : memref<16x8x8xf32, #tpu.memory_space<vmem>>, vector<16x8x8xf32>
    %cst_84 = arith.constant dense<0.000000e+00> : vector<16x8x8xf32>
    %94 = tpu.matmul %92, %93, %cst_84 {dimension_numbers = #tpu.dot_dimension_numbers<[2], [2], [1], [1], [0, 0, 0, 1, 1, 1], [0], [0]>} : vector<16x8x8xf32>, vector<16x8x8xf32>, vector<16x8x8xf32> -> vector<16x8x8xf32>
    %cst_85 = arith.constant 0.353553385 : f32
    %95 = vector.broadcast %cst_85 : f32 to vector<16x8x8xf32>
    %96 = arith.mulf %94, %95 : vector<16x8x8xf32>
    %c0_86 = arith.constant 0 : index
    %c0_87 = arith.constant 0 : index
    %c0_88 = arith.constant 0 : index
    %97 = vector.load %arg16[%c0_86, %c0_87, %c0_88] : memref<16x1x8xf32, #tpu.memory_space<vmem>>, vector<16x1x8xf32>
    %98 = vector.broadcast %97 : vector<16x1x8xf32> to vector<16x8x8xf32>
    %99 = arith.addf %96, %98 : vector<16x8x8xf32>
    %cst_89 = arith.constant dense<0xFF800000> : vector<16x8xf32>
    %100 = vector.multi_reduction <maximumf>, %99, %cst_89 [2] : vector<16x8x8xf32> to vector<16x8xf32>
    %101 = vector.shape_cast %100 : vector<16x8xf32> to vector<16x8x1xf32>
    %102 = vector.broadcast %101 : vector<16x8x1xf32> to vector<16x8x8xf32>
    %103 = arith.subf %99, %102 : vector<16x8x8xf32>
    %104 = math.exp %103 : vector<16x8x8xf32>
    %cst_90 = arith.constant dense<0.000000e+00> : vector<16x8xf32>
    %105 = vector.multi_reduction <add>, %104, %cst_90 [2] : vector<16x8x8xf32> to vector<16x8xf32>
    %106 = vector.shape_cast %105 : vector<16x8xf32> to vector<16x8x1xf32>
    %cst_91 = arith.constant 1.000000e+00 : f32
    %107 = vector.broadcast %cst_91 : f32 to vector<16x8x1xf32>
    %108 = arith.divf %107, %106 : vector<16x8x1xf32>
    %109 = vector.broadcast %108 : vector<16x8x1xf32> to vector<16x8x8xf32>
    %110 = arith.mulf %104, %109 : vector<16x8x8xf32>
    %c0_92 = arith.constant 0 : index
    %c0_93 = arith.constant 0 : index
    %c0_94 = arith.constant 0 : index
    %111 = vector.load %arg14[%c0_92, %c0_93, %c0_94] : memref<16x8x8xf32, #tpu.memory_space<vmem>>, vector<16x8x8xf32>
    %cst_95 = arith.constant dense<0.000000e+00> : vector<16x8x8xf32>
    %112 = tpu.matmul %110, %111, %cst_95 {dimension_numbers = #tpu.dot_dimension_numbers<[2], [1], [1], [2], [0, 0, 0, 1, 1, 2], [0], [0]>} : vector<16x8x8xf32>, vector<16x8x8xf32>, vector<16x8x8xf32> -> vector<16x8x8xf32>
    %113 = vector.extract_strided_slice %112 {offsets = [0, 0, 0], sizes = [4, 8, 8], strides = [1, 1, 1]} : vector<16x8x8xf32> to vector<4x8x8xf32>
    %c0_96 = arith.constant 0 : index
    %c0_97 = arith.constant 0 : index
    %c0_98 = arith.constant 0 : index
    %114 = vector.load %arg15[%c0_96, %c0_97, %c0_98] : memref<4x8x32xf32, #tpu.memory_space<vmem>>, vector<4x8x8xf32>
    tpu.vector_store %arg15[%c0_96, %c0_97, %c0_98], %113 {strides = array<i32>} : memref<4x8x32xf32, #tpu.memory_space<vmem>>, vector<4x8x8xf32>,
    %115 = vector.extract_strided_slice %112 {offsets = [4, 0, 0], sizes = [4, 8, 8], strides = [1, 1, 1]} : vector<16x8x8xf32> to vector<4x8x8xf32>
    %c0_99 = arith.constant 0 : index
    %c0_100 = arith.constant 0 : index
    %c8_101 = arith.constant 8 : index
    %116 = vector.load %arg15[%c0_99, %c0_100, %c8_101] : memref<4x8x32xf32, #tpu.memory_space<vmem>>, vector<4x8x8xf32>
    tpu.vector_store %arg15[%c0_99, %c0_100, %c8_101], %115 {strides = array<i32>} : memref<4x8x32xf32, #tpu.memory_space<vmem>>, vector<4x8x8xf32>,
    %117 = vector.extract_strided_slice %112 {offsets = [8, 0, 0], sizes = [4, 8, 8], strides = [1, 1, 1]} : vector<16x8x8xf32> to vector<4x8x8xf32>
    %c0_102 = arith.constant 0 : index
    %c0_103 = arith.constant 0 : index
    %c16 = arith.constant 16 : index
    %118 = vector.load %arg15[%c0_102, %c0_103, %c16] : memref<4x8x32xf32, #tpu.memory_space<vmem>>, vector<4x8x8xf32>
    tpu.vector_store %arg15[%c0_102, %c0_103, %c16], %117 {strides = array<i32>} : memref<4x8x32xf32, #tpu.memory_space<vmem>>, vector<4x8x8xf32>,
    %119 = vector.extract_strided_slice %112 {offsets = [12, 0, 0], sizes = [4, 8, 8], strides = [1, 1, 1]} : vector<16x8x8xf32> to vector<4x8x8xf32>
    %c0_104 = arith.constant 0 : index
    %c0_105 = arith.constant 0 : index
    %c24 = arith.constant 24 : index
    %120 = vector.load %arg15[%c0_104, %c0_105, %c24] : memref<4x8x32xf32, #tpu.memory_space<vmem>>, vector<4x8x8xf32>
    tpu.vector_store %arg15[%c0_104, %c0_105, %c24], %119 {strides = array<i32>} : memref<4x8x32xf32, #tpu.memory_space<vmem>>, vector<4x8x8xf32>,
    %c0_106 = arith.constant 0 : index
    %c0_107 = arith.constant 0 : index
    %c0_108 = arith.constant 0 : index
    %121 = vector.load %arg1[%c0_106, %c0_107, %c0_108] : memref<4x8x32xf32, #tpu.memory_space<vmem>>, vector<4x8x32xf32>
    %c0_109 = arith.constant 0 : index
    %c0_110 = arith.constant 0 : index
    %c0_111 = arith.constant 0 : index
    %122 = vector.load %arg15[%c0_109, %c0_110, %c0_111] : memref<4x8x32xf32, #tpu.memory_space<vmem>>, vector<4x8x32xf32>
    %c0_112 = arith.constant 0 : index
    %c0_113 = arith.constant 0 : index
    %123 = vector.load %arg6[%c0_112, %c0_113] : memref<32x32xf32, #tpu.memory_space<vmem>>, vector<32x32xf32>
    %cst_114 = arith.constant dense<0.000000e+00> : vector<4x8x32xf32>
    %124 = tpu.matmul %122, %123, %cst_114 {dimension_numbers = #tpu.dot_dimension_numbers<[2], [0], [0, 1], [1], [0, 0, 0, 1, 1, 1], [], []>} : vector<4x8x32xf32>, vector<32x32xf32>, vector<4x8x32xf32> -> vector<4x8x32xf32>
    %125 = arith.addf %121, %124 : vector<4x8x32xf32>
    %126 = vector.shape_cast %7 : vector<32xf32> to vector<1x1x32xf32>
    %127 = vector.broadcast %126 : vector<1x1x32xf32> to vector<4x8x32xf32>
    %128 = arith.addf %125, %127 : vector<4x8x32xf32>
    %cst_115 = arith.constant dense<0.000000e+00> : vector<4x8xf32>
    %129 = vector.multi_reduction <add>, %128, %cst_115 [2] : vector<4x8x32xf32> to vector<4x8xf32>
    %130 = vector.shape_cast %129 : vector<4x8xf32> to vector<4x8x1xf32>
    %cst_116 = arith.constant 3.200000e+01 : f32
    %131 = vector.broadcast %cst_116 : f32 to vector<4x8x1xf32>
    %132 = arith.divf %130, %131 : vector<4x8x1xf32>
    %133 = vector.broadcast %132 : vector<4x8x1xf32> to vector<4x8x32xf32>
    %134 = arith.subf %128, %133 : vector<4x8x32xf32>
    %135 = arith.mulf %134, %134 : vector<4x8x32xf32>
    %cst_117 = arith.constant dense<0.000000e+00> : vector<4x8xf32>
    %136 = vector.multi_reduction <add>, %135, %cst_117 [2] : vector<4x8x32xf32> to vector<4x8xf32>
    %137 = vector.shape_cast %136 : vector<4x8xf32> to vector<4x8x1xf32>
    %cst_118 = arith.constant 0.0322580636 : f32
    %138 = vector.broadcast %cst_118 : f32 to vector<4x8x1xf32>
    %139 = arith.mulf %137, %138 : vector<4x8x1xf32>
    %140 = math.sqrt %139 : vector<4x8x1xf32>
    %cst_119 = arith.constant 9.99999997E-7 : f32
    %141 = vector.broadcast %cst_119 : f32 to vector<4x8x1xf32>
    %142 = arith.addf %140, %141 : vector<4x8x1xf32>
    %cst_120 = arith.constant 1.000000e+00 : f32
    %143 = vector.broadcast %cst_120 : f32 to vector<4x8x1xf32>
    %144 = arith.divf %143, %142 : vector<4x8x1xf32>
    %145 = vector.shape_cast %15 : vector<32xf32> to vector<1x1x32xf32>
    %146 = vector.broadcast %145 : vector<1x1x32xf32> to vector<4x8x32xf32>
    %147 = arith.mulf %146, %134 : vector<4x8x32xf32>
    %148 = vector.broadcast %144 : vector<4x8x1xf32> to vector<4x8x32xf32>
    %149 = arith.mulf %147, %148 : vector<4x8x32xf32>
    %150 = vector.shape_cast %17 : vector<32xf32> to vector<1x1x32xf32>
    %151 = vector.broadcast %150 : vector<1x1x32xf32> to vector<4x8x32xf32>
    %152 = arith.addf %149, %151 : vector<4x8x32xf32>
    %c0_121 = arith.constant 0 : index
    %c0_122 = arith.constant 0 : index
    %153 = vector.load %arg7[%c0_121, %c0_122] : memref<32x64xf32, #tpu.memory_space<vmem>>, vector<32x64xf32>
    %cst_123 = arith.constant dense<0.000000e+00> : vector<4x8x64xf32>
    %154 = tpu.matmul %152, %153, %cst_123 {dimension_numbers = #tpu.dot_dimension_numbers<[2], [0], [0, 1], [1], [0, 0, 0, 1, 1, 1], [], []>} : vector<4x8x32xf32>, vector<32x64xf32>, vector<4x8x64xf32> -> vector<4x8x64xf32>
    %c0_124 = arith.constant 0 : index
    %c0_125 = arith.constant 0 : index
    %155 = vector.load %arg10[%c0_124, %c0_125] : memref<1x64xf32, #tpu.memory_space<vmem>>, vector<1x64xf32>
    %156 = vector.shape_cast %155 : vector<1x64xf32> to vector<64xf32>
    %157 = vector.shape_cast %156 : vector<64xf32> to vector<1x1x64xf32>
    %158 = vector.broadcast %157 : vector<1x1x64xf32> to vector<4x8x64xf32>
    %159 = arith.addf %154, %158 : vector<4x8x64xf32>
    %cst_126 = arith.constant 0.000000e+00 : f32
    %160 = vector.broadcast %cst_126 : f32 to vector<4x8x64xf32>
    %161 = arith.maximumf %159, %160 : vector<4x8x64xf32>
    %c0_127 = arith.constant 0 : index
    %c0_128 = arith.constant 0 : index
    %162 = vector.load %arg8[%c0_127, %c0_128] : memref<64x32xf32, #tpu.memory_space<vmem>>, vector<64x32xf32>
    %cst_129 = arith.constant dense<0.000000e+00> : vector<4x8x32xf32>
    %163 = tpu.matmul %161, %162, %cst_129 {dimension_numbers = #tpu.dot_dimension_numbers<[2], [0], [0, 1], [1], [0, 0, 0, 1, 1, 1], [], []>} : vector<4x8x64xf32>, vector<64x32xf32>, vector<4x8x32xf32> -> vector<4x8x32xf32>
    %164 = vector.shape_cast %9 : vector<32xf32> to vector<1x1x32xf32>
    %165 = vector.broadcast %164 : vector<1x1x32xf32> to vector<4x8x32xf32>
    %166 = arith.addf %163, %165 : vector<4x8x32xf32>
    %167 = arith.addf %128, %166 : vector<4x8x32xf32>
    %c0_130 = arith.constant 0 : index
    %c0_131 = arith.constant 0 : index
    %c0_132 = arith.constant 0 : index
    %168 = vector.load %arg11[%c0_130, %c0_131, %c0_132] : memref<4x8x32xf32, #tpu.memory_space<vmem>>, vector<4x8x32xf32>
    tpu.vector_store %arg11[%c0_130, %c0_131, %c0_132], %167 {strides = array<i32>} : memref<4x8x32xf32, #tpu.memory_space<vmem>>, vector<4x8x32xf32>,
    return
  }
  func.func @transform_0(%arg0: i32) -> (i32, i32, i32) {
    %c0_i32 = arith.constant 0 : i32
    %c0_i32_0 = arith.constant 0 : i32
    %c0_i32_1 = arith.constant 0 : i32
    return %arg0, %c0_i32, %c0_i32_0 : i32, i32, i32
  }
  func.func @transform_1(%arg0: i32) -> (i32, i32, i32) {
    %c0_i32 = arith.constant 0 : i32
    %c0_i32_0 = arith.constant 0 : i32
    %c0_i32_1 = arith.constant 0 : i32
    return %arg0, %c0_i32, %c0_i32_0 : i32, i32, i32
  }
  func.func @transform_2(%arg0: i32) -> (i32, i32) {
    %c0_i32 = arith.constant 0 : i32
    %c0_i32_0 = arith.constant 0 : i32
    %c0_i32_1 = arith.constant 0 : i32
    return %c0_i32, %c0_i32_0 : i32, i32
  }
  func.func @transform_3(%arg0: i32) -> (i32, i32) {
    %c0_i32 = arith.constant 0 : i32
    %c0_i32_0 = arith.constant 0 : i32
    %c0_i32_1 = arith.constant 0 : i32
    return %c0_i32, %c0_i32_0 : i32, i32
  }
  func.func @transform_4(%arg0: i32) -> (i32, i32) {
    %c0_i32 = arith.constant 0 : i32
    %c0_i32_0 = arith.constant 0 : i32
    %c0_i32_1 = arith.constant 0 : i32
    return %c0_i32, %c0_i32_0 : i32, i32
  }
  func.func @transform_5(%arg0: i32) -> (i32, i32) {
    %c0_i32 = arith.constant 0 : i32
    %c0_i32_0 = arith.constant 0 : i32
    %c0_i32_1 = arith.constant 0 : i32
    return %c0_i32, %c0_i32_0 : i32, i32
  }
  func.func @transform_6(%arg0: i32) -> (i32, i32) {
    %c0_i32 = arith.constant 0 : i32
    %c0_i32_0 = arith.constant 0 : i32
    %c0_i32_1 = arith.constant 0 : i32
    return %c0_i32, %c0_i32_0 : i32, i32
  }
  func.func @transform_7(%arg0: i32) -> (i32, i32) {
    %c0_i32 = arith.constant 0 : i32
    %c0_i32_0 = arith.constant 0 : i32
    %c0_i32_1 = arith.constant 0 : i32
    return %c0_i32, %c0_i32_0 : i32, i32
  }
  func.func @transform_8(%arg0: i32) -> (i32, i32) {
    %c0_i32 = arith.constant 0 : i32
    %c0_i32_0 = arith.constant 0 : i32
    %c0_i32_1 = arith.constant 0 : i32
    return %c0_i32, %c0_i32_0 : i32, i32
  }
  func.func @transform_9(%arg0: i32) -> (i32, i32) {
    %c0_i32 = arith.constant 0 : i32
    %c0_i32_0 = arith.constant 0 : i32
    %c0_i32_1 = arith.constant 0 : i32
    return %c0_i32, %c0_i32_0 : i32, i32
  }
  func.func @transform_10(%arg0: i32) -> (i32, i32, i32) {
    %c0_i32 = arith.constant 0 : i32
    %c0_i32_0 = arith.constant 0 : i32
    %c0_i32_1 = arith.constant 0 : i32
    return %arg0, %c0_i32, %c0_i32_0 : i32, i32, i32
  }
}

</mosaic_0001>

<llo_original>
// kernel: tpu_custom_call.1
$region0: #{tpu_custom_call.1}
  #allocation0 [shape = 'u32[]', space=smem, size = 0x4, offset = 0x4, fixed_abs, tag = 'smem constant byte address 0x4 - core index']
  #allocation1 [shape = 'u32[72,128]{1,0:T(1,128)}', space=vmem, size = 0x9000, scoped, tag = 'internal scratch']
  #allocation2 [shape = 'f32[16,8,8]{2,1,0:T(8,128)}', space=vmem, size = 0x10000, scoped, tag = 'scratch operand']
  #allocation3 [shape = 'f32[16,8,8]{2,1,0:T(8,128)}', space=vmem, size = 0x10000, scoped, tag = 'scratch operand']
  #allocation4 [shape = 'f32[16,8,8]{2,1,0:T(8,128)}', space=vmem, size = 0x10000, scoped, tag = 'scratch operand']
  #allocation5 [shape = 'f32[4,8,32]{2,1,0:T(8,128)}', space=vmem, size = 0x4000, scoped, tag = 'scratch operand']
  #allocation6 [shape = 'f32[16,1,8]{2,1,0:T(1,128)}', space=vmem, size = 0x2000, scoped, tag = 'scratch operand']
  %s0 = inlined_call_operand.vmem [shape: f32[8,8,32], index: 0, kind: input, shape index: {}]
  %s1 = inlined_call_operand.hbm [shape: s32[8,1,8], index: 1, kind: input, shape index: {}]
  %s2 = inlined_call_operand.vmem [shape: f32[32,32], index: 2, kind: input, shape index: {}]
  %s3 = inlined_call_operand.hbm [shape: f32[32,32], index: 3, kind: input, shape index: {}]
  %s4 = inlined_call_operand.hbm [shape: f32[32,32], index: 4, kind: input, shape index: {}]
  %s5 = inlined_call_operand.hbm [shape: f32[32,32], index: 5, kind: input, shape index: {}]
  %s6 = inlined_call_operand.hbm [shape: f32[32,64], index: 6, kind: input, shape index: {}]
  %s7 = inlined_call_operand.vmem [shape: f32[64,32], index: 7, kind: input, shape index: {}]
  %s8 = inlined_call_operand.hbm [shape: f32[9,32], index: 8, kind: input, shape index: {}]
  %s9 = inlined_call_operand.vmem [shape: f32[1,64], index: 9, kind: input, shape index: {}]
  %s10 = inlined_call_operand.hbm [shape: f32[8,8,32], index: 10, kind: output, shape index: {}]
  %s11 = sld [smem:[#allocation0]]
  $region97: #{tpu_custom_call.1} parent=0
    _
  %s13 = ssub.s32 1, %s11
  %s14 = scalar_select 0, %s13, %s11
  $region1: #{tpu_custom_call.1} parent=0
    #allocation7 [shape = 'u8[4096]{0}', space=vmem, size = 0x1000, scoped, tag = 'input window, operand 1']
    #allocation8 [shape = 's32[2]{0}', space=sflag, size = 0x8, scoped, tag = 'scoped memory for tpu_custom_call.1']
    #allocation9 [shape = 's32[2]{0}', space=sflag, size = 0x8, scoped, tag = 'scoped memory for tpu_custom_call.1']
    #allocation10 [shape = 'u8[16384]{0}', space=vmem, size = 0x4000, scoped, tag = 'input window, operand 3, single buffered']
    #allocation11 [shape = 's32[1]{0}', space=sflag, size = 0x4, scoped, tag = 'scoped memory for tpu_custom_call.1']
    #allocation12 [shape = 'u8[16384]{0}', space=vmem, size = 0x4000, scoped, tag = 'input window, operand 4, single buffered']
    #allocation13 [shape = 'u8[16384]{0}', space=vmem, size = 0x4000, scoped, tag = 'input window, operand 5, single buffered']
    #allocation14 [shape = 's32[1]{0}', space=sflag, size = 0x4, scoped, tag = 'scoped memory for tpu_custom_call.1']
    #allocation15 [shape = 'u8[16384]{0}', space=vmem, size = 0x4000, scoped, tag = 'input window, operand 6, single buffered']
    #allocation16 [shape = 'u8[8192]{0}', space=vmem, size = 0x2000, scoped, tag = 'input window, operand 8, single buffered']
    #allocation17 [shape = 's32[1]{0}', space=sflag, size = 0x4, scoped, tag = 'scoped memory for tpu_custom_call.1']
    #allocation18 [shape = 'u8[32768]{0}', space=vmem, size = 0x8000, scoped, tag = 'output window, operand 0']
    %15 = vsyncpa [#allocation8], 0
    %s16 = scalar_lea.sflag [#allocation8], 1
    %17 = vsyncpa %s16, 0
    %18 = vsyncpa [#allocation11], 0
    %19 = vsyncpa [#allocation14], 0
    %20 = vsyncpa [#allocation17], 0
    %21 = vsyncpa [#allocation9], 0
    %s22 = scalar_lea.sflag [#allocation9], 1
    %23 = vsyncpa %s22, 0
    loop: start=0, step=1, limit=4
    $region2: #{tpu_custom_call.1} parent=1 // loop_pre_header
      _
    $region3: #{tpu_custom_call.1} parent=1 // loop_header
      %s25 = sphi 0, %s29
      %p26 = scmp.ge.s32.totalorder %s25, 4
      %s35 = sphi 0, %s37
      %s38 = sphi 0, %s35
      %s39 = sphi 0, %s38
      %s55 = sphi 0, %s39
      %s61 = sphi 0, %s63
      %s64 = sphi 0, %s61
      %s65 = sphi 0, %s64
      %s81 = sphi 0, %s65
      %s85 = sphi 0, %s85
      %s87 = sphi 0, %s85
      %s88 = sphi 0, %s87
      %s102 = sphi 0, %s88
      %s106 = sphi 0, %s106
      %s108 = sphi 0, %s106
      %s109 = sphi 0, %s108
      %s123 = sphi 0, %s109
      %s127 = sphi 0, %s127
      %s129 = sphi 0, %s127
      %s130 = sphi 0, %s129
      %s144 = sphi 0, %s130
      %s148 = sphi 0, %s148
      %s150 = sphi 0, %s148
      %s151 = sphi 0, %s150
      %s165 = sphi 0, %s151
      %s169 = sphi 0, %s169
      %s171 = sphi 0, %s169
      %s172 = sphi 0, %s171
      %s186 = sphi 0, %s172
      %s190 = sphi 0, %s190
      %s192 = sphi 0, %s190
      %s193 = sphi 0, %s192
      %s207 = sphi 0, %s193
      %s211 = sphi 0, %s211
      %s213 = sphi 0, %s211
      %s214 = sphi 0, %s213
      %s228 = sphi 0, %s214
      %s232 = sphi 0, %s232
      %s234 = sphi 0, %s232
      %s235 = sphi 0, %s234
      %s249 = sphi 0, %s235
      %s255 = sphi 0, %s257
      %s258 = sphi 0, %s255
      %s259 = sphi 0, %s258
      %s275 = sphi 0, %s259
    $region4: #{tpu_custom_call.1} parent=1 // loop_header_branch
      %28 = sbr.rel (%p26) target = $region8
    $region5: #{tpu_custom_call.1} parent=1 // loop_body
      %s30 = ssub.s32 %s25, 1
      %s31 = ssub.s32 %s25, 2
      %s32 = sadd.s32 %s25, 1
      %s33 = ssub.s32 %s25, %s32
      %p34 = scmp.eq.s32.totalorder %s33, 0
      %s36 = sadd.s32 %s35, 1
      %s37 = scalar_select %p34, %s35, %s36
      %p40 = pneg %p34
      %p41 = scmp.eq.s32.totalorder %s25, 1
      %p42 = por %p40, %p41
      %p43 = scmp.ne.s32.totalorder %s35, %s38
      %p44 = scmp.eq.s32.totalorder %s25, 0
      %p45 = por %p43, %p44
      %p46 = scmp.ne.s32.totalorder %s35, %s38
      %p47 = scmp.eq.s32.totalorder %s30, 1
      %p48 = por %p46, %p47
      %p49 = scmp.ne.s32.totalorder %s38, %s39
      %p50 = scmp.eq.s32.totalorder %s30, 0
      %p51 = por %p49, %p50
      %p52 = scmp.ne.s32.totalorder %s38, %s39
      %p53 = scmp.eq.s32.totalorder %s31, 1
      %p54 = por %p52, %p53
      %p56 = scmp.ne.s32.totalorder %s39, %s55
      %p57 = scmp.eq.s32.totalorder %s31, 0
      %p58 = por %p56, %p57
      %s59 = ssub.s32 %s25, %s32
      %p60 = scmp.eq.s32.totalorder %s59, 0
      %s62 = sadd.s32 %s61, 1
      %s63 = scalar_select %p60, %s61, %s62
      %p66 = pneg %p60
      %p67 = scmp.eq.s32.totalorder %s25, 1
      %p68 = por %p66, %p67
      %p69 = scmp.ne.s32.totalorder %s61, %s64
      %p70 = scmp.eq.s32.totalorder %s25, 0
      %p71 = por %p69, %p70
      %p72 = scmp.ne.s32.totalorder %s61, %s64
      %p73 = scmp.eq.s32.totalorder %s30, 1
      %p74 = por %p72, %p73
      %p75 = scmp.ne.s32.totalorder %s64, %s65
      %p76 = scmp.eq.s32.totalorder %s30, 0
      %p77 = por %p75, %p76
      %p78 = scmp.ne.s32.totalorder %s64, %s65
      %p79 = scmp.eq.s32.totalorder %s31, 1
      %p80 = por %p78, %p79
      %p82 = scmp.ne.s32.totalorder %s65, %s81
      %p83 = scmp.eq.s32.totalorder %s31, 0
      %p84 = por %p82, %p83
      %s86 = sadd.s32 %s85, 1
      %p89 = scmp.eq.s32.totalorder %s25, 1
      %p90 = scmp.ne.s32.totalorder %s85, %s87
      %p91 = scmp.eq.s32.totalorder %s25, 0
      %p92 = por %p90, %p91
      %p93 = scmp.ne.s32.totalorder %s85, %s87
      %p94 = scmp.eq.s32.totalorder %s30, 1
      %p95 = por %p93, %p94
      %p96 = scmp.ne.s32.totalorder %s87, %s88
      %p97 = scmp.eq.s32.totalorder %s30, 0
      %p98 = por %p96, %p97
      %p99 = scmp.ne.s32.totalorder %s87, %s88
      %p100 = scmp.eq.s32.totalorder %s31, 1
      %p101 = por %p99, %p100
      %p103 = scmp.ne.s32.totalorder %s88, %s102
      %p104 = scmp.eq.s32.totalorder %s31, 0
      %p105 = por %p103, %p104
      %s107 = sadd.s32 %s106, 1
      %p110 = scmp.eq.s32.totalorder %s25, 1
      %p111 = scmp.ne.s32.totalorder %s106, %s108
      %p112 = scmp.eq.s32.totalorder %s25, 0
      %p113 = por %p111, %p112
      %p114 = scmp.ne.s32.totalorder %s106, %s108
      %p115 = scmp.eq.s32.totalorder %s30, 1
      %p116 = por %p114, %p115
      %p117 = scmp.ne.s32.totalorder %s108, %s109
      %p118 = scmp.eq.s32.totalorder %s30, 0
      %p119 = por %p117, %p118
      %p120 = scmp.ne.s32.totalorder %s108, %s109
      %p121 = scmp.eq.s32.totalorder %s31, 1
      %p122 = por %p120, %p121
      %p124 = scmp.ne.s32.totalorder %s109, %s123
      %p125 = scmp.eq.s32.totalorder %s31, 0
      %p126 = por %p124, %p125
      %s128 = sadd.s32 %s127, 1
      %p131 = scmp.eq.s32.totalorder %s25, 1
      %p132 = scmp.ne.s32.totalorder %s127, %s129
      %p133 = scmp.eq.s32.totalorder %s25, 0
      %p134 = por %p132, %p133
      %p135 = scmp.ne.s32.totalorder %s127, %s129
      %p136 = scmp.eq.s32.totalorder %s30, 1
      %p137 = por %p135, %p136
      %p138 = scmp.ne.s32.totalorder %s129, %s130
      %p139 = scmp.eq.s32.totalorder %s30, 0
      %p140 = por %p138, %p139
      %p141 = scmp.ne.s32.totalorder %s129, %s130
      %p142 = scmp.eq.s32.totalorder %s31, 1
      %p143 = por %p141, %p142
      %p145 = scmp.ne.s32.totalorder %s130, %s144
      %p146 = scmp.eq.s32.totalorder %s31, 0
      %p147 = por %p145, %p146
      %s149 = sadd.s32 %s148, 1
      %p152 = scmp.eq.s32.totalorder %s25, 1
      %p153 = scmp.ne.s32.totalorder %s148, %s150
      %p154 = scmp.eq.s32.totalorder %s25, 0
      %p155 = por %p153, %p154
      %p156 = scmp.ne.s32.totalorder %s148, %s150
      %p157 = scmp.eq.s32.totalorder %s30, 1
      %p158 = por %p156, %p157
      %p159 = scmp.ne.s32.totalorder %s150, %s151
      %p160 = scmp.eq.s32.totalorder %s30, 0
      %p161 = por %p159, %p160
      %p162 = scmp.ne.s32.totalorder %s150, %s151
      %p163 = scmp.eq.s32.totalorder %s31, 1
      %p164 = por %p162, %p163
      %p166 = scmp.ne.s32.totalorder %s151, %s165
      %p167 = scmp.eq.s32.totalorder %s31, 0
      %p168 = por %p166, %p167
      %s170 = sadd.s32 %s169, 1
      %p173 = scmp.eq.s32.totalorder %s25, 1
      %p174 = scmp.ne.s32.totalorder %s169, %s171
      %p175 = scmp.eq.s32.totalorder %s25, 0
      %p176 = por %p174, %p175
      %p177 = scmp.ne.s32.totalorder %s169, %s171
      %p178 = scmp.eq.s32.totalorder %s30, 1
      %p179 = por %p177, %p178
      %p180 = scmp.ne.s32.totalorder %s171, %s172
      %p181 = scmp.eq.s32.totalorder %s30, 0
      %p182 = por %p180, %p181
      %p183 = scmp.ne.s32.totalorder %s171, %s172
      %p184 = scmp.eq.s32.totalorder %s31, 1
      %p185 = por %p183, %p184
      %p187 = scmp.ne.s32.totalorder %s172, %s186
      %p188 = scmp.eq.s32.totalorder %s31, 0
      %p189 = por %p187, %p188
      %s191 = sadd.s32 %s190, 1
      %p194 = scmp.eq.s32.totalorder %s25, 1
      %p195 = scmp.ne.s32.totalorder %s190, %s192
      %p196 = scmp.eq.s32.totalorder %s25, 0
      %p197 = por %p195, %p196
      %p198 = scmp.ne.s32.totalorder %s190, %s192
      %p199 = scmp.eq.s32.totalorder %s30, 1
      %p200 = por %p198, %p199
      %p201 = scmp.ne.s32.totalorder %s192, %s193
      %p202 = scmp.eq.s32.totalorder %s30, 0
      %p203 = por %p201, %p202
      %p204 = scmp.ne.s32.totalorder %s192, %s193
      %p205 = scmp.eq.s32.totalorder %s31, 1
      %p206 = por %p204, %p205
      %p208 = scmp.ne.s32.totalorder %s193, %s207
      %p209 = scmp.eq.s32.totalorder %s31, 0
      %p210 = por %p208, %p209
      %s212 = sadd.s32 %s211, 1
      %p215 = scmp.eq.s32.totalorder %s25, 1
      %p216 = scmp.ne.s32.totalorder %s211, %s213
      %p217 = scmp.eq.s32.totalorder %s25, 0
      %p218 = por %p216, %p217
      %p219 = scmp.ne.s32.totalorder %s211, %s213
      %p220 = scmp.eq.s32.totalorder %s30, 1
      %p221 = por %p219, %p220
      %p222 = scmp.ne.s32.totalorder %s213, %s214
      %p223 = scmp.eq.s32.totalorder %s30, 0
      %p224 = por %p222, %p223
      %p225 = scmp.ne.s32.totalorder %s213, %s214
      %p226 = scmp.eq.s32.totalorder %s31, 1
      %p227 = por %p225, %p226
      %p229 = scmp.ne.s32.totalorder %s214, %s228
      %p230 = scmp.eq.s32.totalorder %s31, 0
      %p231 = por %p229, %p230
      %s233 = sadd.s32 %s232, 1
      %p236 = scmp.eq.s32.totalorder %s25, 1
      %p237 = scmp.ne.s32.totalorder %s232, %s234
      %p238 = scmp.eq.s32.totalorder %s25, 0
      %p239 = por %p237, %p238
      %p240 = scmp.ne.s32.totalorder %s232, %s234
      %p241 = scmp.eq.s32.totalorder %s30, 1
      %p242 = por %p240, %p241
      %p243 = scmp.ne.s32.totalorder %s234, %s235
      %p244 = scmp.eq.s32.totalorder %s30, 0
      %p245 = por %p243, %p244
      %p246 = scmp.ne.s32.totalorder %s234, %s235
      %p247 = scmp.eq.s32.totalorder %s31, 1
      %p248 = por %p246, %p247
      %p250 = scmp.ne.s32.totalorder %s235, %s249
      %p251 = scmp.eq.s32.totalorder %s31, 0
      %p252 = por %p250, %p251
      %s253 = ssub.s32 %s25, %s32
      %p254 = scmp.eq.s32.totalorder %s253, 0
      %s256 = sadd.s32 %s255, 1
      %s257 = scalar_select %p254, %s255, %s256
      %p260 = pneg %p254
      %p261 = scmp.eq.s32.totalorder %s25, 1
      %p262 = por %p260, %p261
      %p263 = scmp.ne.s32.totalorder %s255, %s258
      %p264 = scmp.eq.s32.totalorder %s25, 0
      %p265 = por %p263, %p264
      %p266 = scmp.ne.s32.totalorder %s255, %s258
      %p267 = scmp.eq.s32.totalorder %s30, 1
      %p268 = por %p266, %p267
      %p269 = scmp.ne.s32.totalorder %s258, %s259
      %p270 = scmp.eq.s32.totalorder %s30, 0
      %p271 = por %p269, %p270
      %p272 = scmp.ne.s32.totalorder %s258, %s259
      %p273 = scmp.eq.s32.totalorder %s31, 1
      %p274 = por %p272, %p273
      %p276 = scmp.ne.s32.totalorder %s259, %s275
      %p277 = scmp.eq.s32.totalorder %s31, 0
      %p278 = por %p276, %p277
      %p279 = scmp.le.s32.totalorder 1, %s25
      %p280 = scmp.lt.s32.totalorder %s25, 3
      %p281 = pnand %p279, %p280
      %p282 = pneg %p281
      // Predicated region
      $region9: #{tpu_custom_call.1} parent=5 // pred_check
        _
      $region10: #{tpu_custom_call.1} parent=5 // pred_check_branch
        %284 = sbr.rel (%p281) target = $region12
      $region11: #{tpu_custom_call.1} parent=5 // pred_region
        %s285 = ssub.s32 %s25, 1
        // Predicated region
        $region13: #{tpu_custom_call.1} parent=11 // pred_check
          %p286 = pneg %p98
        $region14: #{tpu_custom_call.1} parent=11 // pred_check_branch
          %288 = sbr.rel (%p286) target = $region16
        $region15: #{tpu_custom_call.1} parent=11 // pred_region
          _
        $region16: #{tpu_custom_call.1} parent=11 // pred_fallthru
          _
        // Predicated region
        $region17: #{tpu_custom_call.1} parent=11 // pred_check
          %p289 = pneg %p119
        $region18: #{tpu_custom_call.1} parent=11 // pred_check_branch
          %291 = sbr.rel (%p289) target = $region20
        $region19: #{tpu_custom_call.1} parent=11 // pred_region
          %293 = vsyncadd [#allocation11], 0
          %s294 = sshll.u32 %s3, 4
          %s295 = int_to_ptr.hbm [resolvable:$true] %s294
          %s296 = sshll.u32 [#allocation10], 4
          %s297 = int_to_ptr.vmem [resolvable:$true] %s296
          %302 = dma.hbm_to_vmem [thread:$0]  %s295, 512, %s297, [#allocation11], 128, 128, 8
        $region20: #{tpu_custom_call.1} parent=11 // pred_fallthru
          _
        // Predicated region
        $region21: #{tpu_custom_call.1} parent=11 // pred_check
          %p303 = pneg %p140
        $region22: #{tpu_custom_call.1} parent=11 // pred_check_branch
          %305 = sbr.rel (%p303) target = $region24
        $region23: #{tpu_custom_call.1} parent=11 // pred_region
          %307 = vsyncadd [#allocation11], 0
          %s308 = sshll.u32 %s4, 4
          %s309 = int_to_ptr.hbm [resolvable:$true] %s308
          %s310 = sshll.u32 [#allocation12], 4
          %s311 = int_to_ptr.vmem [resolvable:$true] %s310
          %316 = dma.hbm_to_vmem [thread:$0]  %s309, 512, %s311, [#allocation11], 128, 128, 8
        $region24: #{tpu_custom_call.1} parent=11 // pred_fallthru
          _
        // Predicated region
        $region25: #{tpu_custom_call.1} parent=11 // pred_check
          %p317 = pneg %p161
        $region26: #{tpu_custom_call.1} parent=11 // pred_check_branch
          %319 = sbr.rel (%p317) target = $region28
        $region27: #{tpu_custom_call.1} parent=11 // pred_region
          %321 = vsyncadd [#allocation14], 0
          %s322 = sshll.u32 %s5, 4
          %s323 = int_to_ptr.hbm [resolvable:$true] %s322
          %s324 = sshll.u32 [#allocation13], 4
          %s325 = int_to_ptr.vmem [resolvable:$true] %s324
          %330 = dma.hbm_to_vmem [thread:$0]  %s323, 512, %s325, [#allocation14], 128, 128, 8
        $region28: #{tpu_custom_call.1} parent=11 // pred_fallthru
          _
        // Predicated region
        $region29: #{tpu_custom_call.1} parent=11 // pred_check
          %p331 = pneg %p182
        $region30: #{tpu_custom_call.1} parent=11 // pred_check_branch
          %333 = sbr.rel (%p331) target = $region32
        $region31: #{tpu_custom_call.1} parent=11 // pred_region
          %335 = vsyncadd [#allocation14], 0
          %s336 = sshll.u32 %s6, 4
          %s337 = int_to_ptr.hbm [resolvable:$true] %s336
          %s338 = sshll.u32 [#allocation15], 4
          %s339 = int_to_ptr.vmem [resolvable:$true] %s338
          %344 = dma.hbm_to_vmem [thread:$0]  %s337, 512, %s339, [#allocation14], 128, 128, 8
        $region32: #{tpu_custom_call.1} parent=11 // pred_fallthru
          _
        // Predicated region
        $region33: #{tpu_custom_call.1} parent=11 // pred_check
          %p345 = pneg %p203
        $region34: #{tpu_custom_call.1} parent=11 // pred_check_branch
          %347 = sbr.rel (%p345) target = $region36
        $region35: #{tpu_custom_call.1} parent=11 // pred_region
          _
        $region36: #{tpu_custom_call.1} parent=11 // pred_fallthru
          _
        // Predicated region
        $region37: #{tpu_custom_call.1} parent=11 // pred_check
          %p348 = pneg %p224
        $region38: #{tpu_custom_call.1} parent=11 // pred_check_branch
          %350 = sbr.rel (%p348) target = $region40
        $region39: #{tpu_custom_call.1} parent=11 // pred_region
          %352 = vsyncadd [#allocation17], 0
          %s353 = sshll.u32 %s8, 4
          %s354 = int_to_ptr.hbm [resolvable:$true] %s353
          %s355 = sshll.u32 [#allocation16], 4
          %s356 = int_to_ptr.vmem [resolvable:$true] %s355
          %361 = dma.hbm_to_vmem [thread:$0]  %s354, 256, %s356, [#allocation17], 128, 128, 8
        $region40: #{tpu_custom_call.1} parent=11 // pred_fallthru
          _
        // Predicated region
        $region41: #{tpu_custom_call.1} parent=11 // pred_check
          %p362 = pneg %p245
        $region42: #{tpu_custom_call.1} parent=11 // pred_check_branch
          %364 = sbr.rel (%p362) target = $region44
        $region43: #{tpu_custom_call.1} parent=11 // pred_region
          _
        $region44: #{tpu_custom_call.1} parent=11 // pred_fallthru
          _
      $region12: #{tpu_custom_call.1} parent=5 // pred_fallthru
        _
      %p365 = scmp.lt.s32.totalorder %s25, 2
      // Predicated region
      $region45: #{tpu_custom_call.1} parent=5 // pred_check
        %p366 = pneg %p365
      $region46: #{tpu_custom_call.1} parent=5 // pred_check_branch
        %368 = sbr.rel (%p366) target = $region48
      $region47: #{tpu_custom_call.1} parent=5 // pred_region
        // Predicated region
        $region49: #{tpu_custom_call.1} parent=47 // pred_check
          %p369 = pneg %p45
        $region50: #{tpu_custom_call.1} parent=47 // pred_check_branch
          %371 = sbr.rel (%p369) target = $region52
        $region51: #{tpu_custom_call.1} parent=47 // pred_region
          %s372 = smul.u32 4, %s25
          %p373 = scmp.lt.s32.totalorder %s372, 7
          %s374 = scalar_select %p373, %s372, 7
          %s375 = smul.addr %s374, 8
          %s376 = scalar_lea.vmem %s0, %s375
          %s377 = smul.u32 4, %s25
        $region52: #{tpu_custom_call.1} parent=47 // pred_fallthru
          _
        // Predicated region
        $region53: #{tpu_custom_call.1} parent=47 // pred_check
          %p378 = pneg %p71
        $region54: #{tpu_custom_call.1} parent=47 // pred_check_branch
          %380 = sbr.rel (%p378) target = $region56
        $region55: #{tpu_custom_call.1} parent=47 // pred_region
          %s381 = sand.u32 %s61, 1
          %s382 = scalar_lea.sflag [#allocation8], %s381
          %s383 = sand.u32 %s61, 1
          %s384 = smul.addr %s383, 4
          %s385 = scalar_lea.vmem [#allocation7], %s384
          %s386 = smul.u32 4, %s25
          %388 = vsyncadd %s382, 0
          %s389 = scalar_lea.hbm %s1, %s386
          %s390 = sshll.u32 %s389, 4
          %s391 = int_to_ptr.hbm [resolvable:$true] %s390
          %s392 = sshll.u32 %s385, 4
          %s393 = int_to_ptr.vmem [resolvable:$true] %s392
          %398 = dma.hbm_to_vmem [thread:$0]  %s391, 64, %s393, %s382, 16, 16, 1
        $region56: #{tpu_custom_call.1} parent=47 // pred_fallthru
          _
      $region48: #{tpu_custom_call.1} parent=5 // pred_fallthru
        _
      %p399 = scmp.le.s32.totalorder 1, %s25
      %p400 = scmp.lt.s32.totalorder %s25, 3
      %p401 = pnand %p399, %p400
      %p402 = pneg %p401
      // Predicated region
      $region57: #{tpu_custom_call.1} parent=5 // pred_check
        _
      $region58: #{tpu_custom_call.1} parent=5 // pred_check_branch
        %404 = sbr.rel (%p401) target = $region60
      $region59: #{tpu_custom_call.1} parent=5 // pred_region
        %s405 = ssub.s32 %s25, 1
        %s406 = sand.u32 %s64, 1
        %s407 = scalar_lea.sflag [#allocation8], %s406
        %s408 = sand.u32 %s64, 1
        %s409 = smul.addr %s408, 4
        %s410 = scalar_lea.vmem [#allocation7], %s409
        // Predicated region
        $region61: #{tpu_custom_call.1} parent=59 // pred_check
          %p411 = pneg %p77
        $region62: #{tpu_custom_call.1} parent=59 // pred_check_branch
          %413 = sbr.rel (%p411) target = $region64
        $region63: #{tpu_custom_call.1} parent=59 // pred_region
          %415 = dma.done %s407, 64
        $region64: #{tpu_custom_call.1} parent=59 // pred_fallthru
          _
        // Predicated region
        $region65: #{tpu_custom_call.1} parent=59 // pred_check
          %p416 = pneg %p119
        $region66: #{tpu_custom_call.1} parent=59 // pred_check_branch
          %418 = sbr.rel (%p416) target = $region68
        $region67: #{tpu_custom_call.1} parent=59 // pred_region
          %420 = dma.done [#allocation11], 512
        $region68: #{tpu_custom_call.1} parent=59 // pred_fallthru
          _
        // Predicated region
        $region69: #{tpu_custom_call.1} parent=59 // pred_check
          %p421 = pneg %p140
        $region70: #{tpu_custom_call.1} parent=59 // pred_check_branch
          %423 = sbr.rel (%p421) target = $region72
        $region71: #{tpu_custom_call.1} parent=59 // pred_region
          %425 = dma.done [#allocation11], 512
        $region72: #{tpu_custom_call.1} parent=59 // pred_fallthru
          _
        // Predicated region
        $region73: #{tpu_custom_call.1} parent=59 // pred_check
          %p426 = pneg %p161
        $region74: #{tpu_custom_call.1} parent=59 // pred_check_branch
          %428 = sbr.rel (%p426) target = $region76
        $region75: #{tpu_custom_call.1} parent=59 // pred_region
          %430 = dma.done [#allocation14], 512
        $region76: #{tpu_custom_call.1} parent=59 // pred_fallthru
          _
        // Predicated region
        $region77: #{tpu_custom_call.1} parent=59 // pred_check
          %p431 = pneg %p182
        $region78: #{tpu_custom_call.1} parent=59 // pred_check_branch
          %433 = sbr.rel (%p431) target = $region80
        $region79: #{tpu_custom_call.1} parent=59 // pred_region
          %435 = dma.done [#allocation14], 512
        $region80: #{tpu_custom_call.1} parent=59 // pred_fallthru
          _
        // Predicated region
        $region81: #{tpu_custom_call.1} parent=59 // pred_check
          %p436 = pneg %p224
        $region82: #{tpu_custom_call.1} parent=59 // pred_check_branch
          %438 = sbr.rel (%p436) target = $region84
        $region83: #{tpu_custom_call.1} parent=59 // pred_region
          %440 = dma.done [#allocation17], 256
        $region84: #{tpu_custom_call.1} parent=59 // pred_fallthru
          _
        %s441 = smul.u32 4, %s30
        %p442 = scmp.lt.s32.totalorder %s441, 7
        %s443 = scalar_select %p442, %s441, 7
        %s444 = smul.addr %s443, 8
        %s445 = scalar_lea.vmem %s0, %s444
        %p446 = pneg %p51
        %p447 = pneg %p48
        %s448 = sand.u32 %s64, 1
        %s449 = scalar_lea.sflag [#allocation8], %s448
        %s450 = sand.u32 %s64, 1
        %s451 = smul.addr %s450, 4
        %s452 = scalar_lea.vmem [#allocation7], %s451
        %p453 = pneg %p77
        %p454 = pneg %p74
        %p455 = pneg %p98
        %p456 = pneg %p95
        %p457 = pneg %p119
        %p458 = pneg %p116
        %p459 = pneg %p140
        %p460 = pneg %p137
        %p461 = pneg %p161
        %p462 = pneg %p158
        %p463 = pneg %p182
        %p464 = pneg %p179
        %p465 = pneg %p203
        %p466 = pneg %p200
        %p467 = pneg %p224
        %p468 = pneg %p221
        %p469 = pneg %p245
        %p470 = pneg %p242
        %p471 = pneg %p271
        %p472 = pneg %p268
        %s473 = sand.u32 %s258, 1
        %s474 = scalar_lea.sflag [#allocation9], %s473
        %s475 = sand.u32 %s258, 1
        %s476 = smul.addr %s475, 32
        %s477 = scalar_lea.vmem [#allocation18], %s476
        %s478 = smul.u32 4, %s30
        %p479 = scmp.lt.s32.totalorder %s478, 7
        %s480 = scalar_select %p479, %s478, 7
        %s481 = smul.addr %s480, 8
        %s482 = scalar_lea.vmem %s0, %s481
        %s483 = smul.u32 4, %s30
        %s484 = smul.u32 4, %s30
        %s485 = smul.u32 4, %s30
        %v486 = vld [vmem:[#allocation16] sm:$0x1]
        %v487 = vld [vmem:[#allocation16 + $0x1] sm:$0x1]
        %v488 = vld [vmem:[#allocation16 + $0x2] sm:$0x1]
        %v489 = vld [vmem:[#allocation16 + $0x3] sm:$0x1]
        %v490 = vld [vmem:[#allocation16 + $0x4] sm:$0x1]
        %v491 = vld [vmem:[#allocation16 + $0x5] sm:$0x1]
        %v492 = vld [vmem:[#allocation16 + $0x6] sm:$0x1]
        %v493 = vld [vmem:[#allocation16 + $0x7] sm:$0x1]
        %v494 = vld [vmem:[#allocation16 + $0x8] sm:$0x1]
        %v495 = vld [vmem:[%s482] sm:$0xff]
        %v496 = vld [vmem:[%s482 + $0x8] sm:$0xff]
        %v497 = vld [vmem:[%s482 + $0x10] sm:$0xff]
        %v498 = vld [vmem:[%s482 + $0x18] sm:$0xff]
        %vm499 = vcmask 261120
        %v500 = vsel %vm499, %v495, 0.0
        %501 = vadd.xlane.f32.xlu0 %v500
        %v502 = vpop.xlane.xlu0 %501
        %v503 = vsel %vm499, %v496, 0.0
        %504 = vadd.xlane.f32.xlu0 %v503
        %v505 = vpop.xlane.xlu0 %504
        %v506 = vsel %vm499, %v497, 0.0
        %507 = vadd.xlane.f32.xlu0 %v506
        %v508 = vpop.xlane.xlu0 %507
        %v509 = vsel %vm499, %v498, 0.0
        %510 = vadd.xlane.f32.xlu0 %v509
        %v511 = vpop.xlane.xlu0 %510
        %v512 = vrcp.pop 32.0
        %v513 = vmul.f32 32.0, %v512
        %v514 = vsub.f32 1.0, %v513
        %v515 = vmul.f32 %v512, %v514
        %v516 = vadd.f32 %v512, %v515
        %vm517 = vweird.f32 %v512
        %v518 = vsel %vm517, %v512, %v516
        %v519 = vmul.f32 %v502, %v518
        %v520 = vmul.f32 %v505, %v518
        %v521 = vmul.f32 %v508, %v518
        %v522 = vmul.f32 %v511, %v518
        %v523 = vsub.f32 %v495, %v519
        %v524 = vsub.f32 %v496, %v520
        %v525 = vsub.f32 %v497, %v521
        %v526 = vsub.f32 %v498, %v522
        %v527 = vmul.f32 %v523, %v523
        %v528 = vmul.f32 %v524, %v524
        %v529 = vmul.f32 %v525, %v525
        %v530 = vmul.f32 %v526, %v526
        %v531 = vsel %vm499, %v527, 0.0
        %532 = vadd.xlane.f32.xlu0 %v531
        %v533 = vpop.xlane.xlu0 %532
        %v534 = vsel %vm499, %v528, 0.0
        %535 = vadd.xlane.f32.xlu0 %v534
        %v536 = vpop.xlane.xlu0 %535
        %v537 = vsel %vm499, %v529, 0.0
        %538 = vadd.xlane.f32.xlu0 %v537
        %v539 = vpop.xlane.xlu0 %538
        %v540 = vsel %vm499, %v530, 0.0
        %541 = vadd.xlane.f32.xlu0 %v540
        %v542 = vpop.xlane.xlu0 %541
        %v543 = vmul.f32 %v533, 0.032258064
        %v544 = vmul.f32 %v536, 0.032258064
        %v545 = vmul.f32 %v539, 0.032258064
        %v546 = vmul.f32 %v542, 0.032258064
        %v547 = vrsqrt.pop %v543
        %v548 = vmul.f32 %v547, %v543
        %v549 = vmul.f32 %v548, %v547
        %v550 = vmul.f32 0.5, %v549
        %v551 = vsub.f32 1.5, %v550
        %v552 = vmul.f32 %v547, %v551
        %v553 = vmul.f32 %v543, %v552
        %vm554 = vcmp.eq.f32.partialorder %v543, inf
        %v555 = vsel %vm554, %v543, %v553
        %vm556 = vcmp.eq.f32.partialorder %v543, 0.0
        %v557 = vand.u32 %v543, 2147483648
        %v558 = vsel %vm556, %v557, %v555
        %v559 = vrsqrt.pop %v544
        %v560 = vmul.f32 %v559, %v544
        %v561 = vmul.f32 %v560, %v559
        %v562 = vmul.f32 0.5, %v561
        %v563 = vsub.f32 1.5, %v562
        %v564 = vmul.f32 %v559, %v563
        %v565 = vmul.f32 %v544, %v564
        %vm566 = vcmp.eq.f32.partialorder %v544, inf
        %v567 = vsel %vm566, %v544, %v565
        %vm568 = vcmp.eq.f32.partialorder %v544, 0.0
        %v569 = vand.u32 %v544, 2147483648
        %v570 = vsel %vm568, %v569, %v567
        %v571 = vrsqrt.pop %v545
        %v572 = vmul.f32 %v571, %v545
        %v573 = vmul.f32 %v572, %v571
        %v574 = vmul.f32 0.5, %v573
        %v575 = vsub.f32 1.5, %v574
        %v576 = vmul.f32 %v571, %v575
        %v577 = vmul.f32 %v545, %v576
        %vm578 = vcmp.eq.f32.partialorder %v545, inf
        %v579 = vsel %vm578, %v545, %v577
        %vm580 = vcmp.eq.f32.partialorder %v545, 0.0
        %v581 = vand.u32 %v545, 2147483648
        %v582 = vsel %vm580, %v581, %v579
        %v583 = vrsqrt.pop %v546
        %v584 = vmul.f32 %v583, %v546
        %v585 = vmul.f32 %v584, %v583
        %v586 = vmul.f32 0.5, %v585
        %v587 = vsub.f32 1.5, %v586
        %v588 = vmul.f32 %v583, %v587
        %v589 = vmul.f32 %v546, %v588
        %vm590 = vcmp.eq.f32.partialorder %v546, inf
        %v591 = vsel %vm590, %v546, %v589
        %vm592 = vcmp.eq.f32.partialorder %v546, 0.0
        %v593 = vand.u32 %v546, 2147483648
        %v594 = vsel %vm592, %v593, %v591
        %v595 = vadd.f32 %v558, 1e-06
        %v596 = vadd.f32 %v570, 1e-06
        %v597 = vadd.f32 %v582, 1e-06
        %v598 = vadd.f32 %v594, 1e-06
        %v599 = vrcp.pop %v595
        %v600 = vmul.f32 %v595, %v599
        %v601 = vsub.f32 1.0, %v600
        %v602 = vmul.f32 %v599, %v601
        %v603 = vadd.f32 %v599, %v602
        %vm604 = vweird.f32 %v595
        %vm605 = vweird.f32 %v599
        %vm606 = vmor %vm604, %vm605
        %v607 = vsel %vm606, %v599, %v603
        %v608 = vand.u32 2147483647, %v595
        %vm609 = vcmp.eq.f32.partialorder %v608, 8.507059e+37
        %v610 = vand.u32 %v595, 2147483648
        %v611 = vor.u32 1.1754944e-38, %v610
        %v612 = vsel %vm609, %v611, %v607
        %v613 = vmul.f32 1.0, %v612
        %v614 = vrcp.pop %v596
        %v615 = vmul.f32 %v596, %v614
        %v616 = vsub.f32 1.0, %v615
        %v617 = vmul.f32 %v614, %v616
        %v618 = vadd.f32 %v614, %v617
        %vm619 = vweird.f32 %v596
        %vm620 = vweird.f32 %v614
        %vm621 = vmor %vm619, %vm620
        %v622 = vsel %vm621, %v614, %v618
        %v623 = vand.u32 2147483647, %v596
        %vm624 = vcmp.eq.f32.partialorder %v623, 8.507059e+37
        %v625 = vand.u32 %v596, 2147483648
        %v626 = vor.u32 1.1754944e-38, %v625
        %v627 = vsel %vm624, %v626, %v622
        %v628 = vmul.f32 1.0, %v627
        %v629 = vrcp.pop %v597
        %v630 = vmul.f32 %v597, %v629
        %v631 = vsub.f32 1.0, %v630
        %v632 = vmul.f32 %v629, %v631
        %v633 = vadd.f32 %v629, %v632
        %vm634 = vweird.f32 %v597
        %vm635 = vweird.f32 %v629
        %vm636 = vmor %vm634, %vm635
        %v637 = vsel %vm636, %v629, %v633
        %v638 = vand.u32 2147483647, %v597
        %vm639 = vcmp.eq.f32.partialorder %v638, 8.507059e+37
        %v640 = vand.u32 %v597, 2147483648
        %v641 = vor.u32 1.1754944e-38, %v640
        %v642 = vsel %vm639, %v641, %v637
        %v643 = vmul.f32 1.0, %v642
        %v644 = vrcp.pop %v598
        %v645 = vmul.f32 %v598, %v644
        %v646 = vsub.f32 1.0, %v645
        %v647 = vmul.f32 %v644, %v646
        %v648 = vadd.f32 %v644, %v647
        %vm649 = vweird.f32 %v598
        %vm650 = vweird.f32 %v644
        %vm651 = vmor %vm649, %vm650
        %v652 = vsel %vm651, %v644, %v648
        %v653 = vand.u32 2147483647, %v598
        %vm654 = vcmp.eq.f32.partialorder %v653, 8.507059e+37
        %v655 = vand.u32 %v598, 2147483648
        %v656 = vor.u32 1.1754944e-38, %v655
        %v657 = vsel %vm654, %v656, %v652
        %v658 = vmul.f32 1.0, %v657
        %v659 = vperm.slane %v491, 0
        %v660 = vmul.f32 %v659, %v523
        %v661 = vmul.f32 %v659, %v524
        %v662 = vmul.f32 %v659, %v525
        %v663 = vmul.f32 %v659, %v526
        %v664 = vmul.f32 %v660, %v613
        %v665 = vmul.f32 %v661, %v628
        %v666 = vmul.f32 %v662, %v643
        %v667 = vmul.f32 %v663, %v658
        %v668 = vperm.slane %v492, 0
        %v669 = vadd.f32 %v664, %v668
        %v670 = vadd.f32 %v665, %v668
        %v671 = vadd.f32 %v666, %v668
        %v672 = vadd.f32 %v667, %v668
        %v673 = vld [vmem:[%s2] sm:$0xff]
        %v674 = vld [vmem:[%s2 + $0x8] sm:$0xff]
        %v675 = vld [vmem:[%s2 + $0x10] sm:$0xff]
        %v676 = vld [vmem:[%s2 + $0x18] sm:$0xff]
        %v677 = vperm.slane %v486, 0
        %v679 = vsel %vm499, %v669, 0
        %v682 = vsel %vm499, %v670, 0
        %v685 = vsel %vm499, %v671, 0
        %v688 = vsel %vm499, %v672, 0
        %690 = vmatpush.msra.mxu0 0.0
        %691 = vmatpush.msra.mxu0 0.0
        %692 = vmatpush.msra.mxu0 0.0
        %693 = vmatpush.msra.mxu0 0.0
        %694 = vmatpush.msra.mxu0 0.0
        %695 = vmatpush.msra.mxu0 0.0
        %696 = vmatpush.msra.mxu0 0.0
        %697 = vmatpush.msra.mxu0 0.0
        %698 = vmatpush.msra.mxu0 0.0
        %699 = vmatpush.msra.mxu0 0.0
        %700 = vmatpush.msra.mxu0 0.0
        %701 = vmatpush.msra.mxu0 0.0
        %702 = vmatpush.msra.mxu0 %v676
        %703 = vmatpush.msra.mxu0 %v675
        %704 = vmatpush.msra.mxu0 %v674
        %705 = vmatpush.msra.mxu0 %v673
        %706 = vmatmul.f32.gmra.mxu0 %v679
        %v707 = vpop.f32.mrf.mxu0
        %v708 = vadd.f32 %v677, %v707
        %709 = vmatmul.f32.gmra.mxu0 %v682
        %v710 = vpop.f32.mrf.mxu0
        %v711 = vadd.f32 %v677, %v710
        %712 = vmatmul.f32.gmra.mxu0 %v685
        %v713 = vpop.f32.mrf.mxu0
        %v714 = vadd.f32 %v677, %v713
        %715 = vmatmul.f32.gmra.mxu0 %v688
        %v716 = vpop.f32.mrf.mxu0
        %v717 = vadd.f32 %v677, %v716
        %718 = vdwg.mxu0
        %v719 = vld [vmem:[#allocation10] sm:$0xff]
        %v720 = vld [vmem:[#allocation10 + $0x8] sm:$0xff]
        %v721 = vld [vmem:[#allocation10 + $0x10] sm:$0xff]
        %v722 = vld [vmem:[#allocation10 + $0x18] sm:$0xff]
        %v723 = vperm.slane %v487, 0
        %724 = vmatpush.msra.mxu0 0.0
        %725 = vmatpush.msra.mxu0 0.0
        %726 = vmatpush.msra.mxu0 0.0
        %727 = vmatpush.msra.mxu0 0.0
        %728 = vmatpush.msra.mxu0 0.0
        %729 = vmatpush.msra.mxu0 0.0
        %730 = vmatpush.msra.mxu0 0.0
        %731 = vmatpush.msra.mxu0 0.0
        %732 = vmatpush.msra.mxu0 0.0
        %733 = vmatpush.msra.mxu0 0.0
        %734 = vmatpush.msra.mxu0 0.0
        %735 = vmatpush.msra.mxu0 0.0
        %736 = vmatpush.msra.mxu0 %v722
        %737 = vmatpush.msra.mxu0 %v721
        %738 = vmatpush.msra.mxu0 %v720
        %739 = vmatpush.msra.mxu0 %v719
        %740 = vmatmul.f32.gmra.mxu0 %v679
        %v741 = vpop.f32.mrf.mxu0
        %v742 = vadd.f32 %v723, %v741
        %743 = vmatmul.f32.gmra.mxu0 %v682
        %v744 = vpop.f32.mrf.mxu0
        %v745 = vadd.f32 %v723, %v744
        %746 = vmatmul.f32.gmra.mxu0 %v685
        %v747 = vpop.f32.mrf.mxu0
        %v748 = vadd.f32 %v723, %v747
        %749 = vmatmul.f32.gmra.mxu0 %v688
        %v750 = vpop.f32.mrf.mxu0
        %v751 = vadd.f32 %v723, %v750
        %752 = vdwg.mxu0
        %v753 = vld [vmem:[#allocation12] sm:$0xff]
        %v754 = vld [vmem:[#allocation12 + $0x8] sm:$0xff]
        %v755 = vld [vmem:[#allocation12 + $0x10] sm:$0xff]
        %v756 = vld [vmem:[#allocation12 + $0x18] sm:$0xff]
        %v757 = vperm.slane %v488, 0
        %758 = vmatpush.msra.mxu0 0.0
        %759 = vmatpush.msra.mxu0 0.0
        %760 = vmatpush.msra.mxu0 0.0
        %761 = vmatpush.msra.mxu0 0.0
        %762 = vmatpush.msra.mxu0 0.0
        %763 = vmatpush.msra.mxu0 0.0
        %764 = vmatpush.msra.mxu0 0.0
        %765 = vmatpush.msra.mxu0 0.0
        %766 = vmatpush.msra.mxu0 0.0
        %767 = vmatpush.msra.mxu0 0.0
        %768 = vmatpush.msra.mxu0 0.0
        %769 = vmatpush.msra.mxu0 0.0
        %770 = vmatpush.msra.mxu0 %v756
        %771 = vmatpush.msra.mxu0 %v755
        %772 = vmatpush.msra.mxu0 %v754
        %773 = vmatpush.msra.mxu0 %v753
        %774 = vmatmul.f32.gmra.mxu0 %v679
        %v775 = vpop.f32.mrf.mxu0
        %v776 = vadd.f32 %v757, %v775
        %777 = vmatmul.f32.gmra.mxu0 %v682
        %v778 = vpop.f32.mrf.mxu0
        %v779 = vadd.f32 %v757, %v778
        %780 = vmatmul.f32.gmra.mxu0 %v685
        %v781 = vpop.f32.mrf.mxu0
        %v782 = vadd.f32 %v757, %v781
        %783 = vmatmul.f32.gmra.mxu0 %v688
        %v784 = vpop.f32.mrf.mxu0
        %v785 = vadd.f32 %v757, %v784
        %786 = vdwg.mxu0
        %v787 = vld [vmem:[%s410] sm:$0x1]
        %v788 = vld [vmem:[%s410 + $0x1] sm:$0x1]
        %v789 = vld [vmem:[%s410 + $0x2] sm:$0x1]
        %v790 = vld [vmem:[%s410 + $0x3] sm:$0x1]
        %vm791 = vcmp.eq.s32.totalorder %v787, 0
        %vm792 = vcmp.eq.s32.totalorder %v788, 0
        %vm793 = vcmp.eq.s32.totalorder %v789, 0
        %vm794 = vcmp.eq.s32.totalorder %v790, 0
        %v795 = vsel %vm791, -1e+09, 0.0
        %v796 = vsel %vm792, -1e+09, 0.0
        %v797 = vsel %vm793, -1e+09, 0.0
        %v798 = vsel %vm794, -1e+09, 0.0
        %vm799 = vcmask 64512
        %800 = vst.msk [vmem:[#allocation2] sm:$0xff] %vm799, %v708
        %801 = vst.msk [vmem:[#allocation2 + $0x8] sm:$0xff] %vm799, %v711
        %802 = vst.msk [vmem:[#allocation2 + $0x10] sm:$0xff] %vm799, %v714
        %803 = vst.msk [vmem:[#allocation2 + $0x18] sm:$0xff] %vm799, %v717
        %804 = vst.msk [vmem:[#allocation3] sm:$0xff] %vm799, %v742
        %805 = vst.msk [vmem:[#allocation3 + $0x8] sm:$0xff] %vm799, %v745
        %806 = vst.msk [vmem:[#allocation3 + $0x10] sm:$0xff] %vm799, %v748
        %807 = vst.msk [vmem:[#allocation3 + $0x18] sm:$0xff] %vm799, %v751
        %808 = vst.msk [vmem:[#allocation4] sm:$0xff] %vm799, %v776
        %809 = vst.msk [vmem:[#allocation4 + $0x8] sm:$0xff] %vm799, %v779
        %810 = vst.msk [vmem:[#allocation4 + $0x10] sm:$0xff] %vm799, %v782
        %811 = vst.msk [vmem:[#allocation4 + $0x18] sm:$0xff] %vm799, %v785
        %vm812 = vcmask 57344
        %813 = vst.msk [vmem:[#allocation6] sm:$0x1] %vm812, %v795
        %814 = vst.msk [vmem:[#allocation6 + $0x1] sm:$0x1] %vm812, %v796
        %815 = vst.msk [vmem:[#allocation6 + $0x2] sm:$0x1] %vm812, %v797
        %816 = vst.msk [vmem:[#allocation6 + $0x3] sm:$0x1] %vm812, %v798
        %821 = vrot.lane.b32.xlu0 %v708, 120
        %v822 = vpop.permute.xlu0 %821
        %823 = vrot.lane.b32.xlu0 %v711, 120
        %v824 = vpop.permute.xlu0 %823
        %825 = vrot.lane.b32.xlu0 %v714, 120
        %v826 = vpop.permute.xlu0 %825
        %827 = vrot.lane.b32.xlu0 %v717, 120
        %v828 = vpop.permute.xlu0 %827
        %s833 = scalar_lea.vmem [#allocation2], 32
        %834 = vst.msk [vmem:[%s833] sm:$0xff] %vm799, %v822
        %835 = vst.msk [vmem:[%s833 + $0x8] sm:$0xff] %vm799, %v824
        %836 = vst.msk [vmem:[%s833 + $0x10] sm:$0xff] %vm799, %v826
        %837 = vst.msk [vmem:[%s833 + $0x18] sm:$0xff] %vm799, %v828
        %842 = vrot.lane.b32.xlu0 %v742, 120
        %v843 = vpop.permute.xlu0 %842
        %844 = vrot.lane.b32.xlu0 %v745, 120
        %v845 = vpop.permute.xlu0 %844
        %846 = vrot.lane.b32.xlu0 %v748, 120
        %v847 = vpop.permute.xlu0 %846
        %848 = vrot.lane.b32.xlu0 %v751, 120
        %v849 = vpop.permute.xlu0 %848
        %s854 = scalar_lea.vmem [#allocation3], 32
        %855 = vst.msk [vmem:[%s854] sm:$0xff] %vm799, %v843
        %856 = vst.msk [vmem:[%s854 + $0x8] sm:$0xff] %vm799, %v845
        %857 = vst.msk [vmem:[%s854 + $0x10] sm:$0xff] %vm799, %v847
        %858 = vst.msk [vmem:[%s854 + $0x18] sm:$0xff] %vm799, %v849
        %863 = vrot.lane.b32.xlu0 %v776, 120
        %v864 = vpop.permute.xlu0 %863
        %865 = vrot.lane.b32.xlu0 %v779, 120
        %v866 = vpop.permute.xlu0 %865
        %867 = vrot.lane.b32.xlu0 %v782, 120
        %v868 = vpop.permute.xlu0 %867
        %869 = vrot.lane.b32.xlu0 %v785, 120
        %v870 = vpop.permute.xlu0 %869
        %s875 = scalar_lea.vmem [#allocation4], 32
        %876 = vst.msk [vmem:[%s875] sm:$0xff] %vm799, %v864
        %877 = vst.msk [vmem:[%s875 + $0x8] sm:$0xff] %vm799, %v866
        %878 = vst.msk [vmem:[%s875 + $0x10] sm:$0xff] %vm799, %v868
        %879 = vst.msk [vmem:[%s875 + $0x18] sm:$0xff] %vm799, %v870
        %s880 = scalar_lea.vmem [#allocation6], 4
        %881 = vst.msk [vmem:[%s880] sm:$0x1] %vm812, %v795
        %882 = vst.msk [vmem:[%s880 + $0x1] sm:$0x1] %vm812, %v796
        %883 = vst.msk [vmem:[%s880 + $0x2] sm:$0x1] %vm812, %v797
        %884 = vst.msk [vmem:[%s880 + $0x3] sm:$0x1] %vm812, %v798
        %885 = vrot.lane.b32.xlu0 %v708, 112
        %v886 = vpop.permute.xlu0 %885
        %887 = vrot.lane.b32.xlu0 %v711, 112
        %v888 = vpop.permute.xlu0 %887
        %889 = vrot.lane.b32.xlu0 %v714, 112
        %v890 = vpop.permute.xlu0 %889
        %891 = vrot.lane.b32.xlu0 %v717, 112
        %v892 = vpop.permute.xlu0 %891
        %s897 = scalar_lea.vmem [#allocation2], 64
        %898 = vst.msk [vmem:[%s897] sm:$0xff] %vm799, %v886
        %899 = vst.msk [vmem:[%s897 + $0x8] sm:$0xff] %vm799, %v888
        %900 = vst.msk [vmem:[%s897 + $0x10] sm:$0xff] %vm799, %v890
        %901 = vst.msk [vmem:[%s897 + $0x18] sm:$0xff] %vm799, %v892
        %902 = vrot.lane.b32.xlu0 %v742, 112
        %v903 = vpop.permute.xlu0 %902
        %904 = vrot.lane.b32.xlu0 %v745, 112
        %v905 = vpop.permute.xlu0 %904
        %906 = vrot.lane.b32.xlu0 %v748, 112
        %v907 = vpop.permute.xlu0 %906
        %908 = vrot.lane.b32.xlu0 %v751, 112
        %v909 = vpop.permute.xlu0 %908
        %s914 = scalar_lea.vmem [#allocation3], 64
        %915 = vst.msk [vmem:[%s914] sm:$0xff] %vm799, %v903
        %916 = vst.msk [vmem:[%s914 + $0x8] sm:$0xff] %vm799, %v905
        %917 = vst.msk [vmem:[%s914 + $0x10] sm:$0xff] %vm799, %v907
        %918 = vst.msk [vmem:[%s914 + $0x18] sm:$0xff] %vm799, %v909
        %919 = vrot.lane.b32.xlu0 %v776, 112
        %v920 = vpop.permute.xlu0 %919
        %921 = vrot.lane.b32.xlu0 %v779, 112
        %v922 = vpop.permute.xlu0 %921
        %923 = vrot.lane.b32.xlu0 %v782, 112
        %v924 = vpop.permute.xlu0 %923
        %925 = vrot.lane.b32.xlu0 %v785, 112
        %v926 = vpop.permute.xlu0 %925
        %s931 = scalar_lea.vmem [#allocation4], 64
        %932 = vst.msk [vmem:[%s931] sm:$0xff] %vm799, %v920
        %933 = vst.msk [vmem:[%s931 + $0x8] sm:$0xff] %vm799, %v922
        %934 = vst.msk [vmem:[%s931 + $0x10] sm:$0xff] %vm799, %v924
        %935 = vst.msk [vmem:[%s931 + $0x18] sm:$0xff] %vm799, %v926
        %s936 = scalar_lea.vmem [#allocation6], 8
        %937 = vst.msk [vmem:[%s936] sm:$0x1] %vm812, %v795
        %938 = vst.msk [vmem:[%s936 + $0x1] sm:$0x1] %vm812, %v796
        %939 = vst.msk [vmem:[%s936 + $0x2] sm:$0x1] %vm812, %v797
        %940 = vst.msk [vmem:[%s936 + $0x3] sm:$0x1] %vm812, %v798
        %941 = vrot.lane.b32.xlu0 %v708, 104
        %v942 = vpop.permute.xlu0 %941
        %943 = vrot.lane.b32.xlu0 %v711, 104
        %v944 = vpop.permute.xlu0 %943
        %945 = vrot.lane.b32.xlu0 %v714, 104
        %v946 = vpop.permute.xlu0 %945
        %947 = vrot.lane.b32.xlu0 %v717, 104
        %v948 = vpop.permute.xlu0 %947
        %s953 = scalar_lea.vmem [#allocation2], 96
        %954 = vst.msk [vmem:[%s953] sm:$0xff] %vm799, %v942
        %955 = vst.msk [vmem:[%s953 + $0x8] sm:$0xff] %vm799, %v944
        %956 = vst.msk [vmem:[%s953 + $0x10] sm:$0xff] %vm799, %v946
        %957 = vst.msk [vmem:[%s953 + $0x18] sm:$0xff] %vm799, %v948
        %958 = vrot.lane.b32.xlu0 %v742, 104
        %v959 = vpop.permute.xlu0 %958
        %960 = vrot.lane.b32.xlu0 %v745, 104
        %v961 = vpop.permute.xlu0 %960
        %962 = vrot.lane.b32.xlu0 %v748, 104
        %v963 = vpop.permute.xlu0 %962
        %964 = vrot.lane.b32.xlu0 %v751, 104
        %v965 = vpop.permute.xlu0 %964
        %s970 = scalar_lea.vmem [#allocation3], 96
        %971 = vst.msk [vmem:[%s970] sm:$0xff] %vm799, %v959
        %972 = vst.msk [vmem:[%s970 + $0x8] sm:$0xff] %vm799, %v961
        %973 = vst.msk [vmem:[%s970 + $0x10] sm:$0xff] %vm799, %v963
        %974 = vst.msk [vmem:[%s970 + $0x18] sm:$0xff] %vm799, %v965
        %975 = vrot.lane.b32.xlu0 %v776, 104
        %v976 = vpop.permute.xlu0 %975
        %977 = vrot.lane.b32.xlu0 %v779, 104
        %v978 = vpop.permute.xlu0 %977
        %979 = vrot.lane.b32.xlu0 %v782, 104
        %v980 = vpop.permute.xlu0 %979
        %981 = vrot.lane.b32.xlu0 %v785, 104
        %v982 = vpop.permute.xlu0 %981
        %s987 = scalar_lea.vmem [#allocation4], 96
        %988 = vst.msk [vmem:[%s987] sm:$0xff] %vm799, %v976
        %989 = vst.msk [vmem:[%s987 + $0x8] sm:$0xff] %vm799, %v978
        %990 = vst.msk [vmem:[%s987 + $0x10] sm:$0xff] %vm799, %v980
        %991 = vst.msk [vmem:[%s987 + $0x18] sm:$0xff] %vm799, %v982
        %s992 = scalar_lea.vmem [#allocation6], 12
        %993 = vst.msk [vmem:[%s992] sm:$0x1] %vm812, %v795
        %994 = vst.msk [vmem:[%s992 + $0x1] sm:$0x1] %vm812, %v796
        %995 = vst.msk [vmem:[%s992 + $0x2] sm:$0x1] %vm812, %v797
        %996 = vst.msk [vmem:[%s992 + $0x3] sm:$0x1] %vm812, %v798
        %v997 = vld [vmem:[#allocation2] sm:$0xff]
        %v998 = vld [vmem:[#allocation2 + $0x8] sm:$0xff]
        %v999 = vld [vmem:[#allocation2 + $0x10] sm:$0xff]
        %v1000 = vld [vmem:[#allocation2 + $0x18] sm:$0xff]
        %v1001 = vld [vmem:[#allocation2 + $0x20] sm:$0xff]
        %v1002 = vld [vmem:[#allocation2 + $0x28] sm:$0xff]
        %v1003 = vld [vmem:[#allocation2 + $0x30] sm:$0xff]
        %v1004 = vld [vmem:[#allocation2 + $0x38] sm:$0xff]
        %v1005 = vld [vmem:[#allocation2 + $0x40] sm:$0xff]
        %v1006 = vld [vmem:[#allocation2 + $0x48] sm:$0xff]
        %v1007 = vld [vmem:[#allocation2 + $0x50] sm:$0xff]
        %v1008 = vld [vmem:[#allocation2 + $0x58] sm:$0xff]
        %v1009 = vld [vmem:[#allocation2 + $0x60] sm:$0xff]
        %v1010 = vld [vmem:[#allocation2 + $0x68] sm:$0xff]
        %v1011 = vld [vmem:[#allocation2 + $0x70] sm:$0xff]
        %v1012 = vld [vmem:[#allocation2 + $0x78] sm:$0xff]
        %v1013 = vld [vmem:[#allocation3] sm:$0xff]
        %v1014 = vld [vmem:[#allocation3 + $0x8] sm:$0xff]
        %v1015 = vld [vmem:[#allocation3 + $0x10] sm:$0xff]
        %v1016 = vld [vmem:[#allocation3 + $0x18] sm:$0xff]
        %v1017 = vld [vmem:[#allocation3 + $0x20] sm:$0xff]
        %v1018 = vld [vmem:[#allocation3 + $0x28] sm:$0xff]
        %v1019 = vld [vmem:[#allocation3 + $0x30] sm:$0xff]
        %v1020 = vld [vmem:[#allocation3 + $0x38] sm:$0xff]
        %v1021 = vld [vmem:[#allocation3 + $0x40] sm:$0xff]
        %v1022 = vld [vmem:[#allocation3 + $0x48] sm:$0xff]
        %v1023 = vld [vmem:[#allocation3 + $0x50] sm:$0xff]
        %v1024 = vld [vmem:[#allocation3 + $0x58] sm:$0xff]
        %v1025 = vld [vmem:[#allocation3 + $0x60] sm:$0xff]
        %v1026 = vld [vmem:[#allocation3 + $0x68] sm:$0xff]
        %v1027 = vld [vmem:[#allocation3 + $0x70] sm:$0xff]
        %v1028 = vld [vmem:[#allocation3 + $0x78] sm:$0xff]
        %v1030 = vsel %vm799, %v997, 0
        %v1033 = vsel %vm799, %v1013, 0
        %1035 = vmatpush.xpose.msra.mxu0 0.0
        %1036 = vmatpush.xpose.msra.mxu0 0.0
        %1037 = vmatpush.xpose.msra.mxu0 0.0
        %1038 = vmatpush.xpose.msra.mxu0 0.0
        %1039 = vmatpush.xpose.msra.mxu0 0.0
        %1040 = vmatpush.xpose.msra.mxu0 0.0
        %1041 = vmatpush.xpose.msra.mxu0 0.0
        %1042 = vmatpush.xpose.msra.mxu0 0.0
        %1043 = vmatpush.xpose.msra.mxu0 0.0
        %1044 = vmatpush.xpose.msra.mxu0 0.0
        %1045 = vmatpush.xpose.msra.mxu0 0.0
        %1046 = vmatpush.xpose.msra.mxu0 0.0
        %1047 = vmatpush.xpose.msra.mxu0 0.0
        %1048 = vmatpush.xpose.msra.mxu0 0.0
        %1049 = vmatpush.xpose.msra.mxu0 0.0
        %1050 = vmatpush.xpose.msra.mxu0 %v1033
        %1051 = vmatmul.f32.gmra.mxu0 %v1030
        %v1052 = vpop.f32.mrf.mxu0
        %v1053 = vadd.f32 0.0, %v1052
        %1054 = vdwg.mxu0
        %v1056 = vsel %vm799, %v998, 0
        %v1059 = vsel %vm799, %v1014, 0
        %1061 = vmatpush.xpose.msra.mxu0 0.0
        %1062 = vmatpush.xpose.msra.mxu0 0.0
        %1063 = vmatpush.xpose.msra.mxu0 0.0
        %1064 = vmatpush.xpose.msra.mxu0 0.0
        %1065 = vmatpush.xpose.msra.mxu0 0.0
        %1066 = vmatpush.xpose.msra.mxu0 0.0
        %1067 = vmatpush.xpose.msra.mxu0 0.0
        %1068 = vmatpush.xpose.msra.mxu0 0.0
        %1069 = vmatpush.xpose.msra.mxu0 0.0
        %1070 = vmatpush.xpose.msra.mxu0 0.0
        %1071 = vmatpush.xpose.msra.mxu0 0.0
        %1072 = vmatpush.xpose.msra.mxu0 0.0
        %1073 = vmatpush.xpose.msra.mxu0 0.0
        %1074 = vmatpush.xpose.msra.mxu0 0.0
        %1075 = vmatpush.xpose.msra.mxu0 0.0
        %1076 = vmatpush.xpose.msra.mxu0 %v1059
        %1077 = vmatmul.f32.gmra.mxu0 %v1056
        %v1078 = vpop.f32.mrf.mxu0
        %v1079 = vadd.f32 0.0, %v1078
        %1080 = vdwg.mxu0
        %v1082 = vsel %vm799, %v999, 0
        %v1085 = vsel %vm799, %v1015, 0
        %1087 = vmatpush.xpose.msra.mxu0 0.0
        %1088 = vmatpush.xpose.msra.mxu0 0.0
        %1089 = vmatpush.xpose.msra.mxu0 0.0
        %1090 = vmatpush.xpose.msra.mxu0 0.0
        %1091 = vmatpush.xpose.msra.mxu0 0.0
        %1092 = vmatpush.xpose.msra.mxu0 0.0
        %1093 = vmatpush.xpose.msra.mxu0 0.0
        %1094 = vmatpush.xpose.msra.mxu0 0.0
        %1095 = vmatpush.xpose.msra.mxu0 0.0
        %1096 = vmatpush.xpose.msra.mxu0 0.0
        %1097 = vmatpush.xpose.msra.mxu0 0.0
        %1098 = vmatpush.xpose.msra.mxu0 0.0
        %1099 = vmatpush.xpose.msra.mxu0 0.0
        %1100 = vmatpush.xpose.msra.mxu0 0.0
        %1101 = vmatpush.xpose.msra.mxu0 0.0
        %1102 = vmatpush.xpose.msra.mxu0 %v1085
        %1103 = vmatmul.f32.gmra.mxu0 %v1082
        %v1104 = vpop.f32.mrf.mxu0
        %v1105 = vadd.f32 0.0, %v1104
        %1106 = vdwg.mxu0
        %v1108 = vsel %vm799, %v1000, 0
        %v1111 = vsel %vm799, %v1016, 0
        %1113 = vmatpush.xpose.msra.mxu0 0.0
        %1114 = vmatpush.xpose.msra.mxu0 0.0
        %1115 = vmatpush.xpose.msra.mxu0 0.0
        %1116 = vmatpush.xpose.msra.mxu0 0.0
        %1117 = vmatpush.xpose.msra.mxu0 0.0
        %1118 = vmatpush.xpose.msra.mxu0 0.0
        %1119 = vmatpush.xpose.msra.mxu0 0.0
        %1120 = vmatpush.xpose.msra.mxu0 0.0
        %1121 = vmatpush.xpose.msra.mxu0 0.0
        %1122 = vmatpush.xpose.msra.mxu0 0.0
        %1123 = vmatpush.xpose.msra.mxu0 0.0
        %1124 = vmatpush.xpose.msra.mxu0 0.0
        %1125 = vmatpush.xpose.msra.mxu0 0.0
        %1126 = vmatpush.xpose.msra.mxu0 0.0
        %1127 = vmatpush.xpose.msra.mxu0 0.0
        %1128 = vmatpush.xpose.msra.mxu0 %v1111
        %1129 = vmatmul.f32.gmra.mxu0 %v1108
        %v1130 = vpop.f32.mrf.mxu0
        %v1131 = vadd.f32 0.0, %v1130
        %1132 = vdwg.mxu0
        %v1134 = vsel %vm799, %v1001, 0
        %v1137 = vsel %vm799, %v1017, 0
        %1139 = vmatpush.xpose.msra.mxu0 0.0
        %1140 = vmatpush.xpose.msra.mxu0 0.0
        %1141 = vmatpush.xpose.msra.mxu0 0.0
        %1142 = vmatpush.xpose.msra.mxu0 0.0
        %1143 = vmatpush.xpose.msra.mxu0 0.0
        %1144 = vmatpush.xpose.msra.mxu0 0.0
        %1145 = vmatpush.xpose.msra.mxu0 0.0
        %1146 = vmatpush.xpose.msra.mxu0 0.0
        %1147 = vmatpush.xpose.msra.mxu0 0.0
        %1148 = vmatpush.xpose.msra.mxu0 0.0
        %1149 = vmatpush.xpose.msra.mxu0 0.0
        %1150 = vmatpush.xpose.msra.mxu0 0.0
        %1151 = vmatpush.xpose.msra.mxu0 0.0
        %1152 = vmatpush.xpose.msra.mxu0 0.0
        %1153 = vmatpush.xpose.msra.mxu0 0.0
        %1154 = vmatpush.xpose.msra.mxu0 %v1137
        %1155 = vmatmul.f32.gmra.mxu0 %v1134
        %v1156 = vpop.f32.mrf.mxu0
        %v1157 = vadd.f32 0.0, %v1156
        %1158 = vdwg.mxu0
        %v1160 = vsel %vm799, %v1002, 0
        %v1163 = vsel %vm799, %v1018, 0
        %1165 = vmatpush.xpose.msra.mxu0 0.0
        %1166 = vmatpush.xpose.msra.mxu0 0.0
        %1167 = vmatpush.xpose.msra.mxu0 0.0
        %1168 = vmatpush.xpose.msra.mxu0 0.0
        %1169 = vmatpush.xpose.msra.mxu0 0.0
        %1170 = vmatpush.xpose.msra.mxu0 0.0
        %1171 = vmatpush.xpose.msra.mxu0 0.0
        %1172 = vmatpush.xpose.msra.mxu0 0.0
        %1173 = vmatpush.xpose.msra.mxu0 0.0
        %1174 = vmatpush.xpose.msra.mxu0 0.0
        %1175 = vmatpush.xpose.msra.mxu0 0.0
        %1176 = vmatpush.xpose.msra.mxu0 0.0
        %1177 = vmatpush.xpose.msra.mxu0 0.0
        %1178 = vmatpush.xpose.msra.mxu0 0.0
        %1179 = vmatpush.xpose.msra.mxu0 0.0
        %1180 = vmatpush.xpose.msra.mxu0 %v1163
        %1181 = vmatmul.f32.gmra.mxu0 %v1160
        %v1182 = vpop.f32.mrf.mxu0
        %v1183 = vadd.f32 0.0, %v1182
        %1184 = vdwg.mxu0
        %v1186 = vsel %vm799, %v1003, 0
        %v1189 = vsel %vm799, %v1019, 0
        %1191 = vmatpush.xpose.msra.mxu0 0.0
        %1192 = vmatpush.xpose.msra.mxu0 0.0
        %1193 = vmatpush.xpose.msra.mxu0 0.0
        %1194 = vmatpush.xpose.msra.mxu0 0.0
        %1195 = vmatpush.xpose.msra.mxu0 0.0
        %1196 = vmatpush.xpose.msra.mxu0 0.0
        %1197 = vmatpush.xpose.msra.mxu0 0.0
        %1198 = vmatpush.xpose.msra.mxu0 0.0
        %1199 = vmatpush.xpose.msra.mxu0 0.0
        %1200 = vmatpush.xpose.msra.mxu0 0.0
        %1201 = vmatpush.xpose.msra.mxu0 0.0
        %1202 = vmatpush.xpose.msra.mxu0 0.0
        %1203 = vmatpush.xpose.msra.mxu0 0.0
        %1204 = vmatpush.xpose.msra.mxu0 0.0
        %1205 = vmatpush.xpose.msra.mxu0 0.0
        %1206 = vmatpush.xpose.msra.mxu0 %v1189
        %1207 = vmatmul.f32.gmra.mxu0 %v1186
        %v1208 = vpop.f32.mrf.mxu0
        %v1209 = vadd.f32 0.0, %v1208
        %1210 = vdwg.mxu0
        %v1212 = vsel %vm799, %v1004, 0
        %v1215 = vsel %vm799, %v1020, 0
        %1217 = vmatpush.xpose.msra.mxu0 0.0
        %1218 = vmatpush.xpose.msra.mxu0 0.0
        %1219 = vmatpush.xpose.msra.mxu0 0.0
        %1220 = vmatpush.xpose.msra.mxu0 0.0
        %1221 = vmatpush.xpose.msra.mxu0 0.0
        %1222 = vmatpush.xpose.msra.mxu0 0.0
        %1223 = vmatpush.xpose.msra.mxu0 0.0
        %1224 = vmatpush.xpose.msra.mxu0 0.0
        %1225 = vmatpush.xpose.msra.mxu0 0.0
        %1226 = vmatpush.xpose.msra.mxu0 0.0
        %1227 = vmatpush.xpose.msra.mxu0 0.0
        %1228 = vmatpush.xpose.msra.mxu0 0.0
        %1229 = vmatpush.xpose.msra.mxu0 0.0
        %1230 = vmatpush.xpose.msra.mxu0 0.0
        %1231 = vmatpush.xpose.msra.mxu0 0.0
        %1232 = vmatpush.xpose.msra.mxu0 %v1215
        %1233 = vmatmul.f32.gmra.mxu0 %v1212
        %v1234 = vpop.f32.mrf.mxu0
        %v1235 = vadd.f32 0.0, %v1234
        %1236 = vdwg.mxu0
        %v1238 = vsel %vm799, %v1005, 0
        %v1241 = vsel %vm799, %v1021, 0
        %1243 = vmatpush.xpose.msra.mxu0 0.0
        %1244 = vmatpush.xpose.msra.mxu0 0.0
        %1245 = vmatpush.xpose.msra.mxu0 0.0
        %1246 = vmatpush.xpose.msra.mxu0 0.0
        %1247 = vmatpush.xpose.msra.mxu0 0.0
        %1248 = vmatpush.xpose.msra.mxu0 0.0
        %1249 = vmatpush.xpose.msra.mxu0 0.0
        %1250 = vmatpush.xpose.msra.mxu0 0.0
        %1251 = vmatpush.xpose.msra.mxu0 0.0
        %1252 = vmatpush.xpose.msra.mxu0 0.0
        %1253 = vmatpush.xpose.msra.mxu0 0.0
        %1254 = vmatpush.xpose.msra.mxu0 0.0
        %1255 = vmatpush.xpose.msra.mxu0 0.0
        %1256 = vmatpush.xpose.msra.mxu0 0.0
        %1257 = vmatpush.xpose.msra.mxu0 0.0
        %1258 = vmatpush.xpose.msra.mxu0 %v1241
        %1259 = vmatmul.f32.gmra.mxu0 %v1238
        %v1260 = vpop.f32.mrf.mxu0
        %v1261 = vadd.f32 0.0, %v1260
        %1262 = vdwg.mxu0
        %v1264 = vsel %vm799, %v1006, 0
        %v1267 = vsel %vm799, %v1022, 0
        %1269 = vmatpush.xpose.msra.mxu0 0.0
        %1270 = vmatpush.xpose.msra.mxu0 0.0
        %1271 = vmatpush.xpose.msra.mxu0 0.0
        %1272 = vmatpush.xpose.msra.mxu0 0.0
        %1273 = vmatpush.xpose.msra.mxu0 0.0
        %1274 = vmatpush.xpose.msra.mxu0 0.0
        %1275 = vmatpush.xpose.msra.mxu0 0.0
        %1276 = vmatpush.xpose.msra.mxu0 0.0
        %1277 = vmatpush.xpose.msra.mxu0 0.0
        %1278 = vmatpush.xpose.msra.mxu0 0.0
        %1279 = vmatpush.xpose.msra.mxu0 0.0
        %1280 = vmatpush.xpose.msra.mxu0 0.0
        %1281 = vmatpush.xpose.msra.mxu0 0.0
        %1282 = vmatpush.xpose.msra.mxu0 0.0
        %1283 = vmatpush.xpose.msra.mxu0 0.0
        %1284 = vmatpush.xpose.msra.mxu0 %v1267
        %1285 = vmatmul.f32.gmra.mxu0 %v1264
        %v1286 = vpop.f32.mrf.mxu0
        %v1287 = vadd.f32 0.0, %v1286
        %1288 = vdwg.mxu0
        %v1290 = vsel %vm799, %v1007, 0
        %v1293 = vsel %vm799, %v1023, 0
        %1295 = vmatpush.xpose.msra.mxu0 0.0
        %1296 = vmatpush.xpose.msra.mxu0 0.0
        %1297 = vmatpush.xpose.msra.mxu0 0.0
        %1298 = vmatpush.xpose.msra.mxu0 0.0
        %1299 = vmatpush.xpose.msra.mxu0 0.0
        %1300 = vmatpush.xpose.msra.mxu0 0.0
        %1301 = vmatpush.xpose.msra.mxu0 0.0
        %1302 = vmatpush.xpose.msra.mxu0 0.0
        %1303 = vmatpush.xpose.msra.mxu0 0.0
        %1304 = vmatpush.xpose.msra.mxu0 0.0
        %1305 = vmatpush.xpose.msra.mxu0 0.0
        %1306 = vmatpush.xpose.msra.mxu0 0.0
        %1307 = vmatpush.xpose.msra.mxu0 0.0
        %1308 = vmatpush.xpose.msra.mxu0 0.0
        %1309 = vmatpush.xpose.msra.mxu0 0.0
        %1310 = vmatpush.xpose.msra.mxu0 %v1293
        %1311 = vmatmul.f32.gmra.mxu0 %v1290
        %v1312 = vpop.f32.mrf.mxu0
        %v1313 = vadd.f32 0.0, %v1312
        %1314 = vdwg.mxu0
        %v1316 = vsel %vm799, %v1008, 0
        %v1319 = vsel %vm799, %v1024, 0
        %1321 = vmatpush.xpose.msra.mxu0 0.0
        %1322 = vmatpush.xpose.msra.mxu0 0.0
        %1323 = vmatpush.xpose.msra.mxu0 0.0
        %1324 = vmatpush.xpose.msra.mxu0 0.0
        %1325 = vmatpush.xpose.msra.mxu0 0.0
        %1326 = vmatpush.xpose.msra.mxu0 0.0
        %1327 = vmatpush.xpose.msra.mxu0 0.0
        %1328 = vmatpush.xpose.msra.mxu0 0.0
        %1329 = vmatpush.xpose.msra.mxu0 0.0
        %1330 = vmatpush.xpose.msra.mxu0 0.0
        %1331 = vmatpush.xpose.msra.mxu0 0.0
        %1332 = vmatpush.xpose.msra.mxu0 0.0
        %1333 = vmatpush.xpose.msra.mxu0 0.0
        %1334 = vmatpush.xpose.msra.mxu0 0.0
        %1335 = vmatpush.xpose.msra.mxu0 0.0
        %1336 = vmatpush.xpose.msra.mxu0 %v1319
        %1337 = vmatmul.f32.gmra.mxu0 %v1316
        %v1338 = vpop.f32.mrf.mxu0
        %v1339 = vadd.f32 0.0, %v1338
        %1340 = vdwg.mxu0
        %v1342 = vsel %vm799, %v1009, 0
        %v1345 = vsel %vm799, %v1025, 0
        %1347 = vmatpush.xpose.msra.mxu0 0.0
        %1348 = vmatpush.xpose.msra.mxu0 0.0
        %1349 = vmatpush.xpose.msra.mxu0 0.0
        %1350 = vmatpush.xpose.msra.mxu0 0.0
        %1351 = vmatpush.xpose.msra.mxu0 0.0
        %1352 = vmatpush.xpose.msra.mxu0 0.0
        %1353 = vmatpush.xpose.msra.mxu0 0.0
        %1354 = vmatpush.xpose.msra.mxu0 0.0
        %1355 = vmatpush.xpose.msra.mxu0 0.0
        %1356 = vmatpush.xpose.msra.mxu0 0.0
        %1357 = vmatpush.xpose.msra.mxu0 0.0
        %1358 = vmatpush.xpose.msra.mxu0 0.0
        %1359 = vmatpush.xpose.msra.mxu0 0.0
        %1360 = vmatpush.xpose.msra.mxu0 0.0
        %1361 = vmatpush.xpose.msra.mxu0 0.0
        %1362 = vmatpush.xpose.msra.mxu0 %v1345
        %1363 = vmatmul.f32.gmra.mxu0 %v1342
        %v1364 = vpop.f32.mrf.mxu0
        %v1365 = vadd.f32 0.0, %v1364
        %1366 = vdwg.mxu0
        %v1368 = vsel %vm799, %v1010, 0
        %v1371 = vsel %vm799, %v1026, 0
        %1373 = vmatpush.xpose.msra.mxu0 0.0
        %1374 = vmatpush.xpose.msra.mxu0 0.0
        %1375 = vmatpush.xpose.msra.mxu0 0.0
        %1376 = vmatpush.xpose.msra.mxu0 0.0
        %1377 = vmatpush.xpose.msra.mxu0 0.0
        %1378 = vmatpush.xpose.msra.mxu0 0.0
        %1379 = vmatpush.xpose.msra.mxu0 0.0
        %1380 = vmatpush.xpose.msra.mxu0 0.0
        %1381 = vmatpush.xpose.msra.mxu0 0.0
        %1382 = vmatpush.xpose.msra.mxu0 0.0
        %1383 = vmatpush.xpose.msra.mxu0 0.0
        %1384 = vmatpush.xpose.msra.mxu0 0.0
        %1385 = vmatpush.xpose.msra.mxu0 0.0
        %1386 = vmatpush.xpose.msra.mxu0 0.0
        %1387 = vmatpush.xpose.msra.mxu0 0.0
        %1388 = vmatpush.xpose.msra.mxu0 %v1371
        %1389 = vmatmul.f32.gmra.mxu0 %v1368
        %v1390 = vpop.f32.mrf.mxu0
        %v1391 = vadd.f32 0.0, %v1390
        %1392 = vdwg.mxu0
        %v1394 = vsel %vm799, %v1011, 0
        %v1397 = vsel %vm799, %v1027, 0
        %1399 = vmatpush.xpose.msra.mxu0 0.0
        %1400 = vmatpush.xpose.msra.mxu0 0.0
        %1401 = vmatpush.xpose.msra.mxu0 0.0
        %1402 = vmatpush.xpose.msra.mxu0 0.0
        %1403 = vmatpush.xpose.msra.mxu0 0.0
        %1404 = vmatpush.xpose.msra.mxu0 0.0
        %1405 = vmatpush.xpose.msra.mxu0 0.0
        %1406 = vmatpush.xpose.msra.mxu0 0.0
        %1407 = vmatpush.xpose.msra.mxu0 0.0
        %1408 = vmatpush.xpose.msra.mxu0 0.0
        %1409 = vmatpush.xpose.msra.mxu0 0.0
        %1410 = vmatpush.xpose.msra.mxu0 0.0
        %1411 = vmatpush.xpose.msra.mxu0 0.0
        %1412 = vmatpush.xpose.msra.mxu0 0.0
        %1413 = vmatpush.xpose.msra.mxu0 0.0
        %1414 = vmatpush.xpose.msra.mxu0 %v1397
        %1415 = vmatmul.f32.gmra.mxu0 %v1394
        %v1416 = vpop.f32.mrf.mxu0
        %v1417 = vadd.f32 0.0, %v1416
        %1418 = vdwg.mxu0
        %v1420 = vsel %vm799, %v1012, 0
        %v1423 = vsel %vm799, %v1028, 0
        %1425 = vmatpush.xpose.msra.mxu0 0.0
        %1426 = vmatpush.xpose.msra.mxu0 0.0
        %1427 = vmatpush.xpose.msra.mxu0 0.0
        %1428 = vmatpush.xpose.msra.mxu0 0.0
        %1429 = vmatpush.xpose.msra.mxu0 0.0
        %1430 = vmatpush.xpose.msra.mxu0 0.0
        %1431 = vmatpush.xpose.msra.mxu0 0.0
        %1432 = vmatpush.xpose.msra.mxu0 0.0
        %1433 = vmatpush.xpose.msra.mxu0 0.0
        %1434 = vmatpush.xpose.msra.mxu0 0.0
        %1435 = vmatpush.xpose.msra.mxu0 0.0
        %1436 = vmatpush.xpose.msra.mxu0 0.0
        %1437 = vmatpush.xpose.msra.mxu0 0.0
        %1438 = vmatpush.xpose.msra.mxu0 0.0
        %1439 = vmatpush.xpose.msra.mxu0 0.0
        %1440 = vmatpush.xpose.msra.mxu0 %v1423
        %1441 = vmatmul.f32.gmra.mxu0 %v1420
        %v1442 = vpop.f32.mrf.mxu0
        %v1443 = vadd.f32 0.0, %v1442
        %1444 = vdwg.mxu0
        %v1445 = vmul.f32 %v1053, 0.35355338
        %v1446 = vmul.f32 %v1079, 0.35355338
        %v1447 = vmul.f32 %v1105, 0.35355338
        %v1448 = vmul.f32 %v1131, 0.35355338
        %v1449 = vmul.f32 %v1157, 0.35355338
        %v1450 = vmul.f32 %v1183, 0.35355338
        %v1451 = vmul.f32 %v1209, 0.35355338
        %v1452 = vmul.f32 %v1235, 0.35355338
        %v1453 = vmul.f32 %v1261, 0.35355338
        %v1454 = vmul.f32 %v1287, 0.35355338
        %v1455 = vmul.f32 %v1313, 0.35355338
        %v1456 = vmul.f32 %v1339, 0.35355338
        %v1457 = vmul.f32 %v1365, 0.35355338
        %v1458 = vmul.f32 %v1391, 0.35355338
        %v1459 = vmul.f32 %v1417, 0.35355338
        %v1460 = vmul.f32 %v1443, 0.35355338
        %v1461 = vld [vmem:[#allocation6] sm:$0x1]
        %v1462 = vld [vmem:[#allocation6 + $0x1] sm:$0x1]
        %v1463 = vld [vmem:[#allocation6 + $0x2] sm:$0x1]
        %v1464 = vld [vmem:[#allocation6 + $0x3] sm:$0x1]
        %v1465 = vld [vmem:[#allocation6 + $0x4] sm:$0x1]
        %v1466 = vld [vmem:[#allocation6 + $0x5] sm:$0x1]
        %v1467 = vld [vmem:[#allocation6 + $0x6] sm:$0x1]
        %v1468 = vld [vmem:[#allocation6 + $0x7] sm:$0x1]
        %v1469 = vld [vmem:[#allocation6 + $0x8] sm:$0x1]
        %v1470 = vld [vmem:[#allocation6 + $0x9] sm:$0x1]
        %v1471 = vld [vmem:[#allocation6 + $0xa] sm:$0x1]
        %v1472 = vld [vmem:[#allocation6 + $0xb] sm:$0x1]
        %v1473 = vld [vmem:[#allocation6 + $0xc] sm:$0x1]
        %v1474 = vld [vmem:[#allocation6 + $0xd] sm:$0x1]
        %v1475 = vld [vmem:[#allocation6 + $0xe] sm:$0x1]
        %v1476 = vld [vmem:[#allocation6 + $0xf] sm:$0x1]
        %v1493 = vperm.slane %v1461, 0
        %v1494 = vperm.slane %v1462, 0
        %v1495 = vperm.slane %v1463, 0
        %v1496 = vperm.slane %v1464, 0
        %v1497 = vperm.slane %v1465, 0
        %v1498 = vperm.slane %v1466, 0
        %v1499 = vperm.slane %v1467, 0
        %v1500 = vperm.slane %v1468, 0
        %v1501 = vperm.slane %v1469, 0
        %v1502 = vperm.slane %v1470, 0
        %v1503 = vperm.slane %v1471, 0
        %v1504 = vperm.slane %v1472, 0
        %v1505 = vperm.slane %v1473, 0
        %v1506 = vperm.slane %v1474, 0
        %v1507 = vperm.slane %v1475, 0
        %v1508 = vperm.slane %v1476, 0
        %v1525 = vadd.f32 %v1445, %v1493
        %v1526 = vadd.f32 %v1446, %v1494
        %v1527 = vadd.f32 %v1447, %v1495
        %v1528 = vadd.f32 %v1448, %v1496
        %v1529 = vadd.f32 %v1449, %v1497
        %v1530 = vadd.f32 %v1450, %v1498
        %v1531 = vadd.f32 %v1451, %v1499
        %v1532 = vadd.f32 %v1452, %v1500
        %v1533 = vadd.f32 %v1453, %v1501
        %v1534 = vadd.f32 %v1454, %v1502
        %v1535 = vadd.f32 %v1455, %v1503
        %v1536 = vadd.f32 %v1456, %v1504
        %v1537 = vadd.f32 %v1457, %v1505
        %v1538 = vadd.f32 %v1458, %v1506
        %v1539 = vadd.f32 %v1459, %v1507
        %v1540 = vadd.f32 %v1460, %v1508
        %v1541 = vsel %vm799, %v1525, -inf
        %1542 = vmax.xlane.f32.xlu0 %v1541
        %v1543 = vpop.xlane.xlu0 %1542
        %v1544 = vsel %vm799, %v1526, -inf
        %1545 = vmax.xlane.f32.xlu0 %v1544
        %v1546 = vpop.xlane.xlu0 %1545
        %v1547 = vsel %vm799, %v1527, -inf
        %1548 = vmax.xlane.f32.xlu0 %v1547
        %v1549 = vpop.xlane.xlu0 %1548
        %v1550 = vsel %vm799, %v1528, -inf
        %1551 = vmax.xlane.f32.xlu0 %v1550
        %v1552 = vpop.xlane.xlu0 %1551
        %v1553 = vsel %vm799, %v1529, -inf
        %1554 = vmax.xlane.f32.xlu0 %v1553
        %v1555 = vpop.xlane.xlu0 %1554
        %v1556 = vsel %vm799, %v1530, -inf
        %1557 = vmax.xlane.f32.xlu0 %v1556
        %v1558 = vpop.xlane.xlu0 %1557
        %v1559 = vsel %vm799, %v1531, -inf
        %1560 = vmax.xlane.f32.xlu0 %v1559
        %v1561 = vpop.xlane.xlu0 %1560
        %v1562 = vsel %vm799, %v1532, -inf
        %1563 = vmax.xlane.f32.xlu0 %v1562
        %v1564 = vpop.xlane.xlu0 %1563
        %v1565 = vsel %vm799, %v1533, -inf
        %1566 = vmax.xlane.f32.xlu0 %v1565
        %v1567 = vpop.xlane.xlu0 %1566
        %v1568 = vsel %vm799, %v1534, -inf
        %1569 = vmax.xlane.f32.xlu0 %v1568
        %v1570 = vpop.xlane.xlu0 %1569
        %v1571 = vsel %vm799, %v1535, -inf
        %1572 = vmax.xlane.f32.xlu0 %v1571
        %v1573 = vpop.xlane.xlu0 %1572
        %v1574 = vsel %vm799, %v1536, -inf
        %1575 = vmax.xlane.f32.xlu0 %v1574
        %v1576 = vpop.xlane.xlu0 %1575
        %v1577 = vsel %vm799, %v1537, -inf
        %1578 = vmax.xlane.f32.xlu0 %v1577
        %v1579 = vpop.xlane.xlu0 %1578
        %v1580 = vsel %vm799, %v1538, -inf
        %1581 = vmax.xlane.f32.xlu0 %v1580
        %v1582 = vpop.xlane.xlu0 %1581
        %v1583 = vsel %vm799, %v1539, -inf
        %1584 = vmax.xlane.f32.xlu0 %v1583
        %v1585 = vpop.xlane.xlu0 %1584
        %v1586 = vsel %vm799, %v1540, -inf
        %1587 = vmax.xlane.f32.xlu0 %v1586
        %v1588 = vpop.xlane.xlu0 %1587
        %v1589 = vsub.f32 %v1525, %v1543
        %v1590 = vsub.f32 %v1526, %v1546
        %v1591 = vsub.f32 %v1527, %v1549
        %v1592 = vsub.f32 %v1528, %v1552
        %v1593 = vsub.f32 %v1529, %v1555
        %v1594 = vsub.f32 %v1530, %v1558
        %v1595 = vsub.f32 %v1531, %v1561
        %v1596 = vsub.f32 %v1532, %v1564
        %v1597 = vsub.f32 %v1533, %v1567
        %v1598 = vsub.f32 %v1534, %v1570
        %v1599 = vsub.f32 %v1535, %v1573
        %v1600 = vsub.f32 %v1536, %v1576
        %v1601 = vsub.f32 %v1537, %v1579
        %v1602 = vsub.f32 %v1538, %v1582
        %v1603 = vsub.f32 %v1539, %v1585
        %v1604 = vsub.f32 %v1540, %v1588
        %v1605 = vmul.f32 %v1589, 1.442695
        %v1606 = vpow.pop %v1605
        %v1607 = vmul.f32 %v1590, 1.442695
        %v1608 = vpow.pop %v1607
        %v1609 = vmul.f32 %v1591, 1.442695
        %v1610 = vpow.pop %v1609
        %v1611 = vmul.f32 %v1592, 1.442695
        %v1612 = vpow.pop %v1611
        %v1613 = vmul.f32 %v1593, 1.442695
        %v1614 = vpow.pop %v1613
        %v1615 = vmul.f32 %v1594, 1.442695
        %v1616 = vpow.pop %v1615
        %v1617 = vmul.f32 %v1595, 1.442695
        %v1618 = vpow.pop %v1617
        %v1619 = vmul.f32 %v1596, 1.442695
        %v1620 = vpow.pop %v1619
        %v1621 = vmul.f32 %v1597, 1.442695
        %v1622 = vpow.pop %v1621
        %v1623 = vmul.f32 %v1598, 1.442695
        %v1624 = vpow.pop %v1623
        %v1625 = vmul.f32 %v1599, 1.442695
        %v1626 = vpow.pop %v1625
        %v1627 = vmul.f32 %v1600, 1.442695
        %v1628 = vpow.pop %v1627
        %v1629 = vmul.f32 %v1601, 1.442695
        %v1630 = vpow.pop %v1629
        %v1631 = vmul.f32 %v1602, 1.442695
        %v1632 = vpow.pop %v1631
        %v1633 = vmul.f32 %v1603, 1.442695
        %v1634 = vpow.pop %v1633
        %v1635 = vmul.f32 %v1604, 1.442695
        %v1636 = vpow.pop %v1635
        %v1637 = vsel %vm799, %v1606, 0.0
        %1638 = vadd.xlane.f32.xlu0 %v1637
        %v1639 = vpop.xlane.xlu0 %1638
        %v1640 = vsel %vm799, %v1608, 0.0
        %1641 = vadd.xlane.f32.xlu0 %v1640
        %v1642 = vpop.xlane.xlu0 %1641
        %v1643 = vsel %vm799, %v1610, 0.0
        %1644 = vadd.xlane.f32.xlu0 %v1643
        %v1645 = vpop.xlane.xlu0 %1644
        %v1646 = vsel %vm799, %v1612, 0.0
        %1647 = vadd.xlane.f32.xlu0 %v1646
        %v1648 = vpop.xlane.xlu0 %1647
        %v1649 = vsel %vm799, %v1614, 0.0
        %1650 = vadd.xlane.f32.xlu0 %v1649
        %v1651 = vpop.xlane.xlu0 %1650
        %v1652 = vsel %vm799, %v1616, 0.0
        %1653 = vadd.xlane.f32.xlu0 %v1652
        %v1654 = vpop.xlane.xlu0 %1653
        %v1655 = vsel %vm799, %v1618, 0.0
        %1656 = vadd.xlane.f32.xlu0 %v1655
        %v1657 = vpop.xlane.xlu0 %1656
        %v1658 = vsel %vm799, %v1620, 0.0
        %1659 = vadd.xlane.f32.xlu0 %v1658
        %v1660 = vpop.xlane.xlu0 %1659
        %v1661 = vsel %vm799, %v1622, 0.0
        %1662 = vadd.xlane.f32.xlu0 %v1661
        %v1663 = vpop.xlane.xlu0 %1662
        %v1664 = vsel %vm799, %v1624, 0.0
        %1665 = vadd.xlane.f32.xlu0 %v1664
        %v1666 = vpop.xlane.xlu0 %1665
        %v1667 = vsel %vm799, %v1626, 0.0
        %1668 = vadd.xlane.f32.xlu0 %v1667
        %v1669 = vpop.xlane.xlu0 %1668
        %v1670 = vsel %vm799, %v1628, 0.0
        %1671 = vadd.xlane.f32.xlu0 %v1670
        %v1672 = vpop.xlane.xlu0 %1671
        %v1673 = vsel %vm799, %v1630, 0.0
        %1674 = vadd.xlane.f32.xlu0 %v1673
        %v1675 = vpop.xlane.xlu0 %1674
        %v1676 = vsel %vm799, %v1632, 0.0
        %1677 = vadd.xlane.f32.xlu0 %v1676
        %v1678 = vpop.xlane.xlu0 %1677
        %v1679 = vsel %vm799, %v1634, 0.0
        %1680 = vadd.xlane.f32.xlu0 %v1679
        %v1681 = vpop.xlane.xlu0 %1680
        %v1682 = vsel %vm799, %v1636, 0.0
        %1683 = vadd.xlane.f32.xlu0 %v1682
        %v1684 = vpop.xlane.xlu0 %1683
        %v1685 = vrcp.pop %v1639
        %v1686 = vmul.f32 %v1639, %v1685
        %v1687 = vsub.f32 1.0, %v1686
        %v1688 = vmul.f32 %v1685, %v1687
        %v1689 = vadd.f32 %v1685, %v1688
        %vm1690 = vweird.f32 %v1639
        %vm1691 = vweird.f32 %v1685
        %vm1692 = vmor %vm1690, %vm1691
        %v1693 = vsel %vm1692, %v1685, %v1689
        %v1694 = vand.u32 2147483647, %v1639
        %vm1695 = vcmp.eq.f32.partialorder %v1694, 8.507059e+37
        %v1696 = vand.u32 %v1639, 2147483648
        %v1697 = vor.u32 1.1754944e-38, %v1696
        %v1698 = vsel %vm1695, %v1697, %v1693
        %v1699 = vmul.f32 1.0, %v1698
        %v1700 = vrcp.pop %v1642
        %v1701 = vmul.f32 %v1642, %v1700
        %v1702 = vsub.f32 1.0, %v1701
        %v1703 = vmul.f32 %v1700, %v1702
        %v1704 = vadd.f32 %v1700, %v1703
        %vm1705 = vweird.f32 %v1642
        %vm1706 = vweird.f32 %v1700
        %vm1707 = vmor %vm1705, %vm1706
        %v1708 = vsel %vm1707, %v1700, %v1704
        %v1709 = vand.u32 2147483647, %v1642
        %vm1710 = vcmp.eq.f32.partialorder %v1709, 8.507059e+37
        %v1711 = vand.u32 %v1642, 2147483648
        %v1712 = vor.u32 1.1754944e-38, %v1711
        %v1713 = vsel %vm1710, %v1712, %v1708
        %v1714 = vmul.f32 1.0, %v1713
        %v1715 = vrcp.pop %v1645
        %v1716 = vmul.f32 %v1645, %v1715
        %v1717 = vsub.f32 1.0, %v1716
        %v1718 = vmul.f32 %v1715, %v1717
        %v1719 = vadd.f32 %v1715, %v1718
        %vm1720 = vweird.f32 %v1645
        %vm1721 = vweird.f32 %v1715
        %vm1722 = vmor %vm1720, %vm1721
        %v1723 = vsel %vm1722, %v1715, %v1719
        %v1724 = vand.u32 2147483647, %v1645
        %vm1725 = vcmp.eq.f32.partialorder %v1724, 8.507059e+37
        %v1726 = vand.u32 %v1645, 2147483648
        %v1727 = vor.u32 1.1754944e-38, %v1726
        %v1728 = vsel %vm1725, %v1727, %v1723
        %v1729 = vmul.f32 1.0, %v1728
        %v1730 = vrcp.pop %v1648
        %v1731 = vmul.f32 %v1648, %v1730
        %v1732 = vsub.f32 1.0, %v1731
        %v1733 = vmul.f32 %v1730, %v1732
        %v1734 = vadd.f32 %v1730, %v1733
        %vm1735 = vweird.f32 %v1648
        %vm1736 = vweird.f32 %v1730
        %vm1737 = vmor %vm1735, %vm1736
        %v1738 = vsel %vm1737, %v1730, %v1734
        %v1739 = vand.u32 2147483647, %v1648
        %vm1740 = vcmp.eq.f32.partialorder %v1739, 8.507059e+37
        %v1741 = vand.u32 %v1648, 2147483648
        %v1742 = vor.u32 1.1754944e-38, %v1741
        %v1743 = vsel %vm1740, %v1742, %v1738
        %v1744 = vmul.f32 1.0, %v1743
        %v1745 = vrcp.pop %v1651
        %v1746 = vmul.f32 %v1651, %v1745
        %v1747 = vsub.f32 1.0, %v1746
        %v1748 = vmul.f32 %v1745, %v1747
        %v1749 = vadd.f32 %v1745, %v1748
        %vm1750 = vweird.f32 %v1651
        %vm1751 = vweird.f32 %v1745
        %vm1752 = vmor %vm1750, %vm1751
        %v1753 = vsel %vm1752, %v1745, %v1749
        %v1754 = vand.u32 2147483647, %v1651
        %vm1755 = vcmp.eq.f32.partialorder %v1754, 8.507059e+37
        %v1756 = vand.u32 %v1651, 2147483648
        %v1757 = vor.u32 1.1754944e-38, %v1756
        %v1758 = vsel %vm1755, %v1757, %v1753
        %v1759 = vmul.f32 1.0, %v1758
        %v1760 = vrcp.pop %v1654
        %v1761 = vmul.f32 %v1654, %v1760
        %v1762 = vsub.f32 1.0, %v1761
        %v1763 = vmul.f32 %v1760, %v1762
        %v1764 = vadd.f32 %v1760, %v1763
        %vm1765 = vweird.f32 %v1654
        %vm1766 = vweird.f32 %v1760
        %vm1767 = vmor %vm1765, %vm1766
        %v1768 = vsel %vm1767, %v1760, %v1764
        %v1769 = vand.u32 2147483647, %v1654
        %vm1770 = vcmp.eq.f32.partialorder %v1769, 8.507059e+37
        %v1771 = vand.u32 %v1654, 2147483648
        %v1772 = vor.u32 1.1754944e-38, %v1771
        %v1773 = vsel %vm1770, %v1772, %v1768
        %v1774 = vmul.f32 1.0, %v1773
        %v1775 = vrcp.pop %v1657
        %v1776 = vmul.f32 %v1657, %v1775
        %v1777 = vsub.f32 1.0, %v1776
        %v1778 = vmul.f32 %v1775, %v1777
        %v1779 = vadd.f32 %v1775, %v1778
        %vm1780 = vweird.f32 %v1657
        %vm1781 = vweird.f32 %v1775
        %vm1782 = vmor %vm1780, %vm1781
        %v1783 = vsel %vm1782, %v1775, %v1779
        %v1784 = vand.u32 2147483647, %v1657
        %vm1785 = vcmp.eq.f32.partialorder %v1784, 8.507059e+37
        %v1786 = vand.u32 %v1657, 2147483648
        %v1787 = vor.u32 1.1754944e-38, %v1786
        %v1788 = vsel %vm1785, %v1787, %v1783
        %v1789 = vmul.f32 1.0, %v1788
        %v1790 = vrcp.pop %v1660
        %v1791 = vmul.f32 %v1660, %v1790
        %v1792 = vsub.f32 1.0, %v1791
        %v1793 = vmul.f32 %v1790, %v1792
        %v1794 = vadd.f32 %v1790, %v1793
        %vm1795 = vweird.f32 %v1660
        %vm1796 = vweird.f32 %v1790
        %vm1797 = vmor %vm1795, %vm1796
        %v1798 = vsel %vm1797, %v1790, %v1794
        %v1799 = vand.u32 2147483647, %v1660
        %vm1800 = vcmp.eq.f32.partialorder %v1799, 8.507059e+37
        %v1801 = vand.u32 %v1660, 2147483648
        %v1802 = vor.u32 1.1754944e-38, %v1801
        %v1803 = vsel %vm1800, %v1802, %v1798
        %v1804 = vmul.f32 1.0, %v1803
        %v1805 = vrcp.pop %v1663
        %v1806 = vmul.f32 %v1663, %v1805
        %v1807 = vsub.f32 1.0, %v1806
        %v1808 = vmul.f32 %v1805, %v1807
        %v1809 = vadd.f32 %v1805, %v1808
        %vm1810 = vweird.f32 %v1663
        %vm1811 = vweird.f32 %v1805
        %vm1812 = vmor %vm1810, %vm1811
        %v1813 = vsel %vm1812, %v1805, %v1809
        %v1814 = vand.u32 2147483647, %v1663
        %vm1815 = vcmp.eq.f32.partialorder %v1814, 8.507059e+37
        %v1816 = vand.u32 %v1663, 2147483648
        %v1817 = vor.u32 1.1754944e-38, %v1816
        %v1818 = vsel %vm1815, %v1817, %v1813
        %v1819 = vmul.f32 1.0, %v1818
        %v1820 = vrcp.pop %v1666
        %v1821 = vmul.f32 %v1666, %v1820
        %v1822 = vsub.f32 1.0, %v1821
        %v1823 = vmul.f32 %v1820, %v1822
        %v1824 = vadd.f32 %v1820, %v1823
        %vm1825 = vweird.f32 %v1666
        %vm1826 = vweird.f32 %v1820
        %vm1827 = vmor %vm1825, %vm1826
        %v1828 = vsel %vm1827, %v1820, %v1824
        %v1829 = vand.u32 2147483647, %v1666
        %vm1830 = vcmp.eq.f32.partialorder %v1829, 8.507059e+37
        %v1831 = vand.u32 %v1666, 2147483648
        %v1832 = vor.u32 1.1754944e-38, %v1831
        %v1833 = vsel %vm1830, %v1832, %v1828
        %v1834 = vmul.f32 1.0, %v1833
        %v1835 = vrcp.pop %v1669
        %v1836 = vmul.f32 %v1669, %v1835
        %v1837 = vsub.f32 1.0, %v1836
        %v1838 = vmul.f32 %v1835, %v1837
        %v1839 = vadd.f32 %v1835, %v1838
        %vm1840 = vweird.f32 %v1669
        %vm1841 = vweird.f32 %v1835
        %vm1842 = vmor %vm1840, %vm1841
        %v1843 = vsel %vm1842, %v1835, %v1839
        %v1844 = vand.u32 2147483647, %v1669
        %vm1845 = vcmp.eq.f32.partialorder %v1844, 8.507059e+37
        %v1846 = vand.u32 %v1669, 2147483648
        %v1847 = vor.u32 1.1754944e-38, %v1846
        %v1848 = vsel %vm1845, %v1847, %v1843
        %v1849 = vmul.f32 1.0, %v1848
        %v1850 = vrcp.pop %v1672
        %v1851 = vmul.f32 %v1672, %v1850
        %v1852 = vsub.f32 1.0, %v1851
        %v1853 = vmul.f32 %v1850, %v1852
        %v1854 = vadd.f32 %v1850, %v1853
        %vm1855 = vweird.f32 %v1672
        %vm1856 = vweird.f32 %v1850
        %vm1857 = vmor %vm1855, %vm1856
        %v1858 = vsel %vm1857, %v1850, %v1854
        %v1859 = vand.u32 2147483647, %v1672
        %vm1860 = vcmp.eq.f32.partialorder %v1859, 8.507059e+37
        %v1861 = vand.u32 %v1672, 2147483648
        %v1862 = vor.u32 1.1754944e-38, %v1861
        %v1863 = vsel %vm1860, %v1862, %v1858
        %v1864 = vmul.f32 1.0, %v1863
        %v1865 = vrcp.pop %v1675
        %v1866 = vmul.f32 %v1675, %v1865
        %v1867 = vsub.f32 1.0, %v1866
        %v1868 = vmul.f32 %v1865, %v1867
        %v1869 = vadd.f32 %v1865, %v1868
        %vm1870 = vweird.f32 %v1675
        %vm1871 = vweird.f32 %v1865
        %vm1872 = vmor %vm1870, %vm1871
        %v1873 = vsel %vm1872, %v1865, %v1869
        %v1874 = vand.u32 2147483647, %v1675
        %vm1875 = vcmp.eq.f32.partialorder %v1874, 8.507059e+37
        %v1876 = vand.u32 %v1675, 2147483648
        %v1877 = vor.u32 1.1754944e-38, %v1876
        %v1878 = vsel %vm1875, %v1877, %v1873
        %v1879 = vmul.f32 1.0, %v1878
        %v1880 = vrcp.pop %v1678
        %v1881 = vmul.f32 %v1678, %v1880
        %v1882 = vsub.f32 1.0, %v1881
        %v1883 = vmul.f32 %v1880, %v1882
        %v1884 = vadd.f32 %v1880, %v1883
        %vm1885 = vweird.f32 %v1678
        %vm1886 = vweird.f32 %v1880
        %vm1887 = vmor %vm1885, %vm1886
        %v1888 = vsel %vm1887, %v1880, %v1884
        %v1889 = vand.u32 2147483647, %v1678
        %vm1890 = vcmp.eq.f32.partialorder %v1889, 8.507059e+37
        %v1891 = vand.u32 %v1678, 2147483648
        %v1892 = vor.u32 1.1754944e-38, %v1891
        %v1893 = vsel %vm1890, %v1892, %v1888
        %v1894 = vmul.f32 1.0, %v1893
        %v1895 = vrcp.pop %v1681
        %v1896 = vmul.f32 %v1681, %v1895
        %v1897 = vsub.f32 1.0, %v1896
        %v1898 = vmul.f32 %v1895, %v1897
        %v1899 = vadd.f32 %v1895, %v1898
        %vm1900 = vweird.f32 %v1681
        %vm1901 = vweird.f32 %v1895
        %vm1902 = vmor %vm1900, %vm1901
        %v1903 = vsel %vm1902, %v1895, %v1899
        %v1904 = vand.u32 2147483647, %v1681
        %vm1905 = vcmp.eq.f32.partialorder %v1904, 8.507059e+37
        %v1906 = vand.u32 %v1681, 2147483648
        %v1907 = vor.u32 1.1754944e-38, %v1906
        %v1908 = vsel %vm1905, %v1907, %v1903
        %v1909 = vmul.f32 1.0, %v1908
        %v1910 = vrcp.pop %v1684
        %v1911 = vmul.f32 %v1684, %v1910
        %v1912 = vsub.f32 1.0, %v1911
        %v1913 = vmul.f32 %v1910, %v1912
        %v1914 = vadd.f32 %v1910, %v1913
        %vm1915 = vweird.f32 %v1684
        %vm1916 = vweird.f32 %v1910
        %vm1917 = vmor %vm1915, %vm1916
        %v1918 = vsel %vm1917, %v1910, %v1914
        %v1919 = vand.u32 2147483647, %v1684
        %vm1920 = vcmp.eq.f32.partialorder %v1919, 8.507059e+37
        %v1921 = vand.u32 %v1684, 2147483648
        %v1922 = vor.u32 1.1754944e-38, %v1921
        %v1923 = vsel %vm1920, %v1922, %v1918
        %v1924 = vmul.f32 1.0, %v1923
        %v1925 = vmul.f32 %v1606, %v1699
        %v1926 = vmul.f32 %v1608, %v1714
        %v1927 = vmul.f32 %v1610, %v1729
        %v1928 = vmul.f32 %v1612, %v1744
        %v1929 = vmul.f32 %v1614, %v1759
        %v1930 = vmul.f32 %v1616, %v1774
        %v1931 = vmul.f32 %v1618, %v1789
        %v1932 = vmul.f32 %v1620, %v1804
        %v1933 = vmul.f32 %v1622, %v1819
        %v1934 = vmul.f32 %v1624, %v1834
        %v1935 = vmul.f32 %v1626, %v1849
        %v1936 = vmul.f32 %v1628, %v1864
        %v1937 = vmul.f32 %v1630, %v1879
        %v1938 = vmul.f32 %v1632, %v1894
        %v1939 = vmul.f32 %v1634, %v1909
        %v1940 = vmul.f32 %v1636, %v1924
        %v1941 = vld [vmem:[#allocation4] sm:$0xff]
        %v1942 = vld [vmem:[#allocation4 + $0x8] sm:$0xff]
        %v1943 = vld [vmem:[#allocation4 + $0x10] sm:$0xff]
        %v1944 = vld [vmem:[#allocation4 + $0x18] sm:$0xff]
        %v1945 = vld [vmem:[#allocation4 + $0x20] sm:$0xff]
        %v1946 = vld [vmem:[#allocation4 + $0x28] sm:$0xff]
        %v1947 = vld [vmem:[#allocation4 + $0x30] sm:$0xff]
        %v1948 = vld [vmem:[#allocation4 + $0x38] sm:$0xff]
        %v1949 = vld [vmem:[#allocation4 + $0x40] sm:$0xff]
        %v1950 = vld [vmem:[#allocation4 + $0x48] sm:$0xff]
        %v1951 = vld [vmem:[#allocation4 + $0x50] sm:$0xff]
        %v1952 = vld [vmem:[#allocation4 + $0x58] sm:$0xff]
        %v1953 = vld [vmem:[#allocation4 + $0x60] sm:$0xff]
        %v1954 = vld [vmem:[#allocation4 + $0x68] sm:$0xff]
        %v1955 = vld [vmem:[#allocation4 + $0x70] sm:$0xff]
        %v1956 = vld [vmem:[#allocation4 + $0x78] sm:$0xff]
        %v1958 = vsel %vm799, %v1925, 0
        %1960 = vmatpush.msra.mxu0 0.0
        %1961 = vmatpush.msra.mxu0 0.0
        %1962 = vmatpush.msra.mxu0 0.0
        %1963 = vmatpush.msra.mxu0 0.0
        %1964 = vmatpush.msra.mxu0 0.0
        %1965 = vmatpush.msra.mxu0 0.0
        %1966 = vmatpush.msra.mxu0 0.0
        %1967 = vmatpush.msra.mxu0 0.0
        %1968 = vmatpush.msra.mxu0 0.0
        %1969 = vmatpush.msra.mxu0 0.0
        %1970 = vmatpush.msra.mxu0 0.0
        %1971 = vmatpush.msra.mxu0 0.0
        %1972 = vmatpush.msra.mxu0 0.0
        %1973 = vmatpush.msra.mxu0 0.0
        %1974 = vmatpush.msra.mxu0 0.0
        %1975 = vmatpush.msra.mxu0 %v1941
        %1976 = vmatmul.f32.gmra.mxu0 %v1958
        %v1977 = vpop.f32.mrf.mxu0
        %v1978 = vadd.f32 0.0, %v1977
        %1979 = vdwg.mxu0
        %v1981 = vsel %vm799, %v1926, 0
        %1983 = vmatpush.msra.mxu0 0.0
        %1984 = vmatpush.msra.mxu0 0.0
        %1985 = vmatpush.msra.mxu0 0.0
        %1986 = vmatpush.msra.mxu0 0.0
        %1987 = vmatpush.msra.mxu0 0.0
        %1988 = vmatpush.msra.mxu0 0.0
        %1989 = vmatpush.msra.mxu0 0.0
        %1990 = vmatpush.msra.mxu0 0.0
        %1991 = vmatpush.msra.mxu0 0.0
        %1992 = vmatpush.msra.mxu0 0.0
        %1993 = vmatpush.msra.mxu0 0.0
        %1994 = vmatpush.msra.mxu0 0.0
        %1995 = vmatpush.msra.mxu0 0.0
        %1996 = vmatpush.msra.mxu0 0.0
        %1997 = vmatpush.msra.mxu0 0.0
        %1998 = vmatpush.msra.mxu0 %v1942
        %1999 = vmatmul.f32.gmra.mxu0 %v1981
        %v2000 = vpop.f32.mrf.mxu0
        %v2001 = vadd.f32 0.0, %v2000
        %2002 = vdwg.mxu0
        %v2004 = vsel %vm799, %v1927, 0
        %2006 = vmatpush.msra.mxu0 0.0
        %2007 = vmatpush.msra.mxu0 0.0
        %2008 = vmatpush.msra.mxu0 0.0
        %2009 = vmatpush.msra.mxu0 0.0
        %2010 = vmatpush.msra.mxu0 0.0
        %2011 = vmatpush.msra.mxu0 0.0
        %2012 = vmatpush.msra.mxu0 0.0
        %2013 = vmatpush.msra.mxu0 0.0
        %2014 = vmatpush.msra.mxu0 0.0
        %2015 = vmatpush.msra.mxu0 0.0
        %2016 = vmatpush.msra.mxu0 0.0
        %2017 = vmatpush.msra.mxu0 0.0
        %2018 = vmatpush.msra.mxu0 0.0
        %2019 = vmatpush.msra.mxu0 0.0
        %2020 = vmatpush.msra.mxu0 0.0
        %2021 = vmatpush.msra.mxu0 %v1943
        %2022 = vmatmul.f32.gmra.mxu0 %v2004
        %v2023 = vpop.f32.mrf.mxu0
        %v2024 = vadd.f32 0.0, %v2023
        %2025 = vdwg.mxu0
        %v2027 = vsel %vm799, %v1928, 0
        %2029 = vmatpush.msra.mxu0 0.0
        %2030 = vmatpush.msra.mxu0 0.0
        %2031 = vmatpush.msra.mxu0 0.0
        %2032 = vmatpush.msra.mxu0 0.0
        %2033 = vmatpush.msra.mxu0 0.0
        %2034 = vmatpush.msra.mxu0 0.0
        %2035 = vmatpush.msra.mxu0 0.0
        %2036 = vmatpush.msra.mxu0 0.0
        %2037 = vmatpush.msra.mxu0 0.0
        %2038 = vmatpush.msra.mxu0 0.0
        %2039 = vmatpush.msra.mxu0 0.0
        %2040 = vmatpush.msra.mxu0 0.0
        %2041 = vmatpush.msra.mxu0 0.0
        %2042 = vmatpush.msra.mxu0 0.0
        %2043 = vmatpush.msra.mxu0 0.0
        %2044 = vmatpush.msra.mxu0 %v1944
        %2045 = vmatmul.f32.gmra.mxu0 %v2027
        %v2046 = vpop.f32.mrf.mxu0
        %v2047 = vadd.f32 0.0, %v2046
        %2048 = vdwg.mxu0
        %v2050 = vsel %vm799, %v1929, 0
        %2052 = vmatpush.msra.mxu0 0.0
        %2053 = vmatpush.msra.mxu0 0.0
        %2054 = vmatpush.msra.mxu0 0.0
        %2055 = vmatpush.msra.mxu0 0.0
        %2056 = vmatpush.msra.mxu0 0.0
        %2057 = vmatpush.msra.mxu0 0.0
        %2058 = vmatpush.msra.mxu0 0.0
        %2059 = vmatpush.msra.mxu0 0.0
        %2060 = vmatpush.msra.mxu0 0.0
        %2061 = vmatpush.msra.mxu0 0.0
        %2062 = vmatpush.msra.mxu0 0.0
        %2063 = vmatpush.msra.mxu0 0.0
        %2064 = vmatpush.msra.mxu0 0.0
        %2065 = vmatpush.msra.mxu0 0.0
        %2066 = vmatpush.msra.mxu0 0.0
        %2067 = vmatpush.msra.mxu0 %v1945
        %2068 = vmatmul.f32.gmra.mxu0 %v2050
        %v2069 = vpop.f32.mrf.mxu0
        %v2070 = vadd.f32 0.0, %v2069
        %2071 = vdwg.mxu0
        %v2073 = vsel %vm799, %v1930, 0
        %2075 = vmatpush.msra.mxu0 0.0
        %2076 = vmatpush.msra.mxu0 0.0
        %2077 = vmatpush.msra.mxu0 0.0
        %2078 = vmatpush.msra.mxu0 0.0
        %2079 = vmatpush.msra.mxu0 0.0
        %2080 = vmatpush.msra.mxu0 0.0
        %2081 = vmatpush.msra.mxu0 0.0
        %2082 = vmatpush.msra.mxu0 0.0
        %2083 = vmatpush.msra.mxu0 0.0
        %2084 = vmatpush.msra.mxu0 0.0
        %2085 = vmatpush.msra.mxu0 0.0
        %2086 = vmatpush.msra.mxu0 0.0
        %2087 = vmatpush.msra.mxu0 0.0
        %2088 = vmatpush.msra.mxu0 0.0
        %2089 = vmatpush.msra.mxu0 0.0
        %2090 = vmatpush.msra.mxu0 %v1946
        %2091 = vmatmul.f32.gmra.mxu0 %v2073
        %v2092 = vpop.f32.mrf.mxu0
        %v2093 = vadd.f32 0.0, %v2092
        %2094 = vdwg.mxu0
        %v2096 = vsel %vm799, %v1931, 0
        %2098 = vmatpush.msra.mxu0 0.0
        %2099 = vmatpush.msra.mxu0 0.0
        %2100 = vmatpush.msra.mxu0 0.0
        %2101 = vmatpush.msra.mxu0 0.0
        %2102 = vmatpush.msra.mxu0 0.0
        %2103 = vmatpush.msra.mxu0 0.0
        %2104 = vmatpush.msra.mxu0 0.0
        %2105 = vmatpush.msra.mxu0 0.0
        %2106 = vmatpush.msra.mxu0 0.0
        %2107 = vmatpush.msra.mxu0 0.0
        %2108 = vmatpush.msra.mxu0 0.0
        %2109 = vmatpush.msra.mxu0 0.0
        %2110 = vmatpush.msra.mxu0 0.0
        %2111 = vmatpush.msra.mxu0 0.0
        %2112 = vmatpush.msra.mxu0 0.0
        %2113 = vmatpush.msra.mxu0 %v1947
        %2114 = vmatmul.f32.gmra.mxu0 %v2096
        %v2115 = vpop.f32.mrf.mxu0
        %v2116 = vadd.f32 0.0, %v2115
        %2117 = vdwg.mxu0
        %v2119 = vsel %vm799, %v1932, 0
        %2121 = vmatpush.msra.mxu0 0.0
        %2122 = vmatpush.msra.mxu0 0.0
        %2123 = vmatpush.msra.mxu0 0.0
        %2124 = vmatpush.msra.mxu0 0.0
        %2125 = vmatpush.msra.mxu0 0.0
        %2126 = vmatpush.msra.mxu0 0.0
        %2127 = vmatpush.msra.mxu0 0.0
        %2128 = vmatpush.msra.mxu0 0.0
        %2129 = vmatpush.msra.mxu0 0.0
        %2130 = vmatpush.msra.mxu0 0.0
        %2131 = vmatpush.msra.mxu0 0.0
        %2132 = vmatpush.msra.mxu0 0.0
        %2133 = vmatpush.msra.mxu0 0.0
        %2134 = vmatpush.msra.mxu0 0.0
        %2135 = vmatpush.msra.mxu0 0.0
        %2136 = vmatpush.msra.mxu0 %v1948
        %2137 = vmatmul.f32.gmra.mxu0 %v2119
        %v2138 = vpop.f32.mrf.mxu0
        %v2139 = vadd.f32 0.0, %v2138
        %2140 = vdwg.mxu0
        %v2142 = vsel %vm799, %v1933, 0
        %2144 = vmatpush.msra.mxu0 0.0
        %2145 = vmatpush.msra.mxu0 0.0
        %2146 = vmatpush.msra.mxu0 0.0
        %2147 = vmatpush.msra.mxu0 0.0
        %2148 = vmatpush.msra.mxu0 0.0
        %2149 = vmatpush.msra.mxu0 0.0
        %2150 = vmatpush.msra.mxu0 0.0
        %2151 = vmatpush.msra.mxu0 0.0
        %2152 = vmatpush.msra.mxu0 0.0
        %2153 = vmatpush.msra.mxu0 0.0
        %2154 = vmatpush.msra.mxu0 0.0
        %2155 = vmatpush.msra.mxu0 0.0
        %2156 = vmatpush.msra.mxu0 0.0
        %2157 = vmatpush.msra.mxu0 0.0
        %2158 = vmatpush.msra.mxu0 0.0
        %2159 = vmatpush.msra.mxu0 %v1949
        %2160 = vmatmul.f32.gmra.mxu0 %v2142
        %v2161 = vpop.f32.mrf.mxu0
        %v2162 = vadd.f32 0.0, %v2161
        %2163 = vdwg.mxu0
        %v2165 = vsel %vm799, %v1934, 0
        %2167 = vmatpush.msra.mxu0 0.0
        %2168 = vmatpush.msra.mxu0 0.0
        %2169 = vmatpush.msra.mxu0 0.0
        %2170 = vmatpush.msra.mxu0 0.0
        %2171 = vmatpush.msra.mxu0 0.0
        %2172 = vmatpush.msra.mxu0 0.0
        %2173 = vmatpush.msra.mxu0 0.0
        %2174 = vmatpush.msra.mxu0 0.0
        %2175 = vmatpush.msra.mxu0 0.0
        %2176 = vmatpush.msra.mxu0 0.0
        %2177 = vmatpush.msra.mxu0 0.0
        %2178 = vmatpush.msra.mxu0 0.0
        %2179 = vmatpush.msra.mxu0 0.0
        %2180 = vmatpush.msra.mxu0 0.0
        %2181 = vmatpush.msra.mxu0 0.0
        %2182 = vmatpush.msra.mxu0 %v1950
        %2183 = vmatmul.f32.gmra.mxu0 %v2165
        %v2184 = vpop.f32.mrf.mxu0
        %v2185 = vadd.f32 0.0, %v2184
        %2186 = vdwg.mxu0
        %v2188 = vsel %vm799, %v1935, 0
        %2190 = vmatpush.msra.mxu0 0.0
        %2191 = vmatpush.msra.mxu0 0.0
        %2192 = vmatpush.msra.mxu0 0.0
        %2193 = vmatpush.msra.mxu0 0.0
        %2194 = vmatpush.msra.mxu0 0.0
        %2195 = vmatpush.msra.mxu0 0.0
        %2196 = vmatpush.msra.mxu0 0.0
        %2197 = vmatpush.msra.mxu0 0.0
        %2198 = vmatpush.msra.mxu0 0.0
        %2199 = vmatpush.msra.mxu0 0.0
        %2200 = vmatpush.msra.mxu0 0.0
        %2201 = vmatpush.msra.mxu0 0.0
        %2202 = vmatpush.msra.mxu0 0.0
        %2203 = vmatpush.msra.mxu0 0.0
        %2204 = vmatpush.msra.mxu0 0.0
        %2205 = vmatpush.msra.mxu0 %v1951
        %2206 = vmatmul.f32.gmra.mxu0 %v2188
        %v2207 = vpop.f32.mrf.mxu0
        %v2208 = vadd.f32 0.0, %v2207
        %2209 = vdwg.mxu0
        %v2211 = vsel %vm799, %v1936, 0
        %2213 = vmatpush.msra.mxu0 0.0
        %2214 = vmatpush.msra.mxu0 0.0
        %2215 = vmatpush.msra.mxu0 0.0
        %2216 = vmatpush.msra.mxu0 0.0
        %2217 = vmatpush.msra.mxu0 0.0
        %2218 = vmatpush.msra.mxu0 0.0
        %2219 = vmatpush.msra.mxu0 0.0
        %2220 = vmatpush.msra.mxu0 0.0
        %2221 = vmatpush.msra.mxu0 0.0
        %2222 = vmatpush.msra.mxu0 0.0
        %2223 = vmatpush.msra.mxu0 0.0
        %2224 = vmatpush.msra.mxu0 0.0
        %2225 = vmatpush.msra.mxu0 0.0
        %2226 = vmatpush.msra.mxu0 0.0
        %2227 = vmatpush.msra.mxu0 0.0
        %2228 = vmatpush.msra.mxu0 %v1952
        %2229 = vmatmul.f32.gmra.mxu0 %v2211
        %v2230 = vpop.f32.mrf.mxu0
        %v2231 = vadd.f32 0.0, %v2230
        %2232 = vdwg.mxu0
        %v2234 = vsel %vm799, %v1937, 0
        %2236 = vmatpush.msra.mxu0 0.0
        %2237 = vmatpush.msra.mxu0 0.0
        %2238 = vmatpush.msra.mxu0 0.0
        %2239 = vmatpush.msra.mxu0 0.0
        %2240 = vmatpush.msra.mxu0 0.0
        %2241 = vmatpush.msra.mxu0 0.0
        %2242 = vmatpush.msra.mxu0 0.0
        %2243 = vmatpush.msra.mxu0 0.0
        %2244 = vmatpush.msra.mxu0 0.0
        %2245 = vmatpush.msra.mxu0 0.0
        %2246 = vmatpush.msra.mxu0 0.0
        %2247 = vmatpush.msra.mxu0 0.0
        %2248 = vmatpush.msra.mxu0 0.0
        %2249 = vmatpush.msra.mxu0 0.0
        %2250 = vmatpush.msra.mxu0 0.0
        %2251 = vmatpush.msra.mxu0 %v1953
        %2252 = vmatmul.f32.gmra.mxu0 %v2234
        %v2253 = vpop.f32.mrf.mxu0
        %v2254 = vadd.f32 0.0, %v2253
        %2255 = vdwg.mxu0
        %v2257 = vsel %vm799, %v1938, 0
        %2259 = vmatpush.msra.mxu0 0.0
        %2260 = vmatpush.msra.mxu0 0.0
        %2261 = vmatpush.msra.mxu0 0.0
        %2262 = vmatpush.msra.mxu0 0.0
        %2263 = vmatpush.msra.mxu0 0.0
        %2264 = vmatpush.msra.mxu0 0.0
        %2265 = vmatpush.msra.mxu0 0.0
        %2266 = vmatpush.msra.mxu0 0.0
        %2267 = vmatpush.msra.mxu0 0.0
        %2268 = vmatpush.msra.mxu0 0.0
        %2269 = vmatpush.msra.mxu0 0.0
        %2270 = vmatpush.msra.mxu0 0.0
        %2271 = vmatpush.msra.mxu0 0.0
        %2272 = vmatpush.msra.mxu0 0.0
        %2273 = vmatpush.msra.mxu0 0.0
        %2274 = vmatpush.msra.mxu0 %v1954
        %2275 = vmatmul.f32.gmra.mxu0 %v2257
        %v2276 = vpop.f32.mrf.mxu0
        %v2277 = vadd.f32 0.0, %v2276
        %2278 = vdwg.mxu0
        %v2280 = vsel %vm799, %v1939, 0
        %2282 = vmatpush.msra.mxu0 0.0
        %2283 = vmatpush.msra.mxu0 0.0
        %2284 = vmatpush.msra.mxu0 0.0
        %2285 = vmatpush.msra.mxu0 0.0
        %2286 = vmatpush.msra.mxu0 0.0
        %2287 = vmatpush.msra.mxu0 0.0
        %2288 = vmatpush.msra.mxu0 0.0
        %2289 = vmatpush.msra.mxu0 0.0
        %2290 = vmatpush.msra.mxu0 0.0
        %2291 = vmatpush.msra.mxu0 0.0
        %2292 = vmatpush.msra.mxu0 0.0
        %2293 = vmatpush.msra.mxu0 0.0
        %2294 = vmatpush.msra.mxu0 0.0
        %2295 = vmatpush.msra.mxu0 0.0
        %2296 = vmatpush.msra.mxu0 0.0
        %2297 = vmatpush.msra.mxu0 %v1955
        %2298 = vmatmul.f32.gmra.mxu0 %v2280
        %v2299 = vpop.f32.mrf.mxu0
        %v2300 = vadd.f32 0.0, %v2299
        %2301 = vdwg.mxu0
        %v2303 = vsel %vm799, %v1940, 0
        %2305 = vmatpush.msra.mxu0 0.0
        %2306 = vmatpush.msra.mxu0 0.0
        %2307 = vmatpush.msra.mxu0 0.0
        %2308 = vmatpush.msra.mxu0 0.0
        %2309 = vmatpush.msra.mxu0 0.0
        %2310 = vmatpush.msra.mxu0 0.0
        %2311 = vmatpush.msra.mxu0 0.0
        %2312 = vmatpush.msra.mxu0 0.0
        %2313 = vmatpush.msra.mxu0 0.0
        %2314 = vmatpush.msra.mxu0 0.0
        %2315 = vmatpush.msra.mxu0 0.0
        %2316 = vmatpush.msra.mxu0 0.0
        %2317 = vmatpush.msra.mxu0 0.0
        %2318 = vmatpush.msra.mxu0 0.0
        %2319 = vmatpush.msra.mxu0 0.0
        %2320 = vmatpush.msra.mxu0 %v1956
        %2321 = vmatmul.f32.gmra.mxu0 %v2303
        %v2322 = vpop.f32.mrf.mxu0
        %v2323 = vadd.f32 0.0, %v2322
        %2324 = vdwg.mxu0
        %2325 = vst.msk [vmem:[#allocation5] sm:$0xff] %vm799, %v1978
        %2326 = vst.msk [vmem:[#allocation5 + $0x8] sm:$0xff] %vm799, %v2001
        %2327 = vst.msk [vmem:[#allocation5 + $0x10] sm:$0xff] %vm799, %v2024
        %2328 = vst.msk [vmem:[#allocation5 + $0x18] sm:$0xff] %vm799, %v2047
        %2333 = vrot.lane.b32.xlu0 %v2070, 8
        %v2334 = vpop.permute.xlu0 %2333
        %2335 = vrot.lane.b32.xlu0 %v2093, 8
        %v2336 = vpop.permute.xlu0 %2335
        %2337 = vrot.lane.b32.xlu0 %v2116, 8
        %v2338 = vpop.permute.xlu0 %2337
        %2339 = vrot.lane.b32.xlu0 %v2139, 8
        %v2340 = vpop.permute.xlu0 %2339
        %vm2345 = vcmask 130112
        %2346 = vst.msk [vmem:[#allocation5] sm:$0xff] %vm2345, %v2334
        %2347 = vst.msk [vmem:[#allocation5 + $0x8] sm:$0xff] %vm2345, %v2336
        %2348 = vst.msk [vmem:[#allocation5 + $0x10] sm:$0xff] %vm2345, %v2338
        %2349 = vst.msk [vmem:[#allocation5 + $0x18] sm:$0xff] %vm2345, %v2340
        %2354 = vrot.lane.b32.xlu0 %v2162, 16
        %v2355 = vpop.permute.xlu0 %2354
        %2356 = vrot.lane.b32.xlu0 %v2185, 16
        %v2357 = vpop.permute.xlu0 %2356
        %2358 = vrot.lane.b32.xlu0 %v2208, 16
        %v2359 = vpop.permute.xlu0 %2358
        %2360 = vrot.lane.b32.xlu0 %v2231, 16
        %v2361 = vpop.permute.xlu0 %2360
        %vm2366 = vcmask 195712
        %2367 = vst.msk [vmem:[#allocation5] sm:$0xff] %vm2366, %v2355
        %2368 = vst.msk [vmem:[#allocation5 + $0x8] sm:$0xff] %vm2366, %v2357
        %2369 = vst.msk [vmem:[#allocation5 + $0x10] sm:$0xff] %vm2366, %v2359
        %2370 = vst.msk [vmem:[#allocation5 + $0x18] sm:$0xff] %vm2366, %v2361
        %2375 = vrot.lane.b32.xlu0 %v2254, 24
        %v2376 = vpop.permute.xlu0 %2375
        %2377 = vrot.lane.b32.xlu0 %v2277, 24
        %v2378 = vpop.permute.xlu0 %2377
        %2379 = vrot.lane.b32.xlu0 %v2300, 24
        %v2380 = vpop.permute.xlu0 %2379
        %2381 = vrot.lane.b32.xlu0 %v2323, 24
        %v2382 = vpop.permute.xlu0 %2381
        %vm2387 = vcmask 261312
        %2388 = vst.msk [vmem:[#allocation5] sm:$0xff] %vm2387, %v2376
        %2389 = vst.msk [vmem:[#allocation5 + $0x8] sm:$0xff] %vm2387, %v2378
        %2390 = vst.msk [vmem:[#allocation5 + $0x10] sm:$0xff] %vm2387, %v2380
        %2391 = vst.msk [vmem:[#allocation5 + $0x18] sm:$0xff] %vm2387, %v2382
        %v2392 = vld [vmem:[%s482] sm:$0xff]
        %v2393 = vld [vmem:[%s482 + $0x8] sm:$0xff]
        %v2394 = vld [vmem:[%s482 + $0x10] sm:$0xff]
        %v2395 = vld [vmem:[%s482 + $0x18] sm:$0xff]
        %v2396 = vld [vmem:[#allocation5] sm:$0xff]
        %v2397 = vld [vmem:[#allocation5 + $0x8] sm:$0xff]
        %v2398 = vld [vmem:[#allocation5 + $0x10] sm:$0xff]
        %v2399 = vld [vmem:[#allocation5 + $0x18] sm:$0xff]
        %v2400 = vld [vmem:[#allocation13] sm:$0xff]
        %v2401 = vld [vmem:[#allocation13 + $0x8] sm:$0xff]
        %v2402 = vld [vmem:[#allocation13 + $0x10] sm:$0xff]
        %v2403 = vld [vmem:[#allocation13 + $0x18] sm:$0xff]
        %v2405 = vsel %vm499, %v2396, 0
        %v2408 = vsel %vm499, %v2397, 0
        %v2411 = vsel %vm499, %v2398, 0
        %v2414 = vsel %vm499, %v2399, 0
        %2416 = vmatpush.msra.mxu0 0.0
        %2417 = vmatpush.msra.mxu0 0.0
        %2418 = vmatpush.msra.mxu0 0.0
        %2419 = vmatpush.msra.mxu0 0.0
        %2420 = vmatpush.msra.mxu0 0.0
        %2421 = vmatpush.msra.mxu0 0.0
        %2422 = vmatpush.msra.mxu0 0.0
        %2423 = vmatpush.msra.mxu0 0.0
        %2424 = vmatpush.msra.mxu0 0.0
        %2425 = vmatpush.msra.mxu0 0.0
        %2426 = vmatpush.msra.mxu0 0.0
        %2427 = vmatpush.msra.mxu0 0.0
        %2428 = vmatpush.msra.mxu0 %v2403
        %2429 = vmatpush.msra.mxu0 %v2402
        %2430 = vmatpush.msra.mxu0 %v2401
        %2431 = vmatpush.msra.mxu0 %v2400
        %2432 = vmatmul.f32.gmra.mxu0 %v2405
        %v2433 = vpop.f32.mrf.mxu0
        %v2434 = vadd.f32 0.0, %v2433
        %2435 = vmatmul.f32.gmra.mxu0 %v2408
        %v2436 = vpop.f32.mrf.mxu0
        %v2437 = vadd.f32 0.0, %v2436
        %2438 = vmatmul.f32.gmra.mxu0 %v2411
        %v2439 = vpop.f32.mrf.mxu0
        %v2440 = vadd.f32 0.0, %v2439
        %2441 = vmatmul.f32.gmra.mxu0 %v2414
        %v2442 = vpop.f32.mrf.mxu0
        %v2443 = vadd.f32 0.0, %v2442
        %2444 = vdwg.mxu0
        %v2445 = vadd.f32 %v2392, %v2434
        %v2446 = vadd.f32 %v2393, %v2437
        %v2447 = vadd.f32 %v2394, %v2440
        %v2448 = vadd.f32 %v2395, %v2443
        %v2449 = vperm.slane %v489, 0
        %v2450 = vadd.f32 %v2445, %v2449
        %v2451 = vadd.f32 %v2446, %v2449
        %v2452 = vadd.f32 %v2447, %v2449
        %v2453 = vadd.f32 %v2448, %v2449
        %v2454 = vsel %vm499, %v2450, 0.0
        %2455 = vadd.xlane.f32.xlu0 %v2454
        %v2456 = vpop.xlane.xlu0 %2455
        %v2457 = vsel %vm499, %v2451, 0.0
        %2458 = vadd.xlane.f32.xlu0 %v2457
        %v2459 = vpop.xlane.xlu0 %2458
        %v2460 = vsel %vm499, %v2452, 0.0
        %2461 = vadd.xlane.f32.xlu0 %v2460
        %v2462 = vpop.xlane.xlu0 %2461
        %v2463 = vsel %vm499, %v2453, 0.0
        %2464 = vadd.xlane.f32.xlu0 %v2463
        %v2465 = vpop.xlane.xlu0 %2464
        %v2466 = vmul.f32 %v2456, %v518
        %v2467 = vmul.f32 %v2459, %v518
        %v2468 = vmul.f32 %v2462, %v518
        %v2469 = vmul.f32 %v2465, %v518
        %v2470 = vsub.f32 %v2450, %v2466
        %v2471 = vsub.f32 %v2451, %v2467
        %v2472 = vsub.f32 %v2452, %v2468
        %v2473 = vsub.f32 %v2453, %v2469
        %v2474 = vmul.f32 %v2470, %v2470
        %v2475 = vmul.f32 %v2471, %v2471
        %v2476 = vmul.f32 %v2472, %v2472
        %v2477 = vmul.f32 %v2473, %v2473
        %v2478 = vsel %vm499, %v2474, 0.0
        %2479 = vadd.xlane.f32.xlu0 %v2478
        %v2480 = vpop.xlane.xlu0 %2479
        %v2481 = vsel %vm499, %v2475, 0.0
        %2482 = vadd.xlane.f32.xlu0 %v2481
        %v2483 = vpop.xlane.xlu0 %2482
        %v2484 = vsel %vm499, %v2476, 0.0
        %2485 = vadd.xlane.f32.xlu0 %v2484
        %v2486 = vpop.xlane.xlu0 %2485
        %v2487 = vsel %vm499, %v2477, 0.0
        %2488 = vadd.xlane.f32.xlu0 %v2487
        %v2489 = vpop.xlane.xlu0 %2488
        %v2490 = vmul.f32 %v2480, 0.032258064
        %v2491 = vmul.f32 %v2483, 0.032258064
        %v2492 = vmul.f32 %v2486, 0.032258064
        %v2493 = vmul.f32 %v2489, 0.032258064
        %v2494 = vrsqrt.pop %v2490
        %v2495 = vmul.f32 %v2494, %v2490
        %v2496 = vmul.f32 %v2495, %v2494
        %v2497 = vmul.f32 0.5, %v2496
        %v2498 = vsub.f32 1.5, %v2497
        %v2499 = vmul.f32 %v2494, %v2498
        %v2500 = vmul.f32 %v2490, %v2499
        %vm2501 = vcmp.eq.f32.partialorder %v2490, inf
        %v2502 = vsel %vm2501, %v2490, %v2500
        %vm2503 = vcmp.eq.f32.partialorder %v2490, 0.0
        %v2504 = vand.u32 %v2490, 2147483648
        %v2505 = vsel %vm2503, %v2504, %v2502
        %v2506 = vrsqrt.pop %v2491
        %v2507 = vmul.f32 %v2506, %v2491
        %v2508 = vmul.f32 %v2507, %v2506
        %v2509 = vmul.f32 0.5, %v2508
        %v2510 = vsub.f32 1.5, %v2509
        %v2511 = vmul.f32 %v2506, %v2510
        %v2512 = vmul.f32 %v2491, %v2511
        %vm2513 = vcmp.eq.f32.partialorder %v2491, inf
        %v2514 = vsel %vm2513, %v2491, %v2512
        %vm2515 = vcmp.eq.f32.partialorder %v2491, 0.0
        %v2516 = vand.u32 %v2491, 2147483648
        %v2517 = vsel %vm2515, %v2516, %v2514
        %v2518 = vrsqrt.pop %v2492
        %v2519 = vmul.f32 %v2518, %v2492
        %v2520 = vmul.f32 %v2519, %v2518
        %v2521 = vmul.f32 0.5, %v2520
        %v2522 = vsub.f32 1.5, %v2521
        %v2523 = vmul.f32 %v2518, %v2522
        %v2524 = vmul.f32 %v2492, %v2523
        %vm2525 = vcmp.eq.f32.partialorder %v2492, inf
        %v2526 = vsel %vm2525, %v2492, %v2524
        %vm2527 = vcmp.eq.f32.partialorder %v2492, 0.0
        %v2528 = vand.u32 %v2492, 2147483648
        %v2529 = vsel %vm2527, %v2528, %v2526
        %v2530 = vrsqrt.pop %v2493
        %v2531 = vmul.f32 %v2530, %v2493
        %v2532 = vmul.f32 %v2531, %v2530
        %v2533 = vmul.f32 0.5, %v2532
        %v2534 = vsub.f32 1.5, %v2533
        %v2535 = vmul.f32 %v2530, %v2534
        %v2536 = vmul.f32 %v2493, %v2535
        %vm2537 = vcmp.eq.f32.partialorder %v2493, inf
        %v2538 = vsel %vm2537, %v2493, %v2536
        %vm2539 = vcmp.eq.f32.partialorder %v2493, 0.0
        %v2540 = vand.u32 %v2493, 2147483648
        %v2541 = vsel %vm2539, %v2540, %v2538
        %v2542 = vadd.f32 %v2505, 1e-06
        %v2543 = vadd.f32 %v2517, 1e-06
        %v2544 = vadd.f32 %v2529, 1e-06
        %v2545 = vadd.f32 %v2541, 1e-06
        %v2546 = vrcp.pop %v2542
        %v2547 = vmul.f32 %v2542, %v2546
        %v2548 = vsub.f32 1.0, %v2547
        %v2549 = vmul.f32 %v2546, %v2548
        %v2550 = vadd.f32 %v2546, %v2549
        %vm2551 = vweird.f32 %v2542
        %vm2552 = vweird.f32 %v2546
        %vm2553 = vmor %vm2551, %vm2552
        %v2554 = vsel %vm2553, %v2546, %v2550
        %v2555 = vand.u32 2147483647, %v2542
        %vm2556 = vcmp.eq.f32.partialorder %v2555, 8.507059e+37
        %v2557 = vand.u32 %v2542, 2147483648
        %v2558 = vor.u32 1.1754944e-38, %v2557
        %v2559 = vsel %vm2556, %v2558, %v2554
        %v2560 = vmul.f32 1.0, %v2559
        %v2561 = vrcp.pop %v2543
        %v2562 = vmul.f32 %v2543, %v2561
        %v2563 = vsub.f32 1.0, %v2562
        %v2564 = vmul.f32 %v2561, %v2563
        %v2565 = vadd.f32 %v2561, %v2564
        %vm2566 = vweird.f32 %v2543
        %vm2567 = vweird.f32 %v2561
        %vm2568 = vmor %vm2566, %vm2567
        %v2569 = vsel %vm2568, %v2561, %v2565
        %v2570 = vand.u32 2147483647, %v2543
        %vm2571 = vcmp.eq.f32.partialorder %v2570, 8.507059e+37
        %v2572 = vand.u32 %v2543, 2147483648
        %v2573 = vor.u32 1.1754944e-38, %v2572
        %v2574 = vsel %vm2571, %v2573, %v2569
        %v2575 = vmul.f32 1.0, %v2574
        %v2576 = vrcp.pop %v2544
        %v2577 = vmul.f32 %v2544, %v2576
        %v2578 = vsub.f32 1.0, %v2577
        %v2579 = vmul.f32 %v2576, %v2578
        %v2580 = vadd.f32 %v2576, %v2579
        %vm2581 = vweird.f32 %v2544
        %vm2582 = vweird.f32 %v2576
        %vm2583 = vmor %vm2581, %vm2582
        %v2584 = vsel %vm2583, %v2576, %v2580
        %v2585 = vand.u32 2147483647, %v2544
        %vm2586 = vcmp.eq.f32.partialorder %v2585, 8.507059e+37
        %v2587 = vand.u32 %v2544, 2147483648
        %v2588 = vor.u32 1.1754944e-38, %v2587
        %v2589 = vsel %vm2586, %v2588, %v2584
        %v2590 = vmul.f32 1.0, %v2589
        %v2591 = vrcp.pop %v2545
        %v2592 = vmul.f32 %v2545, %v2591
        %v2593 = vsub.f32 1.0, %v2592
        %v2594 = vmul.f32 %v2591, %v2593
        %v2595 = vadd.f32 %v2591, %v2594
        %vm2596 = vweird.f32 %v2545
        %vm2597 = vweird.f32 %v2591
        %vm2598 = vmor %vm2596, %vm2597
        %v2599 = vsel %vm2598, %v2591, %v2595
        %v2600 = vand.u32 2147483647, %v2545
        %vm2601 = vcmp.eq.f32.partialorder %v2600, 8.507059e+37
        %v2602 = vand.u32 %v2545, 2147483648
        %v2603 = vor.u32 1.1754944e-38, %v2602
        %v2604 = vsel %vm2601, %v2603, %v2599
        %v2605 = vmul.f32 1.0, %v2604
        %v2606 = vperm.slane %v493, 0
        %v2607 = vmul.f32 %v2606, %v2470
        %v2608 = vmul.f32 %v2606, %v2471
        %v2609 = vmul.f32 %v2606, %v2472
        %v2610 = vmul.f32 %v2606, %v2473
        %v2611 = vmul.f32 %v2607, %v2560
        %v2612 = vmul.f32 %v2608, %v2575
        %v2613 = vmul.f32 %v2609, %v2590
        %v2614 = vmul.f32 %v2610, %v2605
        %v2615 = vperm.slane %v494, 0
        %v2616 = vadd.f32 %v2611, %v2615
        %v2617 = vadd.f32 %v2612, %v2615
        %v2618 = vadd.f32 %v2613, %v2615
        %v2619 = vadd.f32 %v2614, %v2615
        %v2620 = vld [vmem:[#allocation15] sm:$0xff]
        %v2621 = vld [vmem:[#allocation15 + $0x8] sm:$0xff]
        %v2622 = vld [vmem:[#allocation15 + $0x10] sm:$0xff]
        %v2623 = vld [vmem:[#allocation15 + $0x18] sm:$0xff]
        %v2624 = vld [vmem:[%s9] sm:$0x1]
        %v2626 = vperm.slane %v2624, 0
        %v2629 = vsel %vm499, %v2616, 0
        %v2632 = vsel %vm499, %v2617, 0
        %v2635 = vsel %vm499, %v2618, 0
        %v2638 = vsel %vm499, %v2619, 0
        %2640 = vmatpush.msra.mxu0 0.0
        %2641 = vmatpush.msra.mxu0 0.0
        %2642 = vmatpush.msra.mxu0 0.0
        %2643 = vmatpush.msra.mxu0 0.0
        %2644 = vmatpush.msra.mxu0 0.0
        %2645 = vmatpush.msra.mxu0 0.0
        %2646 = vmatpush.msra.mxu0 0.0
        %2647 = vmatpush.msra.mxu0 0.0
        %2648 = vmatpush.msra.mxu0 0.0
        %2649 = vmatpush.msra.mxu0 0.0
        %2650 = vmatpush.msra.mxu0 0.0
        %2651 = vmatpush.msra.mxu0 0.0
        %2652 = vmatpush.msra.mxu0 %v2623
        %2653 = vmatpush.msra.mxu0 %v2622
        %2654 = vmatpush.msra.mxu0 %v2621
        %2655 = vmatpush.msra.mxu0 %v2620
        %2656 = vmatmul.f32.gmra.mxu0 %v2629
        %v2657 = vpop.f32.mrf.mxu0
        %v2658 = vadd.f32 %v2626, %v2657
        %2659 = vmatmul.f32.gmra.mxu0 %v2632
        %v2660 = vpop.f32.mrf.mxu0
        %v2661 = vadd.f32 %v2626, %v2660
        %2662 = vmatmul.f32.gmra.mxu0 %v2635
        %v2663 = vpop.f32.mrf.mxu0
        %v2664 = vadd.f32 %v2626, %v2663
        %2665 = vmatmul.f32.gmra.mxu0 %v2638
        %v2666 = vpop.f32.mrf.mxu0
        %v2667 = vadd.f32 %v2626, %v2666
        %2668 = vdwg.mxu0
        %v2669 = vmax.f32 %v2658, 0.0
        %v2670 = vmax.f32 %v2661, 0.0
        %v2671 = vmax.f32 %v2664, 0.0
        %v2672 = vmax.f32 %v2667, 0.0
        %v2673 = vld [vmem:[%s7] sm:$0xff]
        %v2674 = vld [vmem:[%s7 + $0x8] sm:$0xff]
        %v2675 = vld [vmem:[%s7 + $0x10] sm:$0xff]
        %v2676 = vld [vmem:[%s7 + $0x18] sm:$0xff]
        %v2677 = vld [vmem:[%s7 + $0x20] sm:$0xff]
        %v2678 = vld [vmem:[%s7 + $0x28] sm:$0xff]
        %v2679 = vld [vmem:[%s7 + $0x30] sm:$0xff]
        %v2680 = vld [vmem:[%s7 + $0x38] sm:$0xff]
        %v2681 = vperm.slane %v490, 0
        %vm2682 = vcmask 523264
        %v2684 = vsel %vm2682, %v2669, 0
        %v2687 = vsel %vm2682, %v2670, 0
        %v2690 = vsel %vm2682, %v2671, 0
        %v2693 = vsel %vm2682, %v2672, 0
        %2695 = vmatpush.msra.mxu0 0.0
        %2696 = vmatpush.msra.mxu0 0.0
        %2697 = vmatpush.msra.mxu0 0.0
        %2698 = vmatpush.msra.mxu0 0.0
        %2699 = vmatpush.msra.mxu0 0.0
        %2700 = vmatpush.msra.mxu0 0.0
        %2701 = vmatpush.msra.mxu0 0.0
        %2702 = vmatpush.msra.mxu0 0.0
        %2703 = vmatpush.msra.mxu0 %v2680
        %2704 = vmatpush.msra.mxu0 %v2679
        %2705 = vmatpush.msra.mxu0 %v2678
        %2706 = vmatpush.msra.mxu0 %v2677
        %2707 = vmatpush.msra.mxu0 %v2676
        %2708 = vmatpush.msra.mxu0 %v2675
        %2709 = vmatpush.msra.mxu0 %v2674
        %2710 = vmatpush.msra.mxu0 %v2673
        %2711 = vmatmul.f32.gmra.mxu0 %v2684
        %v2712 = vpop.f32.mrf.mxu0
        %v2713 = vadd.f32 %v2681, %v2712
        %2714 = vmatmul.f32.gmra.mxu0 %v2687
        %v2715 = vpop.f32.mrf.mxu0
        %v2716 = vadd.f32 %v2681, %v2715
        %2717 = vmatmul.f32.gmra.mxu0 %v2690
        %v2718 = vpop.f32.mrf.mxu0
        %v2719 = vadd.f32 %v2681, %v2718
        %2720 = vmatmul.f32.gmra.mxu0 %v2693
        %v2721 = vpop.f32.mrf.mxu0
        %v2722 = vadd.f32 %v2681, %v2721
        %2723 = vdwg.mxu0
        %v2724 = vadd.f32 %v2450, %v2713
        %v2725 = vadd.f32 %v2451, %v2716
        %v2726 = vadd.f32 %v2452, %v2719
        %v2727 = vadd.f32 %v2453, %v2722
        %2728 = vst.msk [vmem:[%s477] sm:$0xff] %vm499, %v2724
        %2729 = vst.msk [vmem:[%s477 + $0x8] sm:$0xff] %vm499, %v2725
        %2730 = vst.msk [vmem:[%s477 + $0x10] sm:$0xff] %vm499, %v2726
        %2731 = vst.msk [vmem:[%s477 + $0x18] sm:$0xff] %vm499, %v2727
        %s2732 = sand.u32 %s258, 1
        %s2733 = scalar_lea.sflag [#allocation9], %s2732
        %s2734 = sand.u32 %s258, 1
        %s2735 = smul.addr %s2734, 32
        %s2736 = scalar_lea.vmem [#allocation18], %s2735
        // Predicated region
        $region85: #{tpu_custom_call.1} parent=59 // pred_check
          %p2737 = pneg %p268
        $region86: #{tpu_custom_call.1} parent=59 // pred_check_branch
          %2739 = sbr.rel (%p2737) target = $region88
        $region87: #{tpu_custom_call.1} parent=59 // pred_region
          %s2740 = smul.u32 4, %s30
          %2742 = vsyncadd %s2733, 0
          %s2743 = smul.addr %s2740, 8
          %s2744 = scalar_lea.hbm %s10, %s2743
          %s2745 = sshll.u32 %s2736, 4
          %s2746 = int_to_ptr.vmem [resolvable:$true] %s2745
          %s2747 = sshll.u32 %s2744, 4
          %s2748 = int_to_ptr.hbm [resolvable:$true] %s2747
          %2753 = dma.vmem_to_hbm [thread:$0]  %s2746, 512, %s2748, %s2733, 128, 128, 8
        $region88: #{tpu_custom_call.1} parent=59 // pred_fallthru
          _
      $region60: #{tpu_custom_call.1} parent=5 // pred_fallthru
        _
      %p2754 = scmp.le.s32.totalorder 2, %s25
      // Predicated region
      $region89: #{tpu_custom_call.1} parent=5 // pred_check
        %p2755 = pneg %p2754
      $region90: #{tpu_custom_call.1} parent=5 // pred_check_branch
        %2757 = sbr.rel (%p2755) target = $region92
      $region91: #{tpu_custom_call.1} parent=5 // pred_region
        %s2758 = ssub.s32 %s25, 2
        // Predicated region
        $region93: #{tpu_custom_call.1} parent=91 // pred_check
          %p2759 = pneg %p274
        $region94: #{tpu_custom_call.1} parent=91 // pred_check_branch
          %2761 = sbr.rel (%p2759) target = $region96
        $region95: #{tpu_custom_call.1} parent=91 // pred_region
          %s2762 = sand.u32 %s259, 1
          %s2763 = scalar_lea.sflag [#allocation9], %s2762
          %s2764 = sand.u32 %s259, 1
          %s2765 = smul.addr %s2764, 32
          %s2766 = scalar_lea.vmem [#allocation18], %s2765
          %2768 = dma.done %s2763, 512
        $region96: #{tpu_custom_call.1} parent=91 // pred_fallthru
          _
      $region92: #{tpu_custom_call.1} parent=5 // pred_fallthru
        _
    $region6: #{tpu_custom_call.1} parent=1 // loop_footer
      %s29 = sadd.s32 1, %s25
    $region7: #{tpu_custom_call.1} parent=1 // loop_footer_branch
      %24 = sbr.rel target = $region3
    $region8: #{tpu_custom_call.1} parent=1 // loop_exit
      _
    %2769 = vsyncpa [#allocation8], 1
    %s2770 = scalar_lea.sflag [#allocation8], 1
    %2771 = vsyncpa %s2770, 1
    %2772 = vsyncpa [#allocation11], 1
    %2773 = vsyncpa [#allocation14], 1
    %2774 = vsyncpa [#allocation17], 1
    %2775 = vsyncpa [#allocation9], 1
    %s2776 = scalar_lea.sflag [#allocation9], 1
    %2777 = vsyncpa %s2776, 1

</llo_original>
